<compile_context>
chip_gen: v7x
topology: tpu7x:2x2x1
jax: 0.10.0
libtpu: 0.0.40
codegen_flags: <defaults>
</compile_context>

<pallas_src>
import functools

import jax
import jax.numpy as jnp
from jax.experimental import pallas as pl
from jax.experimental.pallas import tpu as pltpu


def _encoder_kernel(tok_ref, emb_ref, wih_ref, bias_i_ref, bhn_ref, whh_hbm,
                    out_ref, whh_vmem, whh_sem, *, seq_len, batch, hidden):
    """Fused embedding gather + full GRU recurrence in one kernel invocation.

    tok_ref    : (S*B,)    int32  SMEM  flattened token ids (row = t*B + b)
    emb_ref    : (V, 1, H) f32    VMEM  embedding table (leading axis = vocab)
    wih_ref    : (H, 3H)   bf16   VMEM  W_ih^T, gate order [r | z | n]
    bias_i_ref : (1, 3H)   f32    VMEM  [b_ir+b_hr | b_iz+b_hz | b_in]
    bhn_ref    : (1, H)    f32    VMEM  b_hn
    whh_hbm    : (H, 3H)   bf16   HBM   W_hh^T (manually DMA'd below)
    out_ref    : (1, B, H) f32    VMEM  final hidden state (nn.GRU's `hidden`)
    whh_vmem   : (H, 3H)   bf16   VMEM  scratch landing buffer for W_hh^T
    whh_sem    : DMA semaphore for the W_hh copy
    """
    S, B, H = seq_len, batch, hidden

    # W_hh^T is only needed by the recurrence -> overlap its HBM->VMEM copy
    # with the embedding gather and the input-side matmul below.
    whh_copy = pltpu.make_async_copy(whh_hbm, whh_vmem, whh_sem)
    whh_copy.start()

    # --- Embedding gather: SMEM scalar ids -> dynamic leading-axis loads. ---
    # (scalar reads happen before the DMA .wait(), keeping sst->sld forwarding)
    rows = [emb_ref[tok_ref[i]] for i in range(S * B)]           # each (1, H) f32
    x_all = jnp.concatenate(rows, axis=0)                        # (S*B, H) f32

    # --- Input-side gate pre-activations for every step in one bf16 matmul. --
    gi_all = jnp.dot(x_all.astype(jnp.bfloat16), wih_ref[...],
                     preferred_element_type=jnp.float32) + bias_i_ref[...]

    b_hn = jnp.broadcast_to(bhn_ref[...], (B, H))                # hoisted once

    whh_copy.wait()                                              # W_hh now in VMEM

    # --- Sequential recurrence, fully unrolled (S is small & static). --------
    h = jnp.zeros((B, H), jnp.float32)                           # PyTorch h0 = 0
    for t in range(S):
        gi = gi_all[t * B:(t + 1) * B, :]                        # (B, 3H) f32
        # Read W_hh through the ref at the dot site (no hoisted VMEM copy);
        # bf16 operands, f32 accumulation, f32 recurrent state.
        gh = jnp.dot(h.astype(jnp.bfloat16), whh_vmem[...],
                     preferred_element_type=jnp.float32)         # (B, 3H) f32
        r = jax.nn.sigmoid(gi[:, :H] + gh[:, :H])
        z = jax.nn.sigmoid(gi[:, H:2 * H] + gh[:, H:2 * H])
        n = jnp.tanh(gi[:, 2 * H:] + r * (gh[:, 2 * H:] + b_hn))
        h = (1.0 - z) * n + z * h

    out_ref[0] = h


def prepare_params(params):
    """One-time parameter preprocessing (kept OUT of the per-call hot path)."""
    V, H = params["embedding"].shape
    b_ih, b_hh = params["b_ih"], params["b_hh"]
    return {
        # (V, 1, H): untiled leading vocab axis -> cheap dynamic row loads.
        "emb": params["embedding"].astype(jnp.float32).reshape(V, 1, H),
        "w_ih_t": params["w_ih"].T.astype(jnp.bfloat16),          # (H, 3H)
        "w_hh_t": params["w_hh"].T.astype(jnp.bfloat16),          # (H, 3H)
        # [b_ir+b_hr | b_iz+b_hz | b_in]; b_hn stays separate (inside r*(...)).
        "bias_i": jnp.concatenate([b_ih[:2 * H] + b_hh[:2 * H],
                                   b_ih[2 * H:]])[None, :].astype(jnp.float32),
        "b_hn": b_hh[2 * H:][None, :].astype(jnp.float32),
    }


@jax.jit
def encoder_forward(tokens, prep):
    """tokens: (S, B) int32 -> final hidden (1, B, H) f32 (== Encoder.forward)."""
    S, B = tokens.shape
    H = prep["w_ih_t"].shape[0]
    tok_flat = tokens.reshape(S * B).astype(jnp.int32)

    kernel = functools.partial(_encoder_kernel, seq_len=S, batch=B, hidden=H)
    vmem = pl.BlockSpec(memory_space=pltpu.MemorySpace.VMEM)
    smem = pl.BlockSpec(memory_space=pltpu.MemorySpace.SMEM)
    return pl.pallas_call(
        kernel,
        out_shape=jax.ShapeDtypeStruct((1, B, H), jnp.float32),
        in_specs=[smem,                                   # token ids
                  vmem,                                   # embedding table
                  vmem,                                   # W_ih^T (bf16)
                  vmem,                                   # combined input bias
                  vmem,                                   # b_hn
                  pl.BlockSpec(memory_space=pl.ANY)],     # W_hh^T stays in HBM
        out_specs=vmem,
        scratch_shapes=[pltpu.VMEM((H, 3 * H), jnp.bfloat16),   # W_hh landing buf
                        pltpu.SemaphoreType.DMA],               # its DMA sem
    )(tok_flat, prep["emb"], prep["w_ih_t"], prep["bias_i"], prep["b_hn"],
      prep["w_hh_t"])


def _reference_forward(tokens, params):
    """Pure-JAX f32 reference of nn.Embedding + nn.GRU (returns final hidden)."""
    x = jnp.take(params["embedding"], tokens, axis=0)            # (S, B, H)
    S, B, H = x.shape
    w_ih_t = params["w_ih"].T
    w_hh_t = params["w_hh"].T
    b_ih = params["b_ih"]
    b_hh = params["b_hh"]

    def step(h, x_t):
        gi = x_t @ w_ih_t + b_ih
        gh = h @ w_hh_t + b_hh
        i_r, i_z, i_n = gi[:, :H], gi[:, H:2 * H], gi[:, 2 * H:]
        h_r, h_z, h_n = gh[:, :H], gh[:, H:2 * H], gh[:, 2 * H:]
        r = jax.nn.sigmoid(i_r + h_r)
        z = jax.nn.sigmoid(i_z + h_z)
        n = jnp.tanh(i_n + r * h_n)
        return (1.0 - z) * n + z * h, None

    h0 = jnp.zeros((B, H), jnp.float32)
    h_last, _ = jax.lax.scan(step, h0, x)
    return h_last[None]                                          # (1, B, H)


def make_params(key, vocab_size, hidden):
    """Deterministic init mirroring PyTorch defaults (shapes are what matter)."""
    k_emb, k1, k2, k3, k4 = jax.random.split(key, 5)
    bound = 1.0 / jnp.sqrt(hidden)
    return {
        # nn.Embedding: N(0, 1)
        "embedding": jax.random.normal(k_emb, (vocab_size, hidden), jnp.float32),
        # nn.GRU: U(-1/sqrt(H), 1/sqrt(H)), gate order [r | z | n]
        "w_ih": jax.random.uniform(k1, (3 * hidden, hidden), jnp.float32, -bound, bound),
        "w_hh": jax.random.uniform(k2, (3 * hidden, hidden), jnp.float32, -bound, bound),
        "b_ih": jax.random.uniform(k3, (3 * hidden,), jnp.float32, -bound, bound),
        "b_hh": jax.random.uniform(k4, (3 * hidden,), jnp.float32, -bound, bound),
    }


if __name__ == "__main__":
    # Shapes from the module spec: input_size(vocab)=10, hidden_size=256.
    vocab_size = 10
    hidden = 256
    seq_len = 8
    batch = 2

    key = jax.random.PRNGKey(0)
    k_params, k_tok = jax.random.split(key)
    params = make_params(k_params, vocab_size, hidden)
    prep = prepare_params(params)                 # one-time weight prep
    tokens = jax.random.randint(k_tok, (seq_len, batch), 0, vocab_size, jnp.int32)

    hidden_out = jax.block_until_ready(encoder_forward(tokens, prep))
    assert hidden_out.shape == (1, batch, hidden)
    assert hidden_out.dtype == jnp.float32

    ref = jax.block_until_ready(_reference_forward(tokens, params))
    # bf16 matmul operands (f32 accumulation / f32 recurrent state) vs. the
    # pure-f32 reference: tolerance loosened accordingly (per review note).
    assert jnp.allclose(hidden_out, ref, atol=3e-2, rtol=3e-2), (
        "Pallas GRU encoder mismatch vs. JAX reference: "
        f"max abs err {jnp.max(jnp.abs(hidden_out - ref))}")

    print("KERNEL_OK")
</pallas_src>

<mosaic_0001>
module attributes {stable_mosaic.version = 11 : i64} {
  func.func @_encoder_kernel(%arg0: memref<16xi32, #tpu.memory_space<smem>>, %arg1: memref<10x1x256xf32, #tpu.memory_space<vmem>>, %arg2: memref<256x768xbf16, #tpu.memory_space<vmem>>, %arg3: memref<1x768xf32, #tpu.memory_space<vmem>>, %arg4: memref<1x256xf32, #tpu.memory_space<vmem>>, %arg5: memref<256x768xbf16, #tpu.memory_space<any>>, %arg6: memref<1x2x256xf32, #tpu.memory_space<vmem>>, %arg7: memref<256x768xbf16, #tpu.memory_space<vmem>>, %arg8: memref<!tpu.dma_semaphore, #tpu.memory_space<semaphore_mem>>) attributes {dimension_semantics = [], scalar_prefetch = 0 : i64, scratch_operands = 2 : i64, tpu.core_type = #tpu.core_type<tc>} {
    tpu.enqueue_dma source(%arg5 : memref<256x768xbf16, #tpu.memory_space<any>>) target(%arg7 : memref<256x768xbf16, #tpu.memory_space<vmem>>) target_semaphore(%arg8 : memref<!tpu.dma_semaphore, #tpu.memory_space<semaphore_mem>>)
    %c0 = arith.constant 0 : index
    %0 = memref.load %arg0[%c0] : memref<16xi32, #tpu.memory_space<smem>>
    %1 = arith.index_cast %0 : i32 to index
    %c0_0 = arith.constant 0 : index
    %c0_1 = arith.constant 0 : index
    %2 = vector.load %arg1[%1, %c0_0, %c0_1] : memref<10x1x256xf32, #tpu.memory_space<vmem>>, vector<1x1x256xf32>
    %3 = vector.shape_cast %2 : vector<1x1x256xf32> to vector<1x256xf32>
    %c1 = arith.constant 1 : index
    %4 = memref.load %arg0[%c1] : memref<16xi32, #tpu.memory_space<smem>>
    %5 = arith.index_cast %4 : i32 to index
    %c0_2 = arith.constant 0 : index
    %c0_3 = arith.constant 0 : index
    %6 = vector.load %arg1[%5, %c0_2, %c0_3] : memref<10x1x256xf32, #tpu.memory_space<vmem>>, vector<1x1x256xf32>
    %7 = vector.shape_cast %6 : vector<1x1x256xf32> to vector<1x256xf32>
    %c2 = arith.constant 2 : index
    %8 = memref.load %arg0[%c2] : memref<16xi32, #tpu.memory_space<smem>>
    %9 = arith.index_cast %8 : i32 to index
    %c0_4 = arith.constant 0 : index
    %c0_5 = arith.constant 0 : index
    %10 = vector.load %arg1[%9, %c0_4, %c0_5] : memref<10x1x256xf32, #tpu.memory_space<vmem>>, vector<1x1x256xf32>
    %11 = vector.shape_cast %10 : vector<1x1x256xf32> to vector<1x256xf32>
    %c3 = arith.constant 3 : index
    %12 = memref.load %arg0[%c3] : memref<16xi32, #tpu.memory_space<smem>>
    %13 = arith.index_cast %12 : i32 to index
    %c0_6 = arith.constant 0 : index
    %c0_7 = arith.constant 0 : index
    %14 = vector.load %arg1[%13, %c0_6, %c0_7] : memref<10x1x256xf32, #tpu.memory_space<vmem>>, vector<1x1x256xf32>
    %15 = vector.shape_cast %14 : vector<1x1x256xf32> to vector<1x256xf32>
    %c4 = arith.constant 4 : index
    %16 = memref.load %arg0[%c4] : memref<16xi32, #tpu.memory_space<smem>>
    %17 = arith.index_cast %16 : i32 to index
    %c0_8 = arith.constant 0 : index
    %c0_9 = arith.constant 0 : index
    %18 = vector.load %arg1[%17, %c0_8, %c0_9] : memref<10x1x256xf32, #tpu.memory_space<vmem>>, vector<1x1x256xf32>
    %19 = vector.shape_cast %18 : vector<1x1x256xf32> to vector<1x256xf32>
    %c5 = arith.constant 5 : index
    %20 = memref.load %arg0[%c5] : memref<16xi32, #tpu.memory_space<smem>>
    %21 = arith.index_cast %20 : i32 to index
    %c0_10 = arith.constant 0 : index
    %c0_11 = arith.constant 0 : index
    %22 = vector.load %arg1[%21, %c0_10, %c0_11] : memref<10x1x256xf32, #tpu.memory_space<vmem>>, vector<1x1x256xf32>
    %23 = vector.shape_cast %22 : vector<1x1x256xf32> to vector<1x256xf32>
    %c6 = arith.constant 6 : index
    %24 = memref.load %arg0[%c6] : memref<16xi32, #tpu.memory_space<smem>>
    %25 = arith.index_cast %24 : i32 to index
    %c0_12 = arith.constant 0 : index
    %c0_13 = arith.constant 0 : index
    %26 = vector.load %arg1[%25, %c0_12, %c0_13] : memref<10x1x256xf32, #tpu.memory_space<vmem>>, vector<1x1x256xf32>
    %27 = vector.shape_cast %26 : vector<1x1x256xf32> to vector<1x256xf32>
    %c7 = arith.constant 7 : index
    %28 = memref.load %arg0[%c7] : memref<16xi32, #tpu.memory_space<smem>>
    %29 = arith.index_cast %28 : i32 to index
    %c0_14 = arith.constant 0 : index
    %c0_15 = arith.constant 0 : index
    %30 = vector.load %arg1[%29, %c0_14, %c0_15] : memref<10x1x256xf32, #tpu.memory_space<vmem>>, vector<1x1x256xf32>
    %31 = vector.shape_cast %30 : vector<1x1x256xf32> to vector<1x256xf32>
    %c8 = arith.constant 8 : index
    %32 = memref.load %arg0[%c8] : memref<16xi32, #tpu.memory_space<smem>>
    %33 = arith.index_cast %32 : i32 to index
    %c0_16 = arith.constant 0 : index
    %c0_17 = arith.constant 0 : index
    %34 = vector.load %arg1[%33, %c0_16, %c0_17] : memref<10x1x256xf32, #tpu.memory_space<vmem>>, vector<1x1x256xf32>
    %35 = vector.shape_cast %34 : vector<1x1x256xf32> to vector<1x256xf32>
    %c9 = arith.constant 9 : index
    %36 = memref.load %arg0[%c9] : memref<16xi32, #tpu.memory_space<smem>>
    %37 = arith.index_cast %36 : i32 to index
    %c0_18 = arith.constant 0 : index
    %c0_19 = arith.constant 0 : index
    %38 = vector.load %arg1[%37, %c0_18, %c0_19] : memref<10x1x256xf32, #tpu.memory_space<vmem>>, vector<1x1x256xf32>
    %39 = vector.shape_cast %38 : vector<1x1x256xf32> to vector<1x256xf32>
    %c10 = arith.constant 10 : index
    %40 = memref.load %arg0[%c10] : memref<16xi32, #tpu.memory_space<smem>>
    %41 = arith.index_cast %40 : i32 to index
    %c0_20 = arith.constant 0 : index
    %c0_21 = arith.constant 0 : index
    %42 = vector.load %arg1[%41, %c0_20, %c0_21] : memref<10x1x256xf32, #tpu.memory_space<vmem>>, vector<1x1x256xf32>
    %43 = vector.shape_cast %42 : vector<1x1x256xf32> to vector<1x256xf32>
    %c11 = arith.constant 11 : index
    %44 = memref.load %arg0[%c11] : memref<16xi32, #tpu.memory_space<smem>>
    %45 = arith.index_cast %44 : i32 to index
    %c0_22 = arith.constant 0 : index
    %c0_23 = arith.constant 0 : index
    %46 = vector.load %arg1[%45, %c0_22, %c0_23] : memref<10x1x256xf32, #tpu.memory_space<vmem>>, vector<1x1x256xf32>
    %47 = vector.shape_cast %46 : vector<1x1x256xf32> to vector<1x256xf32>
    %c12 = arith.constant 12 : index
    %48 = memref.load %arg0[%c12] : memref<16xi32, #tpu.memory_space<smem>>
    %49 = arith.index_cast %48 : i32 to index
    %c0_24 = arith.constant 0 : index
    %c0_25 = arith.constant 0 : index
    %50 = vector.load %arg1[%49, %c0_24, %c0_25] : memref<10x1x256xf32, #tpu.memory_space<vmem>>, vector<1x1x256xf32>
    %51 = vector.shape_cast %50 : vector<1x1x256xf32> to vector<1x256xf32>
    %c13 = arith.constant 13 : index
    %52 = memref.load %arg0[%c13] : memref<16xi32, #tpu.memory_space<smem>>
    %53 = arith.index_cast %52 : i32 to index
    %c0_26 = arith.constant 0 : index
    %c0_27 = arith.constant 0 : index
    %54 = vector.load %arg1[%53, %c0_26, %c0_27] : memref<10x1x256xf32, #tpu.memory_space<vmem>>, vector<1x1x256xf32>
    %55 = vector.shape_cast %54 : vector<1x1x256xf32> to vector<1x256xf32>
    %c14 = arith.constant 14 : index
    %56 = memref.load %arg0[%c14] : memref<16xi32, #tpu.memory_space<smem>>
    %57 = arith.index_cast %56 : i32 to index
    %c0_28 = arith.constant 0 : index
    %c0_29 = arith.constant 0 : index
    %58 = vector.load %arg1[%57, %c0_28, %c0_29] : memref<10x1x256xf32, #tpu.memory_space<vmem>>, vector<1x1x256xf32>
    %59 = vector.shape_cast %58 : vector<1x1x256xf32> to vector<1x256xf32>
    %c15 = arith.constant 15 : index
    %60 = memref.load %arg0[%c15] : memref<16xi32, #tpu.memory_space<smem>>
    %61 = arith.index_cast %60 : i32 to index
    %c0_30 = arith.constant 0 : index
    %c0_31 = arith.constant 0 : index
    %62 = vector.load %arg1[%61, %c0_30, %c0_31] : memref<10x1x256xf32, #tpu.memory_space<vmem>>, vector<1x1x256xf32>
    %63 = vector.shape_cast %62 : vector<1x1x256xf32> to vector<1x256xf32>
    %64 = tpu.concatenate %3, %7, %11, %15, %19, %23, %27, %31, %35, %39, %43, %47, %51, %55, %59, %63 in 0 : vector<1x256xf32>, vector<1x256xf32>, vector<1x256xf32>, vector<1x256xf32>, vector<1x256xf32>, vector<1x256xf32>, vector<1x256xf32>, vector<1x256xf32>, vector<1x256xf32>, vector<1x256xf32>, vector<1x256xf32>, vector<1x256xf32>, vector<1x256xf32>, vector<1x256xf32>, vector<1x256xf32>, vector<1x256xf32> -> vector<16x256xf32>
    %65 = arith.truncf %64 : vector<16x256xf32> to vector<16x256xbf16>
    %c0_32 = arith.constant 0 : index
    %c0_33 = arith.constant 0 : index
    %66 = vector.load %arg2[%c0_32, %c0_33] : memref<256x768xbf16, #tpu.memory_space<vmem>>, vector<256x768xbf16>
    %cst = arith.constant dense<0.000000e+00> : vector<16x768xf32>
    %67 = tpu.matmul %65, %66, %cst {dimension_numbers = #tpu.dot_dimension_numbers<[1], [0], [0], [1], [0, 0, 1, 1], [], []>} : vector<16x256xbf16>, vector<256x768xbf16>, vector<16x768xf32> -> vector<16x768xf32>
    %c0_34 = arith.constant 0 : index
    %c0_35 = arith.constant 0 : index
    %68 = vector.load %arg3[%c0_34, %c0_35] : memref<1x768xf32, #tpu.memory_space<vmem>>, vector<1x768xf32>
    %69 = vector.broadcast %68 : vector<1x768xf32> to vector<16x768xf32>
    %70 = arith.addf %67, %69 : vector<16x768xf32>
    %c0_36 = arith.constant 0 : index
    %c0_37 = arith.constant 0 : index
    %71 = vector.load %arg4[%c0_36, %c0_37] : memref<1x256xf32, #tpu.memory_space<vmem>>, vector<1x256xf32>
    %72 = vector.shape_cast %71 : vector<1x256xf32> to vector<1x256xf32>
    %73 = vector.broadcast %72 : vector<1x256xf32> to vector<2x256xf32>
    tpu.wait_dma2 semaphore(%arg8 : memref<!tpu.dma_semaphore, #tpu.memory_space<semaphore_mem>>) src(%arg5 : memref<256x768xbf16, #tpu.memory_space<any>>) dst(%arg7 : memref<256x768xbf16, #tpu.memory_space<vmem>>)
    %cst_38 = arith.constant 0.000000e+00 : f32
    %74 = vector.broadcast %cst_38 : f32 to vector<2x256xf32>
    %75 = vector.extract_strided_slice %70 {offsets = [0, 0], sizes = [2, 768], strides = [1, 1]} : vector<16x768xf32> to vector<2x768xf32>
    %76 = arith.truncf %74 : vector<2x256xf32> to vector<2x256xbf16>
    %c0_39 = arith.constant 0 : index
    %c0_40 = arith.constant 0 : index
    %77 = vector.load %arg7[%c0_39, %c0_40] : memref<256x768xbf16, #tpu.memory_space<vmem>>, vector<256x768xbf16>
    %cst_41 = arith.constant dense<0.000000e+00> : vector<2x768xf32>
    %78 = tpu.matmul %76, %77, %cst_41 {dimension_numbers = #tpu.dot_dimension_numbers<[1], [0], [0], [1], [0, 0, 1, 1], [], []>} : vector<2x256xbf16>, vector<256x768xbf16>, vector<2x768xf32> -> vector<2x768xf32>
    %79 = vector.extract_strided_slice %75 {offsets = [0, 0], sizes = [2, 256], strides = [1, 1]} : vector<2x768xf32> to vector<2x256xf32>
    %80 = vector.extract_strided_slice %78 {offsets = [0, 0], sizes = [2, 256], strides = [1, 1]} : vector<2x768xf32> to vector<2x256xf32>
    %81 = arith.addf %79, %80 : vector<2x256xf32>
    %82 = arith.negf %81 : vector<2x256xf32>
    %83 = math.exp %82 : vector<2x256xf32>
    %cst_42 = arith.constant 1.000000e+00 : f32
    %84 = vector.broadcast %cst_42 : f32 to vector<2x256xf32>
    %85 = arith.addf %84, %83 : vector<2x256xf32>
    %86 = arith.divf %84, %85 : vector<2x256xf32>
    %87 = vector.extract_strided_slice %75 {offsets = [0, 256], sizes = [2, 256], strides = [1, 1]} : vector<2x768xf32> to vector<2x256xf32>
    %88 = vector.extract_strided_slice %78 {offsets = [0, 256], sizes = [2, 256], strides = [1, 1]} : vector<2x768xf32> to vector<2x256xf32>
    %89 = arith.addf %87, %88 : vector<2x256xf32>
    %90 = arith.negf %89 : vector<2x256xf32>
    %91 = math.exp %90 : vector<2x256xf32>
    %cst_43 = arith.constant 1.000000e+00 : f32
    %92 = vector.broadcast %cst_43 : f32 to vector<2x256xf32>
    %93 = arith.addf %92, %91 : vector<2x256xf32>
    %94 = arith.divf %92, %93 : vector<2x256xf32>
    %95 = vector.extract_strided_slice %75 {offsets = [0, 512], sizes = [2, 256], strides = [1, 1]} : vector<2x768xf32> to vector<2x256xf32>
    %96 = vector.extract_strided_slice %78 {offsets = [0, 512], sizes = [2, 256], strides = [1, 1]} : vector<2x768xf32> to vector<2x256xf32>
    %97 = arith.addf %96, %73 : vector<2x256xf32>
    %98 = arith.mulf %86, %97 : vector<2x256xf32>
    %99 = arith.addf %95, %98 : vector<2x256xf32>
    %100 = math.tanh %99 : vector<2x256xf32>
    %cst_44 = arith.constant 1.000000e+00 : f32
    %101 = vector.broadcast %cst_44 : f32 to vector<2x256xf32>
    %102 = arith.subf %101, %94 : vector<2x256xf32>
    %103 = arith.mulf %102, %100 : vector<2x256xf32>
    %104 = arith.mulf %94, %74 : vector<2x256xf32>
    %105 = arith.addf %103, %104 : vector<2x256xf32>
    %106 = vector.extract_strided_slice %70 {offsets = [2, 0], sizes = [2, 768], strides = [1, 1]} : vector<16x768xf32> to vector<2x768xf32>
    %107 = arith.truncf %105 : vector<2x256xf32> to vector<2x256xbf16>
    %c0_45 = arith.constant 0 : index
    %c0_46 = arith.constant 0 : index
    %108 = vector.load %arg7[%c0_45, %c0_46] : memref<256x768xbf16, #tpu.memory_space<vmem>>, vector<256x768xbf16>
    %cst_47 = arith.constant dense<0.000000e+00> : vector<2x768xf32>
    %109 = tpu.matmul %107, %108, %cst_47 {dimension_numbers = #tpu.dot_dimension_numbers<[1], [0], [0], [1], [0, 0, 1, 1], [], []>} : vector<2x256xbf16>, vector<256x768xbf16>, vector<2x768xf32> -> vector<2x768xf32>
    %110 = vector.extract_strided_slice %106 {offsets = [0, 0], sizes = [2, 256], strides = [1, 1]} : vector<2x768xf32> to vector<2x256xf32>
    %111 = vector.extract_strided_slice %109 {offsets = [0, 0], sizes = [2, 256], strides = [1, 1]} : vector<2x768xf32> to vector<2x256xf32>
    %112 = arith.addf %110, %111 : vector<2x256xf32>
    %113 = arith.negf %112 : vector<2x256xf32>
    %114 = math.exp %113 : vector<2x256xf32>
    %cst_48 = arith.constant 1.000000e+00 : f32
    %115 = vector.broadcast %cst_48 : f32 to vector<2x256xf32>
    %116 = arith.addf %115, %114 : vector<2x256xf32>
    %117 = arith.divf %115, %116 : vector<2x256xf32>
    %118 = vector.extract_strided_slice %106 {offsets = [0, 256], sizes = [2, 256], strides = [1, 1]} : vector<2x768xf32> to vector<2x256xf32>
    %119 = vector.extract_strided_slice %109 {offsets = [0, 256], sizes = [2, 256], strides = [1, 1]} : vector<2x768xf32> to vector<2x256xf32>
    %120 = arith.addf %118, %119 : vector<2x256xf32>
    %121 = arith.negf %120 : vector<2x256xf32>
    %122 = math.exp %121 : vector<2x256xf32>
    %cst_49 = arith.constant 1.000000e+00 : f32
    %123 = vector.broadcast %cst_49 : f32 to vector<2x256xf32>
    %124 = arith.addf %123, %122 : vector<2x256xf32>
    %125 = arith.divf %123, %124 : vector<2x256xf32>
    %126 = vector.extract_strided_slice %106 {offsets = [0, 512], sizes = [2, 256], strides = [1, 1]} : vector<2x768xf32> to vector<2x256xf32>
    %127 = vector.extract_strided_slice %109 {offsets = [0, 512], sizes = [2, 256], strides = [1, 1]} : vector<2x768xf32> to vector<2x256xf32>
    %128 = arith.addf %127, %73 : vector<2x256xf32>
    %129 = arith.mulf %117, %128 : vector<2x256xf32>
    %130 = arith.addf %126, %129 : vector<2x256xf32>
    %131 = math.tanh %130 : vector<2x256xf32>
    %cst_50 = arith.constant 1.000000e+00 : f32
    %132 = vector.broadcast %cst_50 : f32 to vector<2x256xf32>
    %133 = arith.subf %132, %125 : vector<2x256xf32>
    %134 = arith.mulf %133, %131 : vector<2x256xf32>
    %135 = arith.mulf %125, %105 : vector<2x256xf32>
    %136 = arith.addf %134, %135 : vector<2x256xf32>
    %137 = vector.extract_strided_slice %70 {offsets = [4, 0], sizes = [2, 768], strides = [1, 1]} : vector<16x768xf32> to vector<2x768xf32>
    %138 = arith.truncf %136 : vector<2x256xf32> to vector<2x256xbf16>
    %c0_51 = arith.constant 0 : index
    %c0_52 = arith.constant 0 : index
    %139 = vector.load %arg7[%c0_51, %c0_52] : memref<256x768xbf16, #tpu.memory_space<vmem>>, vector<256x768xbf16>
    %cst_53 = arith.constant dense<0.000000e+00> : vector<2x768xf32>
    %140 = tpu.matmul %138, %139, %cst_53 {dimension_numbers = #tpu.dot_dimension_numbers<[1], [0], [0], [1], [0, 0, 1, 1], [], []>} : vector<2x256xbf16>, vector<256x768xbf16>, vector<2x768xf32> -> vector<2x768xf32>
    %141 = vector.extract_strided_slice %137 {offsets = [0, 0], sizes = [2, 256], strides = [1, 1]} : vector<2x768xf32> to vector<2x256xf32>
    %142 = vector.extract_strided_slice %140 {offsets = [0, 0], sizes = [2, 256], strides = [1, 1]} : vector<2x768xf32> to vector<2x256xf32>
    %143 = arith.addf %141, %142 : vector<2x256xf32>
    %144 = arith.negf %143 : vector<2x256xf32>
    %145 = math.exp %144 : vector<2x256xf32>
    %cst_54 = arith.constant 1.000000e+00 : f32
    %146 = vector.broadcast %cst_54 : f32 to vector<2x256xf32>
    %147 = arith.addf %146, %145 : vector<2x256xf32>
    %148 = arith.divf %146, %147 : vector<2x256xf32>
    %149 = vector.extract_strided_slice %137 {offsets = [0, 256], sizes = [2, 256], strides = [1, 1]} : vector<2x768xf32> to vector<2x256xf32>
    %150 = vector.extract_strided_slice %140 {offsets = [0, 256], sizes = [2, 256], strides = [1, 1]} : vector<2x768xf32> to vector<2x256xf32>
    %151 = arith.addf %149, %150 : vector<2x256xf32>
    %152 = arith.negf %151 : vector<2x256xf32>
    %153 = math.exp %152 : vector<2x256xf32>
    %cst_55 = arith.constant 1.000000e+00 : f32
    %154 = vector.broadcast %cst_55 : f32 to vector<2x256xf32>
    %155 = arith.addf %154, %153 : vector<2x256xf32>
    %156 = arith.divf %154, %155 : vector<2x256xf32>
    %157 = vector.extract_strided_slice %137 {offsets = [0, 512], sizes = [2, 256], strides = [1, 1]} : vector<2x768xf32> to vector<2x256xf32>
    %158 = vector.extract_strided_slice %140 {offsets = [0, 512], sizes = [2, 256], strides = [1, 1]} : vector<2x768xf32> to vector<2x256xf32>
    %159 = arith.addf %158, %73 : vector<2x256xf32>
    %160 = arith.mulf %148, %159 : vector<2x256xf32>
    %161 = arith.addf %157, %160 : vector<2x256xf32>
    %162 = math.tanh %161 : vector<2x256xf32>
    %cst_56 = arith.constant 1.000000e+00 : f32
    %163 = vector.broadcast %cst_56 : f32 to vector<2x256xf32>
    %164 = arith.subf %163, %156 : vector<2x256xf32>
    %165 = arith.mulf %164, %162 : vector<2x256xf32>
    %166 = arith.mulf %156, %136 : vector<2x256xf32>
    %167 = arith.addf %165, %166 : vector<2x256xf32>
    %168 = vector.extract_strided_slice %70 {offsets = [6, 0], sizes = [2, 768], strides = [1, 1]} : vector<16x768xf32> to vector<2x768xf32>
    %169 = arith.truncf %167 : vector<2x256xf32> to vector<2x256xbf16>
    %c0_57 = arith.constant 0 : index
    %c0_58 = arith.constant 0 : index
    %170 = vector.load %arg7[%c0_57, %c0_58] : memref<256x768xbf16, #tpu.memory_space<vmem>>, vector<256x768xbf16>
    %cst_59 = arith.constant dense<0.000000e+00> : vector<2x768xf32>
    %171 = tpu.matmul %169, %170, %cst_59 {dimension_numbers = #tpu.dot_dimension_numbers<[1], [0], [0], [1], [0, 0, 1, 1], [], []>} : vector<2x256xbf16>, vector<256x768xbf16>, vector<2x768xf32> -> vector<2x768xf32>
    %172 = vector.extract_strided_slice %168 {offsets = [0, 0], sizes = [2, 256], strides = [1, 1]} : vector<2x768xf32> to vector<2x256xf32>
    %173 = vector.extract_strided_slice %171 {offsets = [0, 0], sizes = [2, 256], strides = [1, 1]} : vector<2x768xf32> to vector<2x256xf32>
    %174 = arith.addf %172, %173 : vector<2x256xf32>
    %175 = arith.negf %174 : vector<2x256xf32>
    %176 = math.exp %175 : vector<2x256xf32>
    %cst_60 = arith.constant 1.000000e+00 : f32
    %177 = vector.broadcast %cst_60 : f32 to vector<2x256xf32>
    %178 = arith.addf %177, %176 : vector<2x256xf32>
    %179 = arith.divf %177, %178 : vector<2x256xf32>
    %180 = vector.extract_strided_slice %168 {offsets = [0, 256], sizes = [2, 256], strides = [1, 1]} : vector<2x768xf32> to vector<2x256xf32>
    %181 = vector.extract_strided_slice %171 {offsets = [0, 256], sizes = [2, 256], strides = [1, 1]} : vector<2x768xf32> to vector<2x256xf32>
    %182 = arith.addf %180, %181 : vector<2x256xf32>
    %183 = arith.negf %182 : vector<2x256xf32>
    %184 = math.exp %183 : vector<2x256xf32>
    %cst_61 = arith.constant 1.000000e+00 : f32
    %185 = vector.broadcast %cst_61 : f32 to vector<2x256xf32>
    %186 = arith.addf %185, %184 : vector<2x256xf32>
    %187 = arith.divf %185, %186 : vector<2x256xf32>
    %188 = vector.extract_strided_slice %168 {offsets = [0, 512], sizes = [2, 256], strides = [1, 1]} : vector<2x768xf32> to vector<2x256xf32>
    %189 = vector.extract_strided_slice %171 {offsets = [0, 512], sizes = [2, 256], strides = [1, 1]} : vector<2x768xf32> to vector<2x256xf32>
    %190 = arith.addf %189, %73 : vector<2x256xf32>
    %191 = arith.mulf %179, %190 : vector<2x256xf32>
    %192 = arith.addf %188, %191 : vector<2x256xf32>
    %193 = math.tanh %192 : vector<2x256xf32>
    %cst_62 = arith.constant 1.000000e+00 : f32
    %194 = vector.broadcast %cst_62 : f32 to vector<2x256xf32>
    %195 = arith.subf %194, %187 : vector<2x256xf32>
    %196 = arith.mulf %195, %193 : vector<2x256xf32>
    %197 = arith.mulf %187, %167 : vector<2x256xf32>
    %198 = arith.addf %196, %197 : vector<2x256xf32>
    %199 = vector.extract_strided_slice %70 {offsets = [8, 0], sizes = [2, 768], strides = [1, 1]} : vector<16x768xf32> to vector<2x768xf32>
    %200 = arith.truncf %198 : vector<2x256xf32> to vector<2x256xbf16>
    %c0_63 = arith.constant 0 : index
    %c0_64 = arith.constant 0 : index
    %201 = vector.load %arg7[%c0_63, %c0_64] : memref<256x768xbf16, #tpu.memory_space<vmem>>, vector<256x768xbf16>
    %cst_65 = arith.constant dense<0.000000e+00> : vector<2x768xf32>
    %202 = tpu.matmul %200, %201, %cst_65 {dimension_numbers = #tpu.dot_dimension_numbers<[1], [0], [0], [1], [0, 0, 1, 1], [], []>} : vector<2x256xbf16>, vector<256x768xbf16>, vector<2x768xf32> -> vector<2x768xf32>
    %203 = vector.extract_strided_slice %199 {offsets = [0, 0], sizes = [2, 256], strides = [1, 1]} : vector<2x768xf32> to vector<2x256xf32>
    %204 = vector.extract_strided_slice %202 {offsets = [0, 0], sizes = [2, 256], strides = [1, 1]} : vector<2x768xf32> to vector<2x256xf32>
    %205 = arith.addf %203, %204 : vector<2x256xf32>
    %206 = arith.negf %205 : vector<2x256xf32>
    %207 = math.exp %206 : vector<2x256xf32>
    %cst_66 = arith.constant 1.000000e+00 : f32
    %208 = vector.broadcast %cst_66 : f32 to vector<2x256xf32>
    %209 = arith.addf %208, %207 : vector<2x256xf32>
    %210 = arith.divf %208, %209 : vector<2x256xf32>
    %211 = vector.extract_strided_slice %199 {offsets = [0, 256], sizes = [2, 256], strides = [1, 1]} : vector<2x768xf32> to vector<2x256xf32>
    %212 = vector.extract_strided_slice %202 {offsets = [0, 256], sizes = [2, 256], strides = [1, 1]} : vector<2x768xf32> to vector<2x256xf32>
    %213 = arith.addf %211, %212 : vector<2x256xf32>
    %214 = arith.negf %213 : vector<2x256xf32>
    %215 = math.exp %214 : vector<2x256xf32>
    %cst_67 = arith.constant 1.000000e+00 : f32
    %216 = vector.broadcast %cst_67 : f32 to vector<2x256xf32>
    %217 = arith.addf %216, %215 : vector<2x256xf32>
    %218 = arith.divf %216, %217 : vector<2x256xf32>
    %219 = vector.extract_strided_slice %199 {offsets = [0, 512], sizes = [2, 256], strides = [1, 1]} : vector<2x768xf32> to vector<2x256xf32>
    %220 = vector.extract_strided_slice %202 {offsets = [0, 512], sizes = [2, 256], strides = [1, 1]} : vector<2x768xf32> to vector<2x256xf32>
    %221 = arith.addf %220, %73 : vector<2x256xf32>
    %222 = arith.mulf %210, %221 : vector<2x256xf32>
    %223 = arith.addf %219, %222 : vector<2x256xf32>
    %224 = math.tanh %223 : vector<2x256xf32>
    %cst_68 = arith.constant 1.000000e+00 : f32
    %225 = vector.broadcast %cst_68 : f32 to vector<2x256xf32>
    %226 = arith.subf %225, %218 : vector<2x256xf32>
    %227 = arith.mulf %226, %224 : vector<2x256xf32>
    %228 = arith.mulf %218, %198 : vector<2x256xf32>
    %229 = arith.addf %227, %228 : vector<2x256xf32>
    %230 = vector.extract_strided_slice %70 {offsets = [10, 0], sizes = [2, 768], strides = [1, 1]} : vector<16x768xf32> to vector<2x768xf32>
    %231 = arith.truncf %229 : vector<2x256xf32> to vector<2x256xbf16>
    %c0_69 = arith.constant 0 : index
    %c0_70 = arith.constant 0 : index
    %232 = vector.load %arg7[%c0_69, %c0_70] : memref<256x768xbf16, #tpu.memory_space<vmem>>, vector<256x768xbf16>
    %cst_71 = arith.constant dense<0.000000e+00> : vector<2x768xf32>
    %233 = tpu.matmul %231, %232, %cst_71 {dimension_numbers = #tpu.dot_dimension_numbers<[1], [0], [0], [1], [0, 0, 1, 1], [], []>} : vector<2x256xbf16>, vector<256x768xbf16>, vector<2x768xf32> -> vector<2x768xf32>
    %234 = vector.extract_strided_slice %230 {offsets = [0, 0], sizes = [2, 256], strides = [1, 1]} : vector<2x768xf32> to vector<2x256xf32>
    %235 = vector.extract_strided_slice %233 {offsets = [0, 0], sizes = [2, 256], strides = [1, 1]} : vector<2x768xf32> to vector<2x256xf32>
    %236 = arith.addf %234, %235 : vector<2x256xf32>
    %237 = arith.negf %236 : vector<2x256xf32>
    %238 = math.exp %237 : vector<2x256xf32>
    %cst_72 = arith.constant 1.000000e+00 : f32
    %239 = vector.broadcast %cst_72 : f32 to vector<2x256xf32>
    %240 = arith.addf %239, %238 : vector<2x256xf32>
    %241 = arith.divf %239, %240 : vector<2x256xf32>
    %242 = vector.extract_strided_slice %230 {offsets = [0, 256], sizes = [2, 256], strides = [1, 1]} : vector<2x768xf32> to vector<2x256xf32>
    %243 = vector.extract_strided_slice %233 {offsets = [0, 256], sizes = [2, 256], strides = [1, 1]} : vector<2x768xf32> to vector<2x256xf32>
    %244 = arith.addf %242, %243 : vector<2x256xf32>
    %245 = arith.negf %244 : vector<2x256xf32>
    %246 = math.exp %245 : vector<2x256xf32>
    %cst_73 = arith.constant 1.000000e+00 : f32
    %247 = vector.broadcast %cst_73 : f32 to vector<2x256xf32>
    %248 = arith.addf %247, %246 : vector<2x256xf32>
    %249 = arith.divf %247, %248 : vector<2x256xf32>
    %250 = vector.extract_strided_slice %230 {offsets = [0, 512], sizes = [2, 256], strides = [1, 1]} : vector<2x768xf32> to vector<2x256xf32>
    %251 = vector.extract_strided_slice %233 {offsets = [0, 512], sizes = [2, 256], strides = [1, 1]} : vector<2x768xf32> to vector<2x256xf32>
    %252 = arith.addf %251, %73 : vector<2x256xf32>
    %253 = arith.mulf %241, %252 : vector<2x256xf32>
    %254 = arith.addf %250, %253 : vector<2x256xf32>
    %255 = math.tanh %254 : vector<2x256xf32>
    %cst_74 = arith.constant 1.000000e+00 : f32
    %256 = vector.broadcast %cst_74 : f32 to vector<2x256xf32>
    %257 = arith.subf %256, %249 : vector<2x256xf32>
    %258 = arith.mulf %257, %255 : vector<2x256xf32>
    %259 = arith.mulf %249, %229 : vector<2x256xf32>
    %260 = arith.addf %258, %259 : vector<2x256xf32>
    %261 = vector.extract_strided_slice %70 {offsets = [12, 0], sizes = [2, 768], strides = [1, 1]} : vector<16x768xf32> to vector<2x768xf32>
    %262 = arith.truncf %260 : vector<2x256xf32> to vector<2x256xbf16>
    %c0_75 = arith.constant 0 : index
    %c0_76 = arith.constant 0 : index
    %263 = vector.load %arg7[%c0_75, %c0_76] : memref<256x768xbf16, #tpu.memory_space<vmem>>, vector<256x768xbf16>
    %cst_77 = arith.constant dense<0.000000e+00> : vector<2x768xf32>
    %264 = tpu.matmul %262, %263, %cst_77 {dimension_numbers = #tpu.dot_dimension_numbers<[1], [0], [0], [1], [0, 0, 1, 1], [], []>} : vector<2x256xbf16>, vector<256x768xbf16>, vector<2x768xf32> -> vector<2x768xf32>
    %265 = vector.extract_strided_slice %261 {offsets = [0, 0], sizes = [2, 256], strides = [1, 1]} : vector<2x768xf32> to vector<2x256xf32>
    %266 = vector.extract_strided_slice %264 {offsets = [0, 0], sizes = [2, 256], strides = [1, 1]} : vector<2x768xf32> to vector<2x256xf32>
    %267 = arith.addf %265, %266 : vector<2x256xf32>
    %268 = arith.negf %267 : vector<2x256xf32>
    %269 = math.exp %268 : vector<2x256xf32>
    %cst_78 = arith.constant 1.000000e+00 : f32
    %270 = vector.broadcast %cst_78 : f32 to vector<2x256xf32>
    %271 = arith.addf %270, %269 : vector<2x256xf32>
    %272 = arith.divf %270, %271 : vector<2x256xf32>
    %273 = vector.extract_strided_slice %261 {offsets = [0, 256], sizes = [2, 256], strides = [1, 1]} : vector<2x768xf32> to vector<2x256xf32>
    %274 = vector.extract_strided_slice %264 {offsets = [0, 256], sizes = [2, 256], strides = [1, 1]} : vector<2x768xf32> to vector<2x256xf32>
    %275 = arith.addf %273, %274 : vector<2x256xf32>
    %276 = arith.negf %275 : vector<2x256xf32>
    %277 = math.exp %276 : vector<2x256xf32>
    %cst_79 = arith.constant 1.000000e+00 : f32
    %278 = vector.broadcast %cst_79 : f32 to vector<2x256xf32>
    %279 = arith.addf %278, %277 : vector<2x256xf32>
    %280 = arith.divf %278, %279 : vector<2x256xf32>
    %281 = vector.extract_strided_slice %261 {offsets = [0, 512], sizes = [2, 256], strides = [1, 1]} : vector<2x768xf32> to vector<2x256xf32>
    %282 = vector.extract_strided_slice %264 {offsets = [0, 512], sizes = [2, 256], strides = [1, 1]} : vector<2x768xf32> to vector<2x256xf32>
    %283 = arith.addf %282, %73 : vector<2x256xf32>
    %284 = arith.mulf %272, %283 : vector<2x256xf32>
    %285 = arith.addf %281, %284 : vector<2x256xf32>
    %286 = math.tanh %285 : vector<2x256xf32>
    %cst_80 = arith.constant 1.000000e+00 : f32
    %287 = vector.broadcast %cst_80 : f32 to vector<2x256xf32>
    %288 = arith.subf %287, %280 : vector<2x256xf32>
    %289 = arith.mulf %288, %286 : vector<2x256xf32>
    %290 = arith.mulf %280, %260 : vector<2x256xf32>
    %291 = arith.addf %289, %290 : vector<2x256xf32>
    %292 = vector.extract_strided_slice %70 {offsets = [14, 0], sizes = [2, 768], strides = [1, 1]} : vector<16x768xf32> to vector<2x768xf32>
    %293 = arith.truncf %291 : vector<2x256xf32> to vector<2x256xbf16>
    %c0_81 = arith.constant 0 : index
    %c0_82 = arith.constant 0 : index
    %294 = vector.load %arg7[%c0_81, %c0_82] : memref<256x768xbf16, #tpu.memory_space<vmem>>, vector<256x768xbf16>
    %cst_83 = arith.constant dense<0.000000e+00> : vector<2x768xf32>
    %295 = tpu.matmul %293, %294, %cst_83 {dimension_numbers = #tpu.dot_dimension_numbers<[1], [0], [0], [1], [0, 0, 1, 1], [], []>} : vector<2x256xbf16>, vector<256x768xbf16>, vector<2x768xf32> -> vector<2x768xf32>
    %296 = vector.extract_strided_slice %292 {offsets = [0, 0], sizes = [2, 256], strides = [1, 1]} : vector<2x768xf32> to vector<2x256xf32>
    %297 = vector.extract_strided_slice %295 {offsets = [0, 0], sizes = [2, 256], strides = [1, 1]} : vector<2x768xf32> to vector<2x256xf32>
    %298 = arith.addf %296, %297 : vector<2x256xf32>
    %299 = arith.negf %298 : vector<2x256xf32>
    %300 = math.exp %299 : vector<2x256xf32>
    %cst_84 = arith.constant 1.000000e+00 : f32
    %301 = vector.broadcast %cst_84 : f32 to vector<2x256xf32>
    %302 = arith.addf %301, %300 : vector<2x256xf32>
    %303 = arith.divf %301, %302 : vector<2x256xf32>
    %304 = vector.extract_strided_slice %292 {offsets = [0, 256], sizes = [2, 256], strides = [1, 1]} : vector<2x768xf32> to vector<2x256xf32>
    %305 = vector.extract_strided_slice %295 {offsets = [0, 256], sizes = [2, 256], strides = [1, 1]} : vector<2x768xf32> to vector<2x256xf32>
    %306 = arith.addf %304, %305 : vector<2x256xf32>
    %307 = arith.negf %306 : vector<2x256xf32>
    %308 = math.exp %307 : vector<2x256xf32>
    %cst_85 = arith.constant 1.000000e+00 : f32
    %309 = vector.broadcast %cst_85 : f32 to vector<2x256xf32>
    %310 = arith.addf %309, %308 : vector<2x256xf32>
    %311 = arith.divf %309, %310 : vector<2x256xf32>
    %312 = vector.extract_strided_slice %292 {offsets = [0, 512], sizes = [2, 256], strides = [1, 1]} : vector<2x768xf32> to vector<2x256xf32>
    %313 = vector.extract_strided_slice %295 {offsets = [0, 512], sizes = [2, 256], strides = [1, 1]} : vector<2x768xf32> to vector<2x256xf32>
    %314 = arith.addf %313, %73 : vector<2x256xf32>
    %315 = arith.mulf %303, %314 : vector<2x256xf32>
    %316 = arith.addf %312, %315 : vector<2x256xf32>
    %317 = math.tanh %316 : vector<2x256xf32>
    %cst_86 = arith.constant 1.000000e+00 : f32
    %318 = vector.broadcast %cst_86 : f32 to vector<2x256xf32>
    %319 = arith.subf %318, %311 : vector<2x256xf32>
    %320 = arith.mulf %319, %317 : vector<2x256xf32>
    %321 = arith.mulf %311, %291 : vector<2x256xf32>
    %322 = arith.addf %320, %321 : vector<2x256xf32>
    %c0_87 = arith.constant 0 : index
    %c0_88 = arith.constant 0 : index
    %c0_89 = arith.constant 0 : index
    %323 = vector.load %arg6[%c0_87, %c0_88, %c0_89] : memref<1x2x256xf32, #tpu.memory_space<vmem>>, vector<1x2x256xf32>
    %324 = vector.shape_cast %323 : vector<1x2x256xf32> to vector<2x256xf32>
    %325 = vector.shape_cast %322 : vector<2x256xf32> to vector<1x2x256xf32>
    tpu.vector_store %arg6[%c0_87, %c0_88, %c0_89], %325 {strides = array<i32>} : memref<1x2x256xf32, #tpu.memory_space<vmem>>, vector<1x2x256xf32>,
    return
  }
}

</mosaic_0001>

<llo_original>
// kernel: encoder_forward.1
$region0: #{encoder_forward.1}
  #allocation0 [shape = 'u32[]', space=smem, size = 0x4, offset = 0x4, fixed_abs, tag = 'smem constant byte address 0x4 - core index']
  #allocation1 [shape = 'u32[144,128]{1,0:T(1,128)}', space=vmem, size = 0x12000, scoped, tag = 'internal scratch']
  #allocation2 [shape = 'bf16[256,768]{1,0:T(16,128)(2,1)}', space=vmem, size = 0x60000, scoped, tag = 'scratch operand']
  #allocation3 [shape = 's32[1]{0}', space=sflag, size = 0x4, scoped, tag = 'scratch operand']
  #allocation10 [shape = 's32[]', space=sflag, size = 0x4, offset = 0, fixed_abs, tag = 'sflag constant byte address 0x0 - dummy sync flag']
  %s0 = inlined_call_operand.vmem [shape: s32[16], index: 0, kind: input, shape index: {}]
  %s1 = inlined_call_operand.vmem [shape: f32[10,1,256], index: 1, kind: input, shape index: {}]
  %s2 = inlined_call_operand.hbm [shape: bf16[256,768], index: 2, kind: input, shape index: {}]
  %s3 = inlined_call_operand.vmem [shape: f32[1,768], index: 3, kind: input, shape index: {}]
  %s4 = inlined_call_operand.vmem [shape: f32[1,256], index: 4, kind: input, shape index: {}]
  %s5 = inlined_call_operand.hbm [shape: bf16[256,768], index: 5, kind: input, shape index: {}]
  %s6 = inlined_call_operand.hbm [shape: f32[1,2,256], index: 6, kind: output, shape index: {}]
  %s7 = sld [smem:[#allocation0]]
  $region38: #{encoder_forward.1} parent=0
    _
  %s9 = ssub.s32 1, %s7
  %s10 = scalar_select 0, %s9, %s7
  $region1: #{encoder_forward.1} parent=0
    #allocation4 [shape = 'u8[512]{0}', space=smem, size = 0x200, scoped, tag = 'input window, operand 0, single buffered']
    #allocation5 [shape = 's32[1]{0}', space=sflag, size = 0x4, scoped, tag = 'scoped memory for encoder_forward.1']
    #allocation6 [shape = 's32[1]{0}', space=sflag, size = 0x4, scoped, tag = 'scoped memory for encoder_forward.1']
    #allocation7 [shape = 's32[1]{0}', space=sflag, size = 0x4, scoped, tag = 'scoped memory for encoder_forward.1']
    #allocation8 [shape = 'u8[393216]{0}', space=vmem, size = 0x60000, scoped, tag = 'input window, operand 2, single buffered']
    #allocation9 [shape = 'u8[2048]{0}', space=vmem, size = 0x800, scoped, tag = 'output window, operand 0, single buffered']
    #allocation11 [shape = 'u32[9]{0}', space=smem, size = 0x24, scoped, tag = 'DMA stride descriptor']
    %11 = vsyncpa [#allocation7], 0
    %12 = vsyncpa [#allocation5], 0
    %13 = vsyncpa [#allocation6], 0
    // Predicated region
    $region2: #{encoder_forward.1} parent=1 // pred_check
      _
    $region3: #{encoder_forward.1} parent=1 // pred_check_branch
      %15 = sbr.rel (0) target = $region5
    $region4: #{encoder_forward.1} parent=1 // pred_region
      %s17 = ssub.s32 16, 16
      %18 = vsyncadd [#allocation7], %s17
      %s20 = sshll.u32 %s0, 4
      %s21 = int_to_ptr.vmem [resolvable:$true] %s20
      %23 = dma.vmem_to_smem %s21, 16, [#allocation4], [#allocation7]
    $region5: #{encoder_forward.1} parent=1 // pred_fallthru
      _
    // Predicated region
    $region6: #{encoder_forward.1} parent=1 // pred_check
      _
    $region7: #{encoder_forward.1} parent=1 // pred_check_branch
      %25 = sbr.rel (0) target = $region9
    $region8: #{encoder_forward.1} parent=1 // pred_region
      _
    $region9: #{encoder_forward.1} parent=1 // pred_fallthru
      _
    // Predicated region
    $region10: #{encoder_forward.1} parent=1 // pred_check
      _
    $region11: #{encoder_forward.1} parent=1 // pred_check_branch
      %27 = sbr.rel (0) target = $region13
    $region12: #{encoder_forward.1} parent=1 // pred_region
      %s29 = ssub.s32 12288, 12288
      %30 = vsyncadd [#allocation5], %s29
      %s31 = sshll.u32 [#allocation8], 4
      %s32 = int_to_ptr.vmem [resolvable:$true] %s31
      %37 = dma.hbm_to_vmem [thread:$0]  %s2, 12288, %s32, [#allocation5], 384, 384, 24
    $region13: #{encoder_forward.1} parent=1 // pred_fallthru
      _
    // Predicated region
    $region14: #{encoder_forward.1} parent=1 // pred_check
      _
    $region15: #{encoder_forward.1} parent=1 // pred_check_branch
      %39 = sbr.rel (0) target = $region17
    $region16: #{encoder_forward.1} parent=1 // pred_region
      _
    $region17: #{encoder_forward.1} parent=1 // pred_fallthru
      _
    // Predicated region
    $region18: #{encoder_forward.1} parent=1 // pred_check
      _
    $region19: #{encoder_forward.1} parent=1 // pred_check_branch
      %41 = sbr.rel (0) target = $region21
    $region20: #{encoder_forward.1} parent=1 // pred_region
      _
    $region21: #{encoder_forward.1} parent=1 // pred_fallthru
      _
    // Predicated region
    $region22: #{encoder_forward.1} parent=1 // pred_check
      _
    $region23: #{encoder_forward.1} parent=1 // pred_check_branch
      %43 = sbr.rel (0) target = $region25
    $region24: #{encoder_forward.1} parent=1 // pred_region
      %44 = dma.done [#allocation7], 16
    $region25: #{encoder_forward.1} parent=1 // pred_fallthru
      _
    // Predicated region
    $region26: #{encoder_forward.1} parent=1 // pred_check
      _
    $region27: #{encoder_forward.1} parent=1 // pred_check_branch
      %46 = sbr.rel (0) target = $region29
    $region28: #{encoder_forward.1} parent=1 // pred_region
      %47 = dma.done [#allocation5], 12288
    $region29: #{encoder_forward.1} parent=1 // pred_fallthru
      _
    %48 = sfence
    %s51 = sshll.u32 1, 14
    %s52 = sxor.u32 4294967295, %s51
    %s54 = sld [smem:[#allocation0]]
    %s55 = sadd.s32 2, %s54
    %s57 = sshll.u32 7, 26
    %s58 = sxor.u32 4294967295, %s57
    %s59 = sand.u32 0, %s58
    %s60 = sshll.u32 %s55, 26
    %s61 = sor.u32 %s59, %s60
    %s62 = sshll.u32 [#allocation2], 4
    %s63 = int_to_ptr.vmem [resolvable:$true] %s62
    %66 = sst [smem:[#allocation11]] 768
    %s67 = scalar_lea.smem [#allocation11], 1
    %68 = sst [smem:[%s67]] 768
    %s69 = scalar_lea.smem [#allocation11], 2
    %70 = sst [smem:[%s69]] 6
    %s71 = scalar_lea.smem [#allocation11], 3
    %72 = sst [smem:[%s71]] 64
    %s73 = scalar_lea.smem [#allocation11], 4
    %74 = sst [smem:[%s73]] 128
    %s75 = scalar_lea.smem [#allocation11], 5
    %76 = sst [smem:[%s75]] 2
    %s77 = scalar_lea.smem [#allocation11], 6
    %78 = sst [smem:[%s77]] 384
    %s79 = scalar_lea.smem [#allocation11], 7
    %80 = sst [smem:[%s79]] 64
    %s81 = scalar_lea.smem [#allocation11], 8
    %82 = sst [smem:[%s81]] 4
    %84 = dma.general %s5, 12288, %s63, [#allocation3], [#allocation10], [#allocation11], %s61, 0
    %s85 = sld [smem:[#allocation4]]
    %s86 = smul.u32 %s85, 2
    %s87 = scalar_lea.vmem %s1, %s86
    %v88 = vld [vmem:[%s87] sm:$0x3]
    %s89 = sld [smem:[#allocation4 + $0x1]]
    %s90 = smul.u32 %s89, 2
    %s91 = scalar_lea.vmem %s1, %s90
    %v92 = vld [vmem:[%s91] sm:$0x3]
    %s93 = sld [smem:[#allocation4 + $0x2]]
    %s94 = smul.u32 %s93, 2
    %s95 = scalar_lea.vmem %s1, %s94
    %v96 = vld [vmem:[%s95] sm:$0x3]
    %s97 = sld [smem:[#allocation4 + $0x3]]
    %s98 = smul.u32 %s97, 2
    %s99 = scalar_lea.vmem %s1, %s98
    %v100 = vld [vmem:[%s99] sm:$0x3]
    %s101 = sld [smem:[#allocation4 + $0x4]]
    %s102 = smul.u32 %s101, 2
    %s103 = scalar_lea.vmem %s1, %s102
    %v104 = vld [vmem:[%s103] sm:$0x3]
    %s105 = sld [smem:[#allocation4 + $0x5]]
    %s106 = smul.u32 %s105, 2
    %s107 = scalar_lea.vmem %s1, %s106
    %v108 = vld [vmem:[%s107] sm:$0x3]
    %s109 = sld [smem:[#allocation4 + $0x6]]
    %s110 = smul.u32 %s109, 2
    %s111 = scalar_lea.vmem %s1, %s110
    %v112 = vld [vmem:[%s111] sm:$0x3]
    %s113 = sld [smem:[#allocation4 + $0x7]]
    %s114 = smul.u32 %s113, 2
    %s115 = scalar_lea.vmem %s1, %s114
    %v116 = vld [vmem:[%s115] sm:$0x3]
    %s117 = sld [smem:[#allocation4 + $0x8]]
    %s118 = smul.u32 %s117, 2
    %s119 = scalar_lea.vmem %s1, %s118
    %v120 = vld [vmem:[%s119] sm:$0x3]
    %s121 = sld [smem:[#allocation4 + $0x9]]
    %s122 = smul.u32 %s121, 2
    %s123 = scalar_lea.vmem %s1, %s122
    %v124 = vld [vmem:[%s123] sm:$0x3]
    %s125 = sld [smem:[#allocation4 + $0xa]]
    %s126 = smul.u32 %s125, 2
    %s127 = scalar_lea.vmem %s1, %s126
    %v128 = vld [vmem:[%s127] sm:$0x3]
    %s129 = sld [smem:[#allocation4 + $0xb]]
    %s130 = smul.u32 %s129, 2
    %s131 = scalar_lea.vmem %s1, %s130
    %v132 = vld [vmem:[%s131] sm:$0x3]
    %s133 = sld [smem:[#allocation4 + $0xc]]
    %s134 = smul.u32 %s133, 2
    %s135 = scalar_lea.vmem %s1, %s134
    %v136 = vld [vmem:[%s135] sm:$0x3]
    %s137 = sld [smem:[#allocation4 + $0xd]]
    %s138 = smul.u32 %s137, 2
    %s139 = scalar_lea.vmem %s1, %s138
    %v140 = vld [vmem:[%s139] sm:$0x3]
    %s141 = sld [smem:[#allocation4 + $0xe]]
    %s142 = smul.u32 %s141, 2
    %s143 = scalar_lea.vmem %s1, %s142
    %v144 = vld [vmem:[%s143] sm:$0x3]
    %s145 = sld [smem:[#allocation4 + $0xf]]
    %s146 = smul.u32 %s145, 2
    %s147 = scalar_lea.vmem %s1, %s146
    %v148 = vld [vmem:[%s147] sm:$0x3]
    %v150 = vlaneseq
    %v151 = vshrl.u32 %v150, 7
    %v152 = vsub.s32 0, %v151
    %v153 = vrot.slane %v88, %v152
    %v154 = vlaneseq
    %v155 = vshrl.u32 %v154, 7
    %v156 = vsub.s32 1, %v155
    %v157 = vrot.slane %v88, %v156
    %v161 = vlaneseq
    %v162 = vshrl.u32 %v161, 7
    %v163 = vsub.s32 0, %v162
    %v164 = vrot.slane %v92, %v163
    %v165 = vlaneseq
    %v166 = vshrl.u32 %v165, 7
    %v167 = vsub.s32 1, %v166
    %v168 = vrot.slane %v92, %v167
    %v172 = vlaneseq
    %v173 = vshrl.u32 %v172, 7
    %v174 = vsub.s32 0, %v173
    %v175 = vrot.slane %v96, %v174
    %v176 = vlaneseq
    %v177 = vshrl.u32 %v176, 7
    %v178 = vsub.s32 1, %v177
    %v179 = vrot.slane %v96, %v178
    %v183 = vlaneseq
    %v184 = vshrl.u32 %v183, 7
    %v185 = vsub.s32 0, %v184
    %v186 = vrot.slane %v100, %v185
    %v187 = vlaneseq
    %v188 = vshrl.u32 %v187, 7
    %v189 = vsub.s32 1, %v188
    %v190 = vrot.slane %v100, %v189
    %v194 = vlaneseq
    %v195 = vshrl.u32 %v194, 7
    %v196 = vsub.s32 0, %v195
    %v197 = vrot.slane %v104, %v196
    %v198 = vlaneseq
    %v199 = vshrl.u32 %v198, 7
    %v200 = vsub.s32 1, %v199
    %v201 = vrot.slane %v104, %v200
    %v205 = vlaneseq
    %v206 = vshrl.u32 %v205, 7
    %v207 = vsub.s32 0, %v206
    %v208 = vrot.slane %v108, %v207
    %v209 = vlaneseq
    %v210 = vshrl.u32 %v209, 7
    %v211 = vsub.s32 1, %v210
    %v212 = vrot.slane %v108, %v211
    %v216 = vlaneseq
    %v217 = vshrl.u32 %v216, 7
    %v218 = vsub.s32 0, %v217
    %v219 = vrot.slane %v112, %v218
    %v220 = vlaneseq
    %v221 = vshrl.u32 %v220, 7
    %v222 = vsub.s32 1, %v221
    %v223 = vrot.slane %v112, %v222
    %v227 = vlaneseq
    %v228 = vshrl.u32 %v227, 7
    %v229 = vsub.s32 0, %v228
    %v230 = vrot.slane %v116, %v229
    %v231 = vlaneseq
    %v232 = vshrl.u32 %v231, 7
    %v233 = vsub.s32 1, %v232
    %v234 = vrot.slane %v116, %v233
    %v238 = vlaneseq
    %v239 = vshrl.u32 %v238, 7
    %v240 = vsub.s32 0, %v239
    %v241 = vrot.slane %v120, %v240
    %v242 = vlaneseq
    %v243 = vshrl.u32 %v242, 7
    %v244 = vsub.s32 1, %v243
    %v245 = vrot.slane %v120, %v244
    %v249 = vlaneseq
    %v250 = vshrl.u32 %v249, 7
    %v251 = vsub.s32 0, %v250
    %v252 = vrot.slane %v124, %v251
    %v253 = vlaneseq
    %v254 = vshrl.u32 %v253, 7
    %v255 = vsub.s32 1, %v254
    %v256 = vrot.slane %v124, %v255
    %v260 = vlaneseq
    %v261 = vshrl.u32 %v260, 7
    %v262 = vsub.s32 0, %v261
    %v263 = vrot.slane %v128, %v262
    %v264 = vlaneseq
    %v265 = vshrl.u32 %v264, 7
    %v266 = vsub.s32 1, %v265
    %v267 = vrot.slane %v128, %v266
    %v271 = vlaneseq
    %v272 = vshrl.u32 %v271, 7
    %v273 = vsub.s32 0, %v272
    %v274 = vrot.slane %v132, %v273
    %v275 = vlaneseq
    %v276 = vshrl.u32 %v275, 7
    %v277 = vsub.s32 1, %v276
    %v278 = vrot.slane %v132, %v277
    %v282 = vlaneseq
    %v283 = vshrl.u32 %v282, 7
    %v284 = vsub.s32 0, %v283
    %v285 = vrot.slane %v136, %v284
    %v286 = vlaneseq
    %v287 = vshrl.u32 %v286, 7
    %v288 = vsub.s32 1, %v287
    %v289 = vrot.slane %v136, %v288
    %v293 = vlaneseq
    %v294 = vshrl.u32 %v293, 7
    %v295 = vsub.s32 0, %v294
    %v296 = vrot.slane %v140, %v295
    %v297 = vlaneseq
    %v298 = vshrl.u32 %v297, 7
    %v299 = vsub.s32 1, %v298
    %v300 = vrot.slane %v140, %v299
    %v304 = vlaneseq
    %v305 = vshrl.u32 %v304, 7
    %v306 = vsub.s32 0, %v305
    %v307 = vrot.slane %v144, %v306
    %v308 = vlaneseq
    %v309 = vshrl.u32 %v308, 7
    %v310 = vsub.s32 1, %v309
    %v311 = vrot.slane %v144, %v310
    %v315 = vlaneseq
    %v316 = vshrl.u32 %v315, 7
    %v317 = vsub.s32 0, %v316
    %v318 = vrot.slane %v148, %v317
    %v319 = vlaneseq
    %v320 = vshrl.u32 %v319, 7
    %v321 = vsub.s32 1, %v320
    %v322 = vrot.slane %v148, %v321
    %vm325 = vcmask 1040384
    %v326 = vsel %vm325, %v153, %v164
    %v327 = vsel %vm325, %v157, %v168
    %vm328 = vcmask 1041408
    %v329 = vsel %vm328, %v326, %v175
    %v330 = vsel %vm328, %v327, %v179
    %vm331 = vcmask 1042432
    %v332 = vsel %vm331, %v329, %v186
    %v333 = vsel %vm331, %v330, %v190
    %vm334 = vcmask 1043456
    %v335 = vsel %vm334, %v332, %v197
    %v336 = vsel %vm334, %v333, %v201
    %vm337 = vcmask 1044480
    %v338 = vsel %vm337, %v335, %v208
    %v339 = vsel %vm337, %v336, %v212
    %vm340 = vcmask 1045504
    %v341 = vsel %vm340, %v338, %v219
    %v342 = vsel %vm340, %v339, %v223
    %vm343 = vcmask 1046528
    %v344 = vsel %vm343, %v341, %v230
    %v345 = vsel %vm343, %v342, %v234
    %v346 = vsel %vm325, %v241, %v252
    %v347 = vsel %vm325, %v245, %v256
    %v348 = vsel %vm328, %v346, %v263
    %v349 = vsel %vm328, %v347, %v267
    %v350 = vsel %vm331, %v348, %v274
    %v351 = vsel %vm331, %v349, %v278
    %v352 = vsel %vm334, %v350, %v285
    %v353 = vsel %vm334, %v351, %v289
    %v354 = vsel %vm337, %v352, %v296
    %v355 = vsel %vm337, %v353, %v300
    %v356 = vsel %vm340, %v354, %v307
    %v357 = vsel %vm340, %v355, %v311
    %v358 = vsel %vm343, %v356, %v318
    %v359 = vsel %vm343, %v357, %v322
    %v360 = vpack.c.bf16 %v358, %v344
    %v361 = vpack.c.bf16 %v359, %v345
    %v362 = vld [vmem:[#allocation8] sm:$0xff]
    %v363 = vld [vmem:[#allocation8 + $0x8] sm:$0xff]
    %v364 = vld [vmem:[#allocation8 + $0x10] sm:$0xff]
    %v365 = vld [vmem:[#allocation8 + $0x18] sm:$0xff]
    %v366 = vld [vmem:[#allocation8 + $0x20] sm:$0xff]
    %v367 = vld [vmem:[#allocation8 + $0x28] sm:$0xff]
    %v368 = vld [vmem:[#allocation8 + $0x30] sm:$0xff]
    %v369 = vld [vmem:[#allocation8 + $0x38] sm:$0xff]
    %v370 = vld [vmem:[#allocation8 + $0x40] sm:$0xff]
    %v371 = vld [vmem:[#allocation8 + $0x48] sm:$0xff]
    %v372 = vld [vmem:[#allocation8 + $0x50] sm:$0xff]
    %v373 = vld [vmem:[#allocation8 + $0x58] sm:$0xff]
    %v374 = vld [vmem:[#allocation8 + $0x60] sm:$0xff]
    %v375 = vld [vmem:[#allocation8 + $0x68] sm:$0xff]
    %v376 = vld [vmem:[#allocation8 + $0x70] sm:$0xff]
    %v377 = vld [vmem:[#allocation8 + $0x78] sm:$0xff]
    %v378 = vld [vmem:[#allocation8 + $0x80] sm:$0xff]
    %v379 = vld [vmem:[#allocation8 + $0x88] sm:$0xff]
    %v380 = vld [vmem:[#allocation8 + $0x90] sm:$0xff]
    %v381 = vld [vmem:[#allocation8 + $0x98] sm:$0xff]
    %v382 = vld [vmem:[#allocation8 + $0xa0] sm:$0xff]
    %v383 = vld [vmem:[#allocation8 + $0xa8] sm:$0xff]
    %v384 = vld [vmem:[#allocation8 + $0xb0] sm:$0xff]
    %v385 = vld [vmem:[#allocation8 + $0xb8] sm:$0xff]
    %v386 = vld [vmem:[#allocation8 + $0xc0] sm:$0xff]
    %v387 = vld [vmem:[#allocation8 + $0xc8] sm:$0xff]
    %v388 = vld [vmem:[#allocation8 + $0xd0] sm:$0xff]
    %v389 = vld [vmem:[#allocation8 + $0xd8] sm:$0xff]
    %v390 = vld [vmem:[#allocation8 + $0xe0] sm:$0xff]
    %v391 = vld [vmem:[#allocation8 + $0xe8] sm:$0xff]
    %v392 = vld [vmem:[#allocation8 + $0xf0] sm:$0xff]
    %v393 = vld [vmem:[#allocation8 + $0xf8] sm:$0xff]
    %v394 = vld [vmem:[#allocation8 + $0x100] sm:$0xff]
    %v395 = vld [vmem:[#allocation8 + $0x108] sm:$0xff]
    %v396 = vld [vmem:[#allocation8 + $0x110] sm:$0xff]
    %v397 = vld [vmem:[#allocation8 + $0x118] sm:$0xff]
    %v398 = vld [vmem:[#allocation8 + $0x120] sm:$0xff]
    %v399 = vld [vmem:[#allocation8 + $0x128] sm:$0xff]
    %v400 = vld [vmem:[#allocation8 + $0x130] sm:$0xff]
    %v401 = vld [vmem:[#allocation8 + $0x138] sm:$0xff]
    %v402 = vld [vmem:[#allocation8 + $0x140] sm:$0xff]
    %v403 = vld [vmem:[#allocation8 + $0x148] sm:$0xff]
    %v404 = vld [vmem:[#allocation8 + $0x150] sm:$0xff]
    %v405 = vld [vmem:[#allocation8 + $0x158] sm:$0xff]
    %v406 = vld [vmem:[#allocation8 + $0x160] sm:$0xff]
    %v407 = vld [vmem:[#allocation8 + $0x168] sm:$0xff]
    %v408 = vld [vmem:[#allocation8 + $0x170] sm:$0xff]
    %v409 = vld [vmem:[#allocation8 + $0x178] sm:$0xff]
    %v410 = vld [vmem:[#allocation8 + $0x180] sm:$0xff]
    %v411 = vld [vmem:[#allocation8 + $0x188] sm:$0xff]
    %v412 = vld [vmem:[#allocation8 + $0x190] sm:$0xff]
    %v413 = vld [vmem:[#allocation8 + $0x198] sm:$0xff]
    %v414 = vld [vmem:[#allocation8 + $0x1a0] sm:$0xff]
    %v415 = vld [vmem:[#allocation8 + $0x1a8] sm:$0xff]
    %v416 = vld [vmem:[#allocation8 + $0x1b0] sm:$0xff]
    %v417 = vld [vmem:[#allocation8 + $0x1b8] sm:$0xff]
    %v418 = vld [vmem:[#allocation8 + $0x1c0] sm:$0xff]
    %v419 = vld [vmem:[#allocation8 + $0x1c8] sm:$0xff]
    %v420 = vld [vmem:[#allocation8 + $0x1d0] sm:$0xff]
    %v421 = vld [vmem:[#allocation8 + $0x1d8] sm:$0xff]
    %v422 = vld [vmem:[#allocation8 + $0x1e0] sm:$0xff]
    %v423 = vld [vmem:[#allocation8 + $0x1e8] sm:$0xff]
    %v424 = vld [vmem:[#allocation8 + $0x1f0] sm:$0xff]
    %v425 = vld [vmem:[#allocation8 + $0x1f8] sm:$0xff]
    %v426 = vld [vmem:[#allocation8 + $0x200] sm:$0xff]
    %v427 = vld [vmem:[#allocation8 + $0x208] sm:$0xff]
    %v428 = vld [vmem:[#allocation8 + $0x210] sm:$0xff]
    %v429 = vld [vmem:[#allocation8 + $0x218] sm:$0xff]
    %v430 = vld [vmem:[#allocation8 + $0x220] sm:$0xff]
    %v431 = vld [vmem:[#allocation8 + $0x228] sm:$0xff]
    %v432 = vld [vmem:[#allocation8 + $0x230] sm:$0xff]
    %v433 = vld [vmem:[#allocation8 + $0x238] sm:$0xff]
    %v434 = vld [vmem:[#allocation8 + $0x240] sm:$0xff]
    %v435 = vld [vmem:[#allocation8 + $0x248] sm:$0xff]
    %v436 = vld [vmem:[#allocation8 + $0x250] sm:$0xff]
    %v437 = vld [vmem:[#allocation8 + $0x258] sm:$0xff]
    %v438 = vld [vmem:[#allocation8 + $0x260] sm:$0xff]
    %v439 = vld [vmem:[#allocation8 + $0x268] sm:$0xff]
    %v440 = vld [vmem:[#allocation8 + $0x270] sm:$0xff]
    %v441 = vld [vmem:[#allocation8 + $0x278] sm:$0xff]
    %v442 = vld [vmem:[#allocation8 + $0x280] sm:$0xff]
    %v443 = vld [vmem:[#allocation8 + $0x288] sm:$0xff]
    %v444 = vld [vmem:[#allocation8 + $0x290] sm:$0xff]
    %v445 = vld [vmem:[#allocation8 + $0x298] sm:$0xff]
    %v446 = vld [vmem:[#allocation8 + $0x2a0] sm:$0xff]
    %v447 = vld [vmem:[#allocation8 + $0x2a8] sm:$0xff]
    %v448 = vld [vmem:[#allocation8 + $0x2b0] sm:$0xff]
    %v449 = vld [vmem:[#allocation8 + $0x2b8] sm:$0xff]
    %v450 = vld [vmem:[#allocation8 + $0x2c0] sm:$0xff]
    %v451 = vld [vmem:[#allocation8 + $0x2c8] sm:$0xff]
    %v452 = vld [vmem:[#allocation8 + $0x2d0] sm:$0xff]
    %v453 = vld [vmem:[#allocation8 + $0x2d8] sm:$0xff]
    %v454 = vld [vmem:[#allocation8 + $0x2e0] sm:$0xff]
    %v455 = vld [vmem:[#allocation8 + $0x2e8] sm:$0xff]
    %v456 = vld [vmem:[#allocation8 + $0x2f0] sm:$0xff]
    %v457 = vld [vmem:[#allocation8 + $0x2f8] sm:$0xff]
    %v458 = vld [vmem:[%s3] sm:$0x3f]
    %v460 = vlaneseq
    %v461 = vshrl.u32 %v460, 7
    %v462 = vsub.s32 0, %v461
    %v463 = vrot.slane %v458, %v462
    %v464 = vlaneseq
    %v465 = vshrl.u32 %v464, 7
    %v466 = vsub.s32 1, %v465
    %v467 = vrot.slane %v458, %v466
    %v468 = vlaneseq
    %v469 = vshrl.u32 %v468, 7
    %v470 = vsub.s32 2, %v469
    %v471 = vrot.slane %v458, %v470
    %v472 = vlaneseq
    %v473 = vshrl.u32 %v472, 7
    %v474 = vsub.s32 3, %v473
    %v475 = vrot.slane %v458, %v474
    %v476 = vlaneseq
    %v477 = vshrl.u32 %v476, 7
    %v478 = vsub.s32 4, %v477
    %v479 = vrot.slane %v458, %v478
    %v480 = vlaneseq
    %v481 = vshrl.u32 %v480, 7
    %v482 = vsub.s32 5, %v481
    %v483 = vrot.slane %v458, %v482
    %v586 = vunpack.c.l.b16 %v362
    %v587 = vunpack.c.h.b16 %v362
    %v588 = vunpack.c.l.b16 %v363
    %v589 = vunpack.c.h.b16 %v363
    %v590 = vunpack.c.l.b16 %v364
    %v591 = vunpack.c.h.b16 %v364
    %v592 = vunpack.c.l.b16 %v365
    %v593 = vunpack.c.h.b16 %v365
    %v594 = vunpack.c.l.b16 %v366
    %v595 = vunpack.c.h.b16 %v366
    %v596 = vunpack.c.l.b16 %v367
    %v597 = vunpack.c.h.b16 %v367
    %v598 = vunpack.c.l.b16 %v368
    %v599 = vunpack.c.h.b16 %v368
    %v600 = vunpack.c.l.b16 %v369
    %v601 = vunpack.c.h.b16 %v369
    %v602 = vunpack.c.l.b16 %v370
    %v603 = vunpack.c.h.b16 %v370
    %v604 = vunpack.c.l.b16 %v371
    %v605 = vunpack.c.h.b16 %v371
    %v606 = vunpack.c.l.b16 %v372
    %v607 = vunpack.c.h.b16 %v372
    %v608 = vunpack.c.l.b16 %v373
    %v609 = vunpack.c.h.b16 %v373
    %v610 = vunpack.c.l.b16 %v374
    %v611 = vunpack.c.h.b16 %v374
    %v612 = vunpack.c.l.b16 %v375
    %v613 = vunpack.c.h.b16 %v375
    %v614 = vunpack.c.l.b16 %v376
    %v615 = vunpack.c.h.b16 %v376
    %v616 = vunpack.c.l.b16 %v377
    %v617 = vunpack.c.h.b16 %v377
    %v618 = vunpack.c.l.b16 %v378
    %v619 = vunpack.c.h.b16 %v378
    %v620 = vunpack.c.l.b16 %v379
    %v621 = vunpack.c.h.b16 %v379
    %v622 = vunpack.c.l.b16 %v380
    %v623 = vunpack.c.h.b16 %v380
    %v624 = vunpack.c.l.b16 %v381
    %v625 = vunpack.c.h.b16 %v381
    %v626 = vunpack.c.l.b16 %v382
    %v627 = vunpack.c.h.b16 %v382
    %v628 = vunpack.c.l.b16 %v383
    %v629 = vunpack.c.h.b16 %v383
    %v630 = vunpack.c.l.b16 %v384
    %v631 = vunpack.c.h.b16 %v384
    %v632 = vunpack.c.l.b16 %v385
    %v633 = vunpack.c.h.b16 %v385
    %v634 = vunpack.c.l.b16 %v386
    %v635 = vunpack.c.h.b16 %v386
    %v636 = vunpack.c.l.b16 %v387
    %v637 = vunpack.c.h.b16 %v387
    %v638 = vunpack.c.l.b16 %v388
    %v639 = vunpack.c.h.b16 %v388
    %v640 = vunpack.c.l.b16 %v389
    %v641 = vunpack.c.h.b16 %v389
    %v642 = vunpack.c.l.b16 %v390
    %v643 = vunpack.c.h.b16 %v390
    %v644 = vunpack.c.l.b16 %v391
    %v645 = vunpack.c.h.b16 %v391
    %v646 = vunpack.c.l.b16 %v392
    %v647 = vunpack.c.h.b16 %v392
    %v648 = vunpack.c.l.b16 %v393
    %v649 = vunpack.c.h.b16 %v393
    %v650 = vunpack.c.l.b16 %v394
    %v651 = vunpack.c.h.b16 %v394
    %v652 = vunpack.c.l.b16 %v395
    %v653 = vunpack.c.h.b16 %v395
    %v654 = vunpack.c.l.b16 %v396
    %v655 = vunpack.c.h.b16 %v396
    %v656 = vunpack.c.l.b16 %v397
    %v657 = vunpack.c.h.b16 %v397
    %v658 = vunpack.c.l.b16 %v398
    %v659 = vunpack.c.h.b16 %v398
    %v660 = vunpack.c.l.b16 %v399
    %v661 = vunpack.c.h.b16 %v399
    %v662 = vunpack.c.l.b16 %v400
    %v663 = vunpack.c.h.b16 %v400
    %v664 = vunpack.c.l.b16 %v401
    %v665 = vunpack.c.h.b16 %v401
    %v666 = vunpack.c.l.b16 %v402
    %v667 = vunpack.c.h.b16 %v402
    %v668 = vunpack.c.l.b16 %v403
    %v669 = vunpack.c.h.b16 %v403
    %v670 = vunpack.c.l.b16 %v404
    %v671 = vunpack.c.h.b16 %v404
    %v672 = vunpack.c.l.b16 %v405
    %v673 = vunpack.c.h.b16 %v405
    %v674 = vunpack.c.l.b16 %v406
    %v675 = vunpack.c.h.b16 %v406
    %v676 = vunpack.c.l.b16 %v407
    %v677 = vunpack.c.h.b16 %v407
    %v678 = vunpack.c.l.b16 %v408
    %v679 = vunpack.c.h.b16 %v408
    %v680 = vunpack.c.l.b16 %v409
    %v681 = vunpack.c.h.b16 %v409
    %v682 = vunpack.c.l.b16 %v410
    %v683 = vunpack.c.h.b16 %v410
    %v684 = vunpack.c.l.b16 %v411
    %v685 = vunpack.c.h.b16 %v411
    %v686 = vunpack.c.l.b16 %v412
    %v687 = vunpack.c.h.b16 %v412
    %v688 = vunpack.c.l.b16 %v413
    %v689 = vunpack.c.h.b16 %v413
    %v690 = vunpack.c.l.b16 %v414
    %v691 = vunpack.c.h.b16 %v414
    %v692 = vunpack.c.l.b16 %v415
    %v693 = vunpack.c.h.b16 %v415
    %v694 = vunpack.c.l.b16 %v416
    %v695 = vunpack.c.h.b16 %v416
    %v696 = vunpack.c.l.b16 %v417
    %v697 = vunpack.c.h.b16 %v417
    %v698 = vunpack.c.l.b16 %v418
    %v699 = vunpack.c.h.b16 %v418
    %v700 = vunpack.c.l.b16 %v419
    %v701 = vunpack.c.h.b16 %v419
    %v702 = vunpack.c.l.b16 %v420
    %v703 = vunpack.c.h.b16 %v420
    %v704 = vunpack.c.l.b16 %v421
    %v705 = vunpack.c.h.b16 %v421
    %v706 = vunpack.c.l.b16 %v422
    %v707 = vunpack.c.h.b16 %v422
    %v708 = vunpack.c.l.b16 %v423
    %v709 = vunpack.c.h.b16 %v423
    %v710 = vunpack.c.l.b16 %v424
    %v711 = vunpack.c.h.b16 %v424
    %v712 = vunpack.c.l.b16 %v425
    %v713 = vunpack.c.h.b16 %v425
    %v714 = vunpack.c.l.b16 %v426
    %v715 = vunpack.c.h.b16 %v426
    %v716 = vunpack.c.l.b16 %v427
    %v717 = vunpack.c.h.b16 %v427
    %v718 = vunpack.c.l.b16 %v428
    %v719 = vunpack.c.h.b16 %v428
    %v720 = vunpack.c.l.b16 %v429
    %v721 = vunpack.c.h.b16 %v429
    %v722 = vunpack.c.l.b16 %v430
    %v723 = vunpack.c.h.b16 %v430
    %v724 = vunpack.c.l.b16 %v431
    %v725 = vunpack.c.h.b16 %v431
    %v726 = vunpack.c.l.b16 %v432
    %v727 = vunpack.c.h.b16 %v432
    %v728 = vunpack.c.l.b16 %v433
    %v729 = vunpack.c.h.b16 %v433
    %v730 = vunpack.c.l.b16 %v434
    %v731 = vunpack.c.h.b16 %v434
    %v732 = vunpack.c.l.b16 %v435
    %v733 = vunpack.c.h.b16 %v435
    %v734 = vunpack.c.l.b16 %v436
    %v735 = vunpack.c.h.b16 %v436
    %v736 = vunpack.c.l.b16 %v437
    %v737 = vunpack.c.h.b16 %v437
    %v738 = vunpack.c.l.b16 %v438
    %v739 = vunpack.c.h.b16 %v438
    %v740 = vunpack.c.l.b16 %v439
    %v741 = vunpack.c.h.b16 %v439
    %v742 = vunpack.c.l.b16 %v440
    %v743 = vunpack.c.h.b16 %v440
    %v744 = vunpack.c.l.b16 %v441
    %v745 = vunpack.c.h.b16 %v441
    %v746 = vunpack.c.l.b16 %v442
    %v747 = vunpack.c.h.b16 %v442
    %v748 = vunpack.c.l.b16 %v443
    %v749 = vunpack.c.h.b16 %v443
    %v750 = vunpack.c.l.b16 %v444
    %v751 = vunpack.c.h.b16 %v444
    %v752 = vunpack.c.l.b16 %v445
    %v753 = vunpack.c.h.b16 %v445
    %v754 = vunpack.c.l.b16 %v446
    %v755 = vunpack.c.h.b16 %v446
    %v756 = vunpack.c.l.b16 %v447
    %v757 = vunpack.c.h.b16 %v447
    %v758 = vunpack.c.l.b16 %v448
    %v759 = vunpack.c.h.b16 %v448
    %v760 = vunpack.c.l.b16 %v449
    %v761 = vunpack.c.h.b16 %v449
    %v762 = vunpack.c.l.b16 %v450
    %v763 = vunpack.c.h.b16 %v450
    %v764 = vunpack.c.l.b16 %v451
    %v765 = vunpack.c.h.b16 %v451
    %v766 = vunpack.c.l.b16 %v452
    %v767 = vunpack.c.h.b16 %v452
    %v768 = vunpack.c.l.b16 %v453
    %v769 = vunpack.c.h.b16 %v453
    %v770 = vunpack.c.l.b16 %v454
    %v771 = vunpack.c.h.b16 %v454
    %v772 = vunpack.c.l.b16 %v455
    %v773 = vunpack.c.h.b16 %v455
    %v774 = vunpack.c.l.b16 %v456
    %v775 = vunpack.c.h.b16 %v456
    %v776 = vunpack.c.l.b16 %v457
    %v777 = vunpack.c.h.b16 %v457
    %v778 = vpack.c.b16 %v592, %v586
    %v779 = vpack.c.b16 %v593, %v587
    %v780 = vpack.c.b16 %v594, %v588
    %v781 = vpack.c.b16 %v595, %v589
    %v782 = vpack.c.b16 %v596, %v590
    %v783 = vpack.c.b16 %v597, %v591
    %v784 = vpack.c.b16 %v604, %v598
    %v785 = vpack.c.b16 %v605, %v599
    %v786 = vpack.c.b16 %v606, %v600
    %v787 = vpack.c.b16 %v607, %v601
    %v788 = vpack.c.b16 %v608, %v602
    %v789 = vpack.c.b16 %v609, %v603
    %v790 = vpack.c.b16 %v616, %v610
    %v791 = vpack.c.b16 %v617, %v611
    %v792 = vpack.c.b16 %v618, %v612
    %v793 = vpack.c.b16 %v619, %v613
    %v794 = vpack.c.b16 %v620, %v614
    %v795 = vpack.c.b16 %v621, %v615
    %v796 = vpack.c.b16 %v628, %v622
    %v797 = vpack.c.b16 %v629, %v623
    %v798 = vpack.c.b16 %v630, %v624
    %v799 = vpack.c.b16 %v631, %v625
    %v800 = vpack.c.b16 %v632, %v626
    %v801 = vpack.c.b16 %v633, %v627
    %v802 = vpack.c.b16 %v640, %v634
    %v803 = vpack.c.b16 %v641, %v635
    %v804 = vpack.c.b16 %v642, %v636
    %v805 = vpack.c.b16 %v643, %v637
    %v806 = vpack.c.b16 %v644, %v638
    %v807 = vpack.c.b16 %v645, %v639
    %v808 = vpack.c.b16 %v652, %v646
    %v809 = vpack.c.b16 %v653, %v647
    %v810 = vpack.c.b16 %v654, %v648
    %v811 = vpack.c.b16 %v655, %v649
    %v812 = vpack.c.b16 %v656, %v650
    %v813 = vpack.c.b16 %v657, %v651
    %v814 = vpack.c.b16 %v664, %v658
    %v815 = vpack.c.b16 %v665, %v659
    %v816 = vpack.c.b16 %v666, %v660
    %v817 = vpack.c.b16 %v667, %v661
    %v818 = vpack.c.b16 %v668, %v662
    %v819 = vpack.c.b16 %v669, %v663
    %v820 = vpack.c.b16 %v676, %v670
    %v821 = vpack.c.b16 %v677, %v671
    %v822 = vpack.c.b16 %v678, %v672
    %v823 = vpack.c.b16 %v679, %v673
    %v824 = vpack.c.b16 %v680, %v674
    %v825 = vpack.c.b16 %v681, %v675
    %v826 = vpack.c.b16 %v688, %v682
    %v827 = vpack.c.b16 %v689, %v683
    %v828 = vpack.c.b16 %v690, %v684
    %v829 = vpack.c.b16 %v691, %v685
    %v830 = vpack.c.b16 %v692, %v686
    %v831 = vpack.c.b16 %v693, %v687
    %v832 = vpack.c.b16 %v700, %v694
    %v833 = vpack.c.b16 %v701, %v695
    %v834 = vpack.c.b16 %v702, %v696
    %v835 = vpack.c.b16 %v703, %v697
    %v836 = vpack.c.b16 %v704, %v698
    %v837 = vpack.c.b16 %v705, %v699
    %v838 = vpack.c.b16 %v712, %v706
    %v839 = vpack.c.b16 %v713, %v707
    %v840 = vpack.c.b16 %v714, %v708
    %v841 = vpack.c.b16 %v715, %v709
    %v842 = vpack.c.b16 %v716, %v710
    %v843 = vpack.c.b16 %v717, %v711
    %v844 = vpack.c.b16 %v724, %v718
    %v845 = vpack.c.b16 %v725, %v719
    %v846 = vpack.c.b16 %v726, %v720
    %v847 = vpack.c.b16 %v727, %v721
    %v848 = vpack.c.b16 %v728, %v722
    %v849 = vpack.c.b16 %v729, %v723
    %v850 = vpack.c.b16 %v736, %v730
    %v851 = vpack.c.b16 %v737, %v731
    %v852 = vpack.c.b16 %v738, %v732
    %v853 = vpack.c.b16 %v739, %v733
    %v854 = vpack.c.b16 %v740, %v734
    %v855 = vpack.c.b16 %v741, %v735
    %v856 = vpack.c.b16 %v748, %v742
    %v857 = vpack.c.b16 %v749, %v743
    %v858 = vpack.c.b16 %v750, %v744
    %v859 = vpack.c.b16 %v751, %v745
    %v860 = vpack.c.b16 %v752, %v746
    %v861 = vpack.c.b16 %v753, %v747
    %v862 = vpack.c.b16 %v760, %v754
    %v863 = vpack.c.b16 %v761, %v755
    %v864 = vpack.c.b16 %v762, %v756
    %v865 = vpack.c.b16 %v763, %v757
    %v866 = vpack.c.b16 %v764, %v758
    %v867 = vpack.c.b16 %v765, %v759
    %v868 = vpack.c.b16 %v772, %v766
    %v869 = vpack.c.b16 %v773, %v767
    %v870 = vpack.c.b16 %v774, %v768
    %v871 = vpack.c.b16 %v775, %v769
    %v872 = vpack.c.b16 %v776, %v770
    %v873 = vpack.c.b16 %v777, %v771
    %970 = vmatprep.subr.bf16.mxu0 %v779
    %971 = vmatpush1.bf16.msra.mxu0 %v778
    %972 = vmatprep.subr.bf16.mxu0 %v785
    %973 = vmatpush1.bf16.msra.mxu0 %v784
    %974 = vmatprep.subr.bf16.mxu0 %v791
    %975 = vmatpush1.bf16.msra.mxu0 %v790
    %976 = vmatprep.subr.bf16.mxu0 %v797
    %977 = vmatpush1.bf16.msra.mxu0 %v796
    %978 = vmatprep.subr.bf16.mxu0 %v803
    %979 = vmatpush1.bf16.msra.mxu0 %v802
    %980 = vmatprep.subr.bf16.mxu0 %v809
    %981 = vmatpush1.bf16.msra.mxu0 %v808
    %982 = vmatprep.subr.bf16.mxu0 %v815
    %983 = vmatpush1.bf16.msra.mxu0 %v814
    %984 = vmatprep.subr.bf16.mxu0 %v821
    %985 = vmatpush1.bf16.msra.mxu0 %v820
    %986 = vmatprep.subr.bf16.mxu0 %v827
    %987 = vmatpush1.bf16.msra.mxu0 %v826
    %988 = vmatprep.subr.bf16.mxu0 %v833
    %989 = vmatpush1.bf16.msra.mxu0 %v832
    %990 = vmatprep.subr.bf16.mxu0 %v839
    %991 = vmatpush1.bf16.msra.mxu0 %v838
    %992 = vmatprep.subr.bf16.mxu0 %v845
    %993 = vmatpush1.bf16.msra.mxu0 %v844
    %994 = vmatprep.subr.bf16.mxu0 %v851
    %995 = vmatpush1.bf16.msra.mxu0 %v850
    %996 = vmatprep.subr.bf16.mxu0 %v857
    %997 = vmatpush1.bf16.msra.mxu0 %v856
    %998 = vmatprep.subr.bf16.mxu0 %v863
    %999 = vmatpush1.bf16.msra.mxu0 %v862
    %1000 = vmatprep.subr.bf16.mxu0 %v869
    %1001 = vmatpush1.bf16.msra.mxu0 %v868
    %1002 = vmatprep.mubr.bf16.mxu0 %v361
    %1003 = vmatmul.mubr.bf16.gmra.mrb[0].mxu0 %v360
    %v1004 = vpop.f32.mrb[0].mxu0
    %v1005 = vadd.f32 %v463, %v1004
    %v1006 = vpop.f32.mrb[0].mxu0
    %v1007 = vadd.f32 %v467, %v1006
    %v1008 = vpop.f32.mrb[0].mxu0
    %v1009 = vadd.f32 %v463, %v1008
    %v1010 = vpop.f32.mrb[0].mxu0
    %v1011 = vadd.f32 %v467, %v1010
    %1012 = vdwg.mxu0
    %1013 = vmatprep.subr.bf16.mxu0 %v781
    %1014 = vmatpush1.bf16.msra.mxu0 %v780
    %1015 = vmatprep.subr.bf16.mxu0 %v787
    %1016 = vmatpush1.bf16.msra.mxu0 %v786
    %1017 = vmatprep.subr.bf16.mxu0 %v793
    %1018 = vmatpush1.bf16.msra.mxu0 %v792
    %1019 = vmatprep.subr.bf16.mxu0 %v799
    %1020 = vmatpush1.bf16.msra.mxu0 %v798
    %1021 = vmatprep.subr.bf16.mxu0 %v805
    %1022 = vmatpush1.bf16.msra.mxu0 %v804
    %1023 = vmatprep.subr.bf16.mxu0 %v811
    %1024 = vmatpush1.bf16.msra.mxu0 %v810
    %1025 = vmatprep.subr.bf16.mxu0 %v817
    %1026 = vmatpush1.bf16.msra.mxu0 %v816
    %1027 = vmatprep.subr.bf16.mxu0 %v823
    %1028 = vmatpush1.bf16.msra.mxu0 %v822
    %1029 = vmatprep.subr.bf16.mxu0 %v829
    %1030 = vmatpush1.bf16.msra.mxu0 %v828
    %1031 = vmatprep.subr.bf16.mxu0 %v835
    %1032 = vmatpush1.bf16.msra.mxu0 %v834
    %1033 = vmatprep.subr.bf16.mxu0 %v841
    %1034 = vmatpush1.bf16.msra.mxu0 %v840
    %1035 = vmatprep.subr.bf16.mxu0 %v847
    %1036 = vmatpush1.bf16.msra.mxu0 %v846
    %1037 = vmatprep.subr.bf16.mxu0 %v853
    %1038 = vmatpush1.bf16.msra.mxu0 %v852
    %1039 = vmatprep.subr.bf16.mxu0 %v859
    %1040 = vmatpush1.bf16.msra.mxu0 %v858
    %1041 = vmatprep.subr.bf16.mxu0 %v865
    %1042 = vmatpush1.bf16.msra.mxu0 %v864
    %1043 = vmatprep.subr.bf16.mxu0 %v871
    %1044 = vmatpush1.bf16.msra.mxu0 %v870
    %1045 = vmatprep.mubr.bf16.mxu0 %v361
    %1046 = vmatmul.mubr.bf16.gmra.mrb[0].mxu0 %v360
    %v1047 = vpop.f32.mrb[0].mxu0
    %v1048 = vadd.f32 %v471, %v1047
    %v1049 = vpop.f32.mrb[0].mxu0
    %v1050 = vadd.f32 %v475, %v1049
    %v1051 = vpop.f32.mrb[0].mxu0
    %v1052 = vadd.f32 %v471, %v1051
    %v1053 = vpop.f32.mrb[0].mxu0
    %v1054 = vadd.f32 %v475, %v1053
    %1055 = vdwg.mxu0
    %1056 = vmatprep.subr.bf16.mxu0 %v783
    %1057 = vmatpush1.bf16.msra.mxu0 %v782
    %1058 = vmatprep.subr.bf16.mxu0 %v789
    %1059 = vmatpush1.bf16.msra.mxu0 %v788
    %1060 = vmatprep.subr.bf16.mxu0 %v795
    %1061 = vmatpush1.bf16.msra.mxu0 %v794
    %1062 = vmatprep.subr.bf16.mxu0 %v801
    %1063 = vmatpush1.bf16.msra.mxu0 %v800
    %1064 = vmatprep.subr.bf16.mxu0 %v807
    %1065 = vmatpush1.bf16.msra.mxu0 %v806
    %1066 = vmatprep.subr.bf16.mxu0 %v813
    %1067 = vmatpush1.bf16.msra.mxu0 %v812
    %1068 = vmatprep.subr.bf16.mxu0 %v819
    %1069 = vmatpush1.bf16.msra.mxu0 %v818
    %1070 = vmatprep.subr.bf16.mxu0 %v825
    %1071 = vmatpush1.bf16.msra.mxu0 %v824
    %1072 = vmatprep.subr.bf16.mxu0 %v831
    %1073 = vmatpush1.bf16.msra.mxu0 %v830
    %1074 = vmatprep.subr.bf16.mxu0 %v837
    %1075 = vmatpush1.bf16.msra.mxu0 %v836
    %1076 = vmatprep.subr.bf16.mxu0 %v843
    %1077 = vmatpush1.bf16.msra.mxu0 %v842
    %1078 = vmatprep.subr.bf16.mxu0 %v849
    %1079 = vmatpush1.bf16.msra.mxu0 %v848
    %1080 = vmatprep.subr.bf16.mxu0 %v855
    %1081 = vmatpush1.bf16.msra.mxu0 %v854
    %1082 = vmatprep.subr.bf16.mxu0 %v861
    %1083 = vmatpush1.bf16.msra.mxu0 %v860
    %1084 = vmatprep.subr.bf16.mxu0 %v867
    %1085 = vmatpush1.bf16.msra.mxu0 %v866
    %1086 = vmatprep.subr.bf16.mxu0 %v873
    %1087 = vmatpush1.bf16.msra.mxu0 %v872
    %1088 = vmatprep.mubr.bf16.mxu0 %v361
    %1089 = vmatmul.mubr.bf16.gmra.mrb[0].mxu0 %v360
    %v1090 = vpop.f32.mrb[0].mxu0
    %v1091 = vadd.f32 %v479, %v1090
    %v1092 = vpop.f32.mrb[0].mxu0
    %v1093 = vadd.f32 %v483, %v1092
    %v1094 = vpop.f32.mrb[0].mxu0
    %v1095 = vadd.f32 %v479, %v1094
    %v1096 = vpop.f32.mrb[0].mxu0
    %v1097 = vadd.f32 %v483, %v1096
    %1098 = vdwg.mxu0
    %v1099 = vld [vmem:[%s4] sm:$0x3]
    %v1101 = vlaneseq
    %v1102 = vshrl.u32 %v1101, 7
    %v1103 = vsub.s32 0, %v1102
    %v1104 = vrot.slane %v1099, %v1103
    %v1105 = vlaneseq
    %v1106 = vshrl.u32 %v1105, 7
    %v1107 = vsub.s32 1, %v1106
    %v1108 = vrot.slane %v1099, %v1107
    %s1111 = smul.u32 4, 32
    %s1112 = smul.u32 %s1111, 6
    %s1113 = sshll.u32 %s1112, 4
    %1114 = dma.done [#allocation3], %s1113
    %v1115 = vld [vmem:[#allocation2] sm:$0xff]
    %v1116 = vld [vmem:[#allocation2 + $0x8] sm:$0xff]
    %v1117 = vld [vmem:[#allocation2 + $0x10] sm:$0xff]
    %v1118 = vld [vmem:[#allocation2 + $0x18] sm:$0xff]
    %v1119 = vld [vmem:[#allocation2 + $0x20] sm:$0xff]
    %v1120 = vld [vmem:[#allocation2 + $0x28] sm:$0xff]
    %v1121 = vld [vmem:[#allocation2 + $0x30] sm:$0xff]
    %v1122 = vld [vmem:[#allocation2 + $0x38] sm:$0xff]
    %v1123 = vld [vmem:[#allocation2 + $0x40] sm:$0xff]
    %v1124 = vld [vmem:[#allocation2 + $0x48] sm:$0xff]
    %v1125 = vld [vmem:[#allocation2 + $0x50] sm:$0xff]
    %v1126 = vld [vmem:[#allocation2 + $0x58] sm:$0xff]
    %v1127 = vld [vmem:[#allocation2 + $0x60] sm:$0xff]
    %v1128 = vld [vmem:[#allocation2 + $0x68] sm:$0xff]
    %v1129 = vld [vmem:[#allocation2 + $0x70] sm:$0xff]
    %v1130 = vld [vmem:[#allocation2 + $0x78] sm:$0xff]
    %v1131 = vld [vmem:[#allocation2 + $0x80] sm:$0xff]
    %v1132 = vld [vmem:[#allocation2 + $0x88] sm:$0xff]
    %v1133 = vld [vmem:[#allocation2 + $0x90] sm:$0xff]
    %v1134 = vld [vmem:[#allocation2 + $0x98] sm:$0xff]
    %v1135 = vld [vmem:[#allocation2 + $0xa0] sm:$0xff]
    %v1136 = vld [vmem:[#allocation2 + $0xa8] sm:$0xff]
    %v1137 = vld [vmem:[#allocation2 + $0xb0] sm:$0xff]
    %v1138 = vld [vmem:[#allocation2 + $0xb8] sm:$0xff]
    %v1139 = vld [vmem:[#allocation2 + $0xc0] sm:$0xff]
    %v1140 = vld [vmem:[#allocation2 + $0xc8] sm:$0xff]
    %v1141 = vld [vmem:[#allocation2 + $0xd0] sm:$0xff]
    %v1142 = vld [vmem:[#allocation2 + $0xd8] sm:$0xff]
    %v1143 = vld [vmem:[#allocation2 + $0xe0] sm:$0xff]
    %v1144 = vld [vmem:[#allocation2 + $0xe8] sm:$0xff]
    %v1145 = vld [vmem:[#allocation2 + $0xf0] sm:$0xff]
    %v1146 = vld [vmem:[#allocation2 + $0xf8] sm:$0xff]
    %v1147 = vld [vmem:[#allocation2 + $0x100] sm:$0xff]
    %v1148 = vld [vmem:[#allocation2 + $0x108] sm:$0xff]
    %v1149 = vld [vmem:[#allocation2 + $0x110] sm:$0xff]
    %v1150 = vld [vmem:[#allocation2 + $0x118] sm:$0xff]
    %v1151 = vld [vmem:[#allocation2 + $0x120] sm:$0xff]
    %v1152 = vld [vmem:[#allocation2 + $0x128] sm:$0xff]
    %v1153 = vld [vmem:[#allocation2 + $0x130] sm:$0xff]
    %v1154 = vld [vmem:[#allocation2 + $0x138] sm:$0xff]
    %v1155 = vld [vmem:[#allocation2 + $0x140] sm:$0xff]
    %v1156 = vld [vmem:[#allocation2 + $0x148] sm:$0xff]
    %v1157 = vld [vmem:[#allocation2 + $0x150] sm:$0xff]
    %v1158 = vld [vmem:[#allocation2 + $0x158] sm:$0xff]
    %v1159 = vld [vmem:[#allocation2 + $0x160] sm:$0xff]
    %v1160 = vld [vmem:[#allocation2 + $0x168] sm:$0xff]
    %v1161 = vld [vmem:[#allocation2 + $0x170] sm:$0xff]
    %v1162 = vld [vmem:[#allocation2 + $0x178] sm:$0xff]
    %v1163 = vld [vmem:[#allocation2 + $0x180] sm:$0xff]
    %v1164 = vld [vmem:[#allocation2 + $0x188] sm:$0xff]
    %v1165 = vld [vmem:[#allocation2 + $0x190] sm:$0xff]
    %v1166 = vld [vmem:[#allocation2 + $0x198] sm:$0xff]
    %v1167 = vld [vmem:[#allocation2 + $0x1a0] sm:$0xff]
    %v1168 = vld [vmem:[#allocation2 + $0x1a8] sm:$0xff]
    %v1169 = vld [vmem:[#allocation2 + $0x1b0] sm:$0xff]
    %v1170 = vld [vmem:[#allocation2 + $0x1b8] sm:$0xff]
    %v1171 = vld [vmem:[#allocation2 + $0x1c0] sm:$0xff]
    %v1172 = vld [vmem:[#allocation2 + $0x1c8] sm:$0xff]
    %v1173 = vld [vmem:[#allocation2 + $0x1d0] sm:$0xff]
    %v1174 = vld [vmem:[#allocation2 + $0x1d8] sm:$0xff]
    %v1175 = vld [vmem:[#allocation2 + $0x1e0] sm:$0xff]
    %v1176 = vld [vmem:[#allocation2 + $0x1e8] sm:$0xff]
    %v1177 = vld [vmem:[#allocation2 + $0x1f0] sm:$0xff]
    %v1178 = vld [vmem:[#allocation2 + $0x1f8] sm:$0xff]
    %v1179 = vld [vmem:[#allocation2 + $0x200] sm:$0xff]
    %v1180 = vld [vmem:[#allocation2 + $0x208] sm:$0xff]
    %v1181 = vld [vmem:[#allocation2 + $0x210] sm:$0xff]
    %v1182 = vld [vmem:[#allocation2 + $0x218] sm:$0xff]
    %v1183 = vld [vmem:[#allocation2 + $0x220] sm:$0xff]
    %v1184 = vld [vmem:[#allocation2 + $0x228] sm:$0xff]
    %v1185 = vld [vmem:[#allocation2 + $0x230] sm:$0xff]
    %v1186 = vld [vmem:[#allocation2 + $0x238] sm:$0xff]
    %v1187 = vld [vmem:[#allocation2 + $0x240] sm:$0xff]
    %v1188 = vld [vmem:[#allocation2 + $0x248] sm:$0xff]
    %v1189 = vld [vmem:[#allocation2 + $0x250] sm:$0xff]
    %v1190 = vld [vmem:[#allocation2 + $0x258] sm:$0xff]
    %v1191 = vld [vmem:[#allocation2 + $0x260] sm:$0xff]
    %v1192 = vld [vmem:[#allocation2 + $0x268] sm:$0xff]
    %v1193 = vld [vmem:[#allocation2 + $0x270] sm:$0xff]
    %v1194 = vld [vmem:[#allocation2 + $0x278] sm:$0xff]
    %v1195 = vld [vmem:[#allocation2 + $0x280] sm:$0xff]
    %v1196 = vld [vmem:[#allocation2 + $0x288] sm:$0xff]
    %v1197 = vld [vmem:[#allocation2 + $0x290] sm:$0xff]
    %v1198 = vld [vmem:[#allocation2 + $0x298] sm:$0xff]
    %v1199 = vld [vmem:[#allocation2 + $0x2a0] sm:$0xff]
    %v1200 = vld [vmem:[#allocation2 + $0x2a8] sm:$0xff]
    %v1201 = vld [vmem:[#allocation2 + $0x2b0] sm:$0xff]
    %v1202 = vld [vmem:[#allocation2 + $0x2b8] sm:$0xff]
    %v1203 = vld [vmem:[#allocation2 + $0x2c0] sm:$0xff]
    %v1204 = vld [vmem:[#allocation2 + $0x2c8] sm:$0xff]
    %v1205 = vld [vmem:[#allocation2 + $0x2d0] sm:$0xff]
    %v1206 = vld [vmem:[#allocation2 + $0x2d8] sm:$0xff]
    %v1207 = vld [vmem:[#allocation2 + $0x2e0] sm:$0xff]
    %v1208 = vld [vmem:[#allocation2 + $0x2e8] sm:$0xff]
    %v1209 = vld [vmem:[#allocation2 + $0x2f0] sm:$0xff]
    %v1210 = vld [vmem:[#allocation2 + $0x2f8] sm:$0xff]
    %1211 = vmatprep.subr.bf16.mxu0 %v1116
    %1212 = vmatpush1.bf16.msra.mxu0 %v1115
    %1213 = vmatprep.subr.bf16.mxu0 %v1122
    %1214 = vmatpush1.bf16.msra.mxu0 %v1121
    %1215 = vmatprep.subr.bf16.mxu0 %v1128
    %1216 = vmatpush1.bf16.msra.mxu0 %v1127
    %1217 = vmatprep.subr.bf16.mxu0 %v1134
    %1218 = vmatpush1.bf16.msra.mxu0 %v1133
    %1219 = vmatprep.subr.bf16.mxu0 %v1140
    %1220 = vmatpush1.bf16.msra.mxu0 %v1139
    %1221 = vmatprep.subr.bf16.mxu0 %v1146
    %1222 = vmatpush1.bf16.msra.mxu0 %v1145
    %1223 = vmatprep.subr.bf16.mxu0 %v1152
    %1224 = vmatpush1.bf16.msra.mxu0 %v1151
    %1225 = vmatprep.subr.bf16.mxu0 %v1158
    %1226 = vmatpush1.bf16.msra.mxu0 %v1157
    %1227 = vmatprep.subr.bf16.mxu0 %v1164
    %1228 = vmatpush1.bf16.msra.mxu0 %v1163
    %1229 = vmatprep.subr.bf16.mxu0 %v1170
    %1230 = vmatpush1.bf16.msra.mxu0 %v1169
    %1231 = vmatprep.subr.bf16.mxu0 %v1176
    %1232 = vmatpush1.bf16.msra.mxu0 %v1175
    %1233 = vmatprep.subr.bf16.mxu0 %v1182
    %1234 = vmatpush1.bf16.msra.mxu0 %v1181
    %1235 = vmatprep.subr.bf16.mxu0 %v1188
    %1236 = vmatpush1.bf16.msra.mxu0 %v1187
    %1237 = vmatprep.subr.bf16.mxu0 %v1194
    %1238 = vmatpush1.bf16.msra.mxu0 %v1193
    %1239 = vmatprep.subr.bf16.mxu0 %v1200
    %1240 = vmatpush1.bf16.msra.mxu0 %v1199
    %1241 = vmatprep.subr.bf16.mxu0 %v1206
    %1242 = vmatpush1.bf16.msra.mxu0 %v1205
    %1243 = vmatprep.mubr.bf16.mxu0 0
    %1244 = vmatmul.mubr.bf16.gmra.mrb[0].mxu0 0
    %v1245 = vpop.f32.mrb[0].mxu0
    %v1246 = vadd.f32 0.0, %v1245
    %v1247 = vpop.f32.mrb[0].mxu0
    %v1248 = vadd.f32 0.0, %v1247
    %v1249 = vpop.f32.mrb[0].mxu0
    %v1250 = vpop.f32.mrb[0].mxu0
    %1251 = vdwg.mxu0
    %1252 = vmatprep.subr.bf16.mxu0 %v1118
    %1253 = vmatpush1.bf16.msra.mxu0 %v1117
    %1254 = vmatprep.subr.bf16.mxu0 %v1124
    %1255 = vmatpush1.bf16.msra.mxu0 %v1123
    %1256 = vmatprep.subr.bf16.mxu0 %v1130
    %1257 = vmatpush1.bf16.msra.mxu0 %v1129
    %1258 = vmatprep.subr.bf16.mxu0 %v1136
    %1259 = vmatpush1.bf16.msra.mxu0 %v1135
    %1260 = vmatprep.subr.bf16.mxu0 %v1142
    %1261 = vmatpush1.bf16.msra.mxu0 %v1141
    %1262 = vmatprep.subr.bf16.mxu0 %v1148
    %1263 = vmatpush1.bf16.msra.mxu0 %v1147
    %1264 = vmatprep.subr.bf16.mxu0 %v1154
    %1265 = vmatpush1.bf16.msra.mxu0 %v1153
    %1266 = vmatprep.subr.bf16.mxu0 %v1160
    %1267 = vmatpush1.bf16.msra.mxu0 %v1159
    %1268 = vmatprep.subr.bf16.mxu0 %v1166
    %1269 = vmatpush1.bf16.msra.mxu0 %v1165
    %1270 = vmatprep.subr.bf16.mxu0 %v1172
    %1271 = vmatpush1.bf16.msra.mxu0 %v1171
    %1272 = vmatprep.subr.bf16.mxu0 %v1178
    %1273 = vmatpush1.bf16.msra.mxu0 %v1177
    %1274 = vmatprep.subr.bf16.mxu0 %v1184
    %1275 = vmatpush1.bf16.msra.mxu0 %v1183
    %1276 = vmatprep.subr.bf16.mxu0 %v1190
    %1277 = vmatpush1.bf16.msra.mxu0 %v1189
    %1278 = vmatprep.subr.bf16.mxu0 %v1196
    %1279 = vmatpush1.bf16.msra.mxu0 %v1195
    %1280 = vmatprep.subr.bf16.mxu0 %v1202
    %1281 = vmatpush1.bf16.msra.mxu0 %v1201
    %1282 = vmatprep.subr.bf16.mxu0 %v1208
    %1283 = vmatpush1.bf16.msra.mxu0 %v1207
    %1284 = vmatprep.mubr.bf16.mxu0 0
    %1285 = vmatmul.mubr.bf16.gmra.mrb[0].mxu0 0
    %v1286 = vpop.f32.mrb[0].mxu0
    %v1287 = vadd.f32 0.0, %v1286
    %v1288 = vpop.f32.mrb[0].mxu0
    %v1289 = vadd.f32 0.0, %v1288
    %v1290 = vpop.f32.mrb[0].mxu0
    %v1291 = vpop.f32.mrb[0].mxu0
    %1292 = vdwg.mxu0
    %1293 = vmatprep.subr.bf16.mxu0 %v1120
    %1294 = vmatpush1.bf16.msra.mxu0 %v1119
    %1295 = vmatprep.subr.bf16.mxu0 %v1126
    %1296 = vmatpush1.bf16.msra.mxu0 %v1125
    %1297 = vmatprep.subr.bf16.mxu0 %v1132
    %1298 = vmatpush1.bf16.msra.mxu0 %v1131
    %1299 = vmatprep.subr.bf16.mxu0 %v1138
    %1300 = vmatpush1.bf16.msra.mxu0 %v1137
    %1301 = vmatprep.subr.bf16.mxu0 %v1144
    %1302 = vmatpush1.bf16.msra.mxu0 %v1143
    %1303 = vmatprep.subr.bf16.mxu0 %v1150
    %1304 = vmatpush1.bf16.msra.mxu0 %v1149
    %1305 = vmatprep.subr.bf16.mxu0 %v1156
    %1306 = vmatpush1.bf16.msra.mxu0 %v1155
    %1307 = vmatprep.subr.bf16.mxu0 %v1162
    %1308 = vmatpush1.bf16.msra.mxu0 %v1161
    %1309 = vmatprep.subr.bf16.mxu0 %v1168
    %1310 = vmatpush1.bf16.msra.mxu0 %v1167
    %1311 = vmatprep.subr.bf16.mxu0 %v1174
    %1312 = vmatpush1.bf16.msra.mxu0 %v1173
    %1313 = vmatprep.subr.bf16.mxu0 %v1180
    %1314 = vmatpush1.bf16.msra.mxu0 %v1179
    %1315 = vmatprep.subr.bf16.mxu0 %v1186
    %1316 = vmatpush1.bf16.msra.mxu0 %v1185
    %1317 = vmatprep.subr.bf16.mxu0 %v1192
    %1318 = vmatpush1.bf16.msra.mxu0 %v1191
    %1319 = vmatprep.subr.bf16.mxu0 %v1198
    %1320 = vmatpush1.bf16.msra.mxu0 %v1197
    %1321 = vmatprep.subr.bf16.mxu0 %v1204
    %1322 = vmatpush1.bf16.msra.mxu0 %v1203
    %1323 = vmatprep.subr.bf16.mxu0 %v1210
    %1324 = vmatpush1.bf16.msra.mxu0 %v1209
    %1325 = vmatprep.mubr.bf16.mxu0 0
    %1326 = vmatmul.mubr.bf16.gmra.mrb[0].mxu0 0
    %v1327 = vpop.f32.mrb[0].mxu0
    %v1328 = vadd.f32 0.0, %v1327
    %v1329 = vpop.f32.mrb[0].mxu0
    %v1330 = vadd.f32 0.0, %v1329
    %v1331 = vpop.f32.mrb[0].mxu0
    %v1332 = vpop.f32.mrb[0].mxu0
    %1333 = vdwg.mxu0
    %v1334 = vadd.f32 %v1005, %v1246
    %v1335 = vadd.f32 %v1007, %v1248
    %v1336 = vxor.u32 %v1334, 2147483648
    %v1337 = vxor.u32 %v1335, 2147483648
    %v1338 = vmul.f32 %v1336, 1.442695
    %v1339 = vpow.pop %v1338
    %v1340 = vmul.f32 %v1337, 1.442695
    %v1341 = vpow.pop %v1340
    %v1342 = vadd.f32 %v1339, 1.0
    %v1343 = vadd.f32 %v1341, 1.0
    %v1344 = vrcp.pop %v1342
    %v1345 = vmul.f32 1.0, %v1344
    %v1346 = vrcp.pop %v1343
    %v1347 = vmul.f32 1.0, %v1346
    %v1348 = vadd.f32 %v1048, %v1287
    %v1349 = vadd.f32 %v1050, %v1289
    %v1350 = vxor.u32 %v1348, 2147483648
    %v1351 = vxor.u32 %v1349, 2147483648
    %v1352 = vmul.f32 %v1350, 1.442695
    %v1353 = vpow.pop %v1352
    %v1354 = vmul.f32 %v1351, 1.442695
    %v1355 = vpow.pop %v1354
    %v1356 = vadd.f32 %v1353, 1.0
    %v1357 = vadd.f32 %v1355, 1.0
    %v1358 = vrcp.pop %v1356
    %v1359 = vmul.f32 1.0, %v1358
    %v1360 = vrcp.pop %v1357
    %v1361 = vmul.f32 1.0, %v1360
    %v1362 = vadd.f32 %v1328, %v1104
    %v1363 = vadd.f32 %v1330, %v1108
    %v1364 = vmul.f32 %v1345, %v1362
    %v1365 = vmul.f32 %v1347, %v1363
    %v1366 = vadd.f32 %v1091, %v1364
    %v1367 = vadd.f32 %v1093, %v1365
    %v1368 = vtanh.pop %v1366
    %v1369 = vtanh.pop %v1367
    %v1370 = vsub.f32 1.0, %v1359
    %v1371 = vsub.f32 1.0, %v1361
    %v1372 = vmul.f32 %v1370, %v1368
    %v1373 = vmul.f32 %v1371, %v1369
    %v1374 = vmul.f32 %v1359, 0.0
    %v1375 = vmul.f32 %v1361, 0.0
    %v1376 = vadd.f32 %v1372, %v1374
    %v1377 = vadd.f32 %v1373, %v1375
    %v1378 = vpack.c.bf16 %v1376, %v1376
    %v1379 = vpack.c.bf16 %v1377, %v1377
    %1380 = vmatprep.subr.bf16.mxu0 %v1116
    %1381 = vmatpush1.bf16.msra.mxu0 %v1115
    %1382 = vmatprep.subr.bf16.mxu0 %v1122
    %1383 = vmatpush1.bf16.msra.mxu0 %v1121
    %1384 = vmatprep.subr.bf16.mxu0 %v1128
    %1385 = vmatpush1.bf16.msra.mxu0 %v1127
    %1386 = vmatprep.subr.bf16.mxu0 %v1134
    %1387 = vmatpush1.bf16.msra.mxu0 %v1133
    %1388 = vmatprep.subr.bf16.mxu0 %v1140
    %1389 = vmatpush1.bf16.msra.mxu0 %v1139
    %1390 = vmatprep.subr.bf16.mxu0 %v1146
    %1391 = vmatpush1.bf16.msra.mxu0 %v1145
    %1392 = vmatprep.subr.bf16.mxu0 %v1152
    %1393 = vmatpush1.bf16.msra.mxu0 %v1151
    %1394 = vmatprep.subr.bf16.mxu0 %v1158
    %1395 = vmatpush1.bf16.msra.mxu0 %v1157
    %1396 = vmatprep.subr.bf16.mxu0 %v1164
    %1397 = vmatpush1.bf16.msra.mxu0 %v1163
    %1398 = vmatprep.subr.bf16.mxu0 %v1170
    %1399 = vmatpush1.bf16.msra.mxu0 %v1169
    %1400 = vmatprep.subr.bf16.mxu0 %v1176
    %1401 = vmatpush1.bf16.msra.mxu0 %v1175
    %1402 = vmatprep.subr.bf16.mxu0 %v1182
    %1403 = vmatpush1.bf16.msra.mxu0 %v1181
    %1404 = vmatprep.subr.bf16.mxu0 %v1188
    %1405 = vmatpush1.bf16.msra.mxu0 %v1187
    %1406 = vmatprep.subr.bf16.mxu0 %v1194
    %1407 = vmatpush1.bf16.msra.mxu0 %v1193
    %1408 = vmatprep.subr.bf16.mxu0 %v1200
    %1409 = vmatpush1.bf16.msra.mxu0 %v1199
    %1410 = vmatprep.subr.bf16.mxu0 %v1206
    %1411 = vmatpush1.bf16.msra.mxu0 %v1205
    %1412 = vmatprep.mubr.bf16.mxu0 %v1379
    %1413 = vmatmul.mubr.bf16.gmra.mrb[0].mxu0 %v1378
    %v1414 = vpop.f32.mrb[0].mxu0
    %v1415 = vadd.f32 0.0, %v1414
    %v1416 = vpop.f32.mrb[0].mxu0
    %v1417 = vadd.f32 0.0, %v1416
    %v1418 = vpop.f32.mrb[0].mxu0
    %v1419 = vpop.f32.mrb[0].mxu0
    %1420 = vdwg.mxu0
    %1421 = vmatprep.subr.bf16.mxu0 %v1118
    %1422 = vmatpush1.bf16.msra.mxu0 %v1117
    %1423 = vmatprep.subr.bf16.mxu0 %v1124
    %1424 = vmatpush1.bf16.msra.mxu0 %v1123
    %1425 = vmatprep.subr.bf16.mxu0 %v1130
    %1426 = vmatpush1.bf16.msra.mxu0 %v1129
    %1427 = vmatprep.subr.bf16.mxu0 %v1136
    %1428 = vmatpush1.bf16.msra.mxu0 %v1135
    %1429 = vmatprep.subr.bf16.mxu0 %v1142
    %1430 = vmatpush1.bf16.msra.mxu0 %v1141
    %1431 = vmatprep.subr.bf16.mxu0 %v1148
    %1432 = vmatpush1.bf16.msra.mxu0 %v1147
    %1433 = vmatprep.subr.bf16.mxu0 %v1154
    %1434 = vmatpush1.bf16.msra.mxu0 %v1153
    %1435 = vmatprep.subr.bf16.mxu0 %v1160
    %1436 = vmatpush1.bf16.msra.mxu0 %v1159
    %1437 = vmatprep.subr.bf16.mxu0 %v1166
    %1438 = vmatpush1.bf16.msra.mxu0 %v1165
    %1439 = vmatprep.subr.bf16.mxu0 %v1172
    %1440 = vmatpush1.bf16.msra.mxu0 %v1171
    %1441 = vmatprep.subr.bf16.mxu0 %v1178
    %1442 = vmatpush1.bf16.msra.mxu0 %v1177
    %1443 = vmatprep.subr.bf16.mxu0 %v1184
    %1444 = vmatpush1.bf16.msra.mxu0 %v1183
    %1445 = vmatprep.subr.bf16.mxu0 %v1190
    %1446 = vmatpush1.bf16.msra.mxu0 %v1189
    %1447 = vmatprep.subr.bf16.mxu0 %v1196
    %1448 = vmatpush1.bf16.msra.mxu0 %v1195
    %1449 = vmatprep.subr.bf16.mxu0 %v1202
    %1450 = vmatpush1.bf16.msra.mxu0 %v1201
    %1451 = vmatprep.subr.bf16.mxu0 %v1208
    %1452 = vmatpush1.bf16.msra.mxu0 %v1207
    %1453 = vmatprep.mubr.bf16.mxu0 %v1379
    %1454 = vmatmul.mubr.bf16.gmra.mrb[0].mxu0 %v1378
    %v1455 = vpop.f32.mrb[0].mxu0
    %v1456 = vadd.f32 0.0, %v1455
    %v1457 = vpop.f32.mrb[0].mxu0
    %v1458 = vadd.f32 0.0, %v1457
    %v1459 = vpop.f32.mrb[0].mxu0
    %v1460 = vpop.f32.mrb[0].mxu0
    %1461 = vdwg.mxu0
    %1462 = vmatprep.subr.bf16.mxu0 %v1120
    %1463 = vmatpush1.bf16.msra.mxu0 %v1119
    %1464 = vmatprep.subr.bf16.mxu0 %v1126
    %1465 = vmatpush1.bf16.msra.mxu0 %v1125
    %1466 = vmatprep.subr.bf16.mxu0 %v1132
    %1467 = vmatpush1.bf16.msra.mxu0 %v1131
    %1468 = vmatprep.subr.bf16.mxu0 %v1138
    %1469 = vmatpush1.bf16.msra.mxu0 %v1137
    %1470 = vmatprep.subr.bf16.mxu0 %v1144
    %1471 = vmatpush1.bf16.msra.mxu0 %v1143
    %1472 = vmatprep.subr.bf16.mxu0 %v1150
    %1473 = vmatpush1.bf16.msra.mxu0 %v1149
    %1474 = vmatprep.subr.bf16.mxu0 %v1156
    %1475 = vmatpush1.bf16.msra.mxu0 %v1155
    %1476 = vmatprep.subr.bf16.mxu0 %v1162
    %1477 = vmatpush1.bf16.msra.mxu0 %v1161
    %1478 = vmatprep.subr.bf16.mxu0 %v1168
    %1479 = vmatpush1.bf16.msra.mxu0 %v1167
    %1480 = vmatprep.subr.bf16.mxu0 %v1174
    %1481 = vmatpush1.bf16.msra.mxu0 %v1173
    %1482 = vmatprep.subr.bf16.mxu0 %v1180
    %1483 = vmatpush1.bf16.msra.mxu0 %v1179
    %1484 = vmatprep.subr.bf16.mxu0 %v1186
    %1485 = vmatpush1.bf16.msra.mxu0 %v1185
    %1486 = vmatprep.subr.bf16.mxu0 %v1192
    %1487 = vmatpush1.bf16.msra.mxu0 %v1191
    %1488 = vmatprep.subr.bf16.mxu0 %v1198
    %1489 = vmatpush1.bf16.msra.mxu0 %v1197
    %1490 = vmatprep.subr.bf16.mxu0 %v1204
    %1491 = vmatpush1.bf16.msra.mxu0 %v1203
    %1492 = vmatprep.subr.bf16.mxu0 %v1210
    %1493 = vmatpush1.bf16.msra.mxu0 %v1209
    %1494 = vmatprep.mubr.bf16.mxu0 %v1379
    %1495 = vmatmul.mubr.bf16.gmra.mrb[0].mxu0 %v1378
    %v1496 = vpop.f32.mrb[0].mxu0
    %v1497 = vadd.f32 0.0, %v1496
    %v1498 = vpop.f32.mrb[0].mxu0
    %v1499 = vadd.f32 0.0, %v1498
    %v1500 = vpop.f32.mrb[0].mxu0
    %v1501 = vpop.f32.mrb[0].mxu0
    %1502 = vdwg.mxu0
    %v1505 = vrot.slane %v1415, 6
    %v1506 = vrot.slane %v1417, 6
    %v1509 = vadd.f32 %v1005, %v1505
    %v1510 = vadd.f32 %v1007, %v1506
    %v1511 = vxor.u32 %v1509, 2147483648
    %v1512 = vxor.u32 %v1510, 2147483648
    %v1513 = vmul.f32 %v1511, 1.442695
    %v1514 = vpow.pop %v1513
    %v1515 = vmul.f32 %v1512, 1.442695
    %v1516 = vpow.pop %v1515
    %v1517 = vadd.f32 %v1514, 1.0
    %v1518 = vadd.f32 %v1516, 1.0
    %v1519 = vrcp.pop %v1517
    %v1520 = vmul.f32 1.0, %v1519
    %v1521 = vrcp.pop %v1518
    %v1522 = vmul.f32 1.0, %v1521
    %v1525 = vrot.slane %v1456, 6
    %v1526 = vrot.slane %v1458, 6
    %v1529 = vadd.f32 %v1048, %v1525
    %v1530 = vadd.f32 %v1050, %v1526
    %v1531 = vxor.u32 %v1529, 2147483648
    %v1532 = vxor.u32 %v1530, 2147483648
    %v1533 = vmul.f32 %v1531, 1.442695
    %v1534 = vpow.pop %v1533
    %v1535 = vmul.f32 %v1532, 1.442695
    %v1536 = vpow.pop %v1535
    %v1537 = vadd.f32 %v1534, 1.0
    %v1538 = vadd.f32 %v1536, 1.0
    %v1539 = vrcp.pop %v1537
    %v1540 = vmul.f32 1.0, %v1539
    %v1541 = vrcp.pop %v1538
    %v1542 = vmul.f32 1.0, %v1541
    %v1543 = vadd.f32 %v1497, %v1104
    %v1544 = vadd.f32 %v1499, %v1108
    %v1547 = vrot.slane %v1543, 6
    %v1548 = vrot.slane %v1544, 6
    %v1551 = vmul.f32 %v1520, %v1547
    %v1552 = vmul.f32 %v1522, %v1548
    %v1553 = vadd.f32 %v1091, %v1551
    %v1554 = vadd.f32 %v1093, %v1552
    %v1555 = vtanh.pop %v1553
    %v1556 = vtanh.pop %v1554
    %v1557 = vsub.f32 1.0, %v1540
    %v1558 = vsub.f32 1.0, %v1542
    %v1559 = vmul.f32 %v1557, %v1555
    %v1560 = vmul.f32 %v1558, %v1556
    %v1563 = vrot.slane %v1376, 6
    %v1564 = vrot.slane %v1377, 6
    %v1567 = vmul.f32 %v1540, %v1563
    %v1568 = vmul.f32 %v1542, %v1564
    %v1569 = vadd.f32 %v1559, %v1567
    %v1570 = vadd.f32 %v1560, %v1568
    %v1571 = vpack.c.bf16 %v1569, %v1569
    %v1572 = vpack.c.bf16 %v1570, %v1570
    %v1575 = vrot.slane %v1571, 1
    %v1576 = vrot.slane %v1572, 1
    %1579 = vmatprep.subr.bf16.mxu0 %v1116
    %1580 = vmatpush1.bf16.msra.mxu0 %v1115
    %1581 = vmatprep.subr.bf16.mxu0 %v1122
    %1582 = vmatpush1.bf16.msra.mxu0 %v1121
    %1583 = vmatprep.subr.bf16.mxu0 %v1128
    %1584 = vmatpush1.bf16.msra.mxu0 %v1127
    %1585 = vmatprep.subr.bf16.mxu0 %v1134
    %1586 = vmatpush1.bf16.msra.mxu0 %v1133
    %1587 = vmatprep.subr.bf16.mxu0 %v1140
    %1588 = vmatpush1.bf16.msra.mxu0 %v1139
    %1589 = vmatprep.subr.bf16.mxu0 %v1146
    %1590 = vmatpush1.bf16.msra.mxu0 %v1145
    %1591 = vmatprep.subr.bf16.mxu0 %v1152
    %1592 = vmatpush1.bf16.msra.mxu0 %v1151
    %1593 = vmatprep.subr.bf16.mxu0 %v1158
    %1594 = vmatpush1.bf16.msra.mxu0 %v1157
    %1595 = vmatprep.subr.bf16.mxu0 %v1164
    %1596 = vmatpush1.bf16.msra.mxu0 %v1163
    %1597 = vmatprep.subr.bf16.mxu0 %v1170
    %1598 = vmatpush1.bf16.msra.mxu0 %v1169
    %1599 = vmatprep.subr.bf16.mxu0 %v1176
    %1600 = vmatpush1.bf16.msra.mxu0 %v1175
    %1601 = vmatprep.subr.bf16.mxu0 %v1182
    %1602 = vmatpush1.bf16.msra.mxu0 %v1181
    %1603 = vmatprep.subr.bf16.mxu0 %v1188
    %1604 = vmatpush1.bf16.msra.mxu0 %v1187
    %1605 = vmatprep.subr.bf16.mxu0 %v1194
    %1606 = vmatpush1.bf16.msra.mxu0 %v1193
    %1607 = vmatprep.subr.bf16.mxu0 %v1200
    %1608 = vmatpush1.bf16.msra.mxu0 %v1199
    %1609 = vmatprep.subr.bf16.mxu0 %v1206
    %1610 = vmatpush1.bf16.msra.mxu0 %v1205
    %1611 = vmatprep.mubr.bf16.mxu0 %v1576
    %1612 = vmatmul.mubr.bf16.gmra.mrb[0].mxu0 %v1575
    %v1613 = vpop.f32.mrb[0].mxu0
    %v1614 = vadd.f32 0.0, %v1613
    %v1615 = vpop.f32.mrb[0].mxu0
    %v1616 = vadd.f32 0.0, %v1615
    %v1617 = vpop.f32.mrb[0].mxu0
    %v1618 = vpop.f32.mrb[0].mxu0
    %1619 = vdwg.mxu0
    %1620 = vmatprep.subr.bf16.mxu0 %v1118
    %1621 = vmatpush1.bf16.msra.mxu0 %v1117
    %1622 = vmatprep.subr.bf16.mxu0 %v1124
    %1623 = vmatpush1.bf16.msra.mxu0 %v1123
    %1624 = vmatprep.subr.bf16.mxu0 %v1130
    %1625 = vmatpush1.bf16.msra.mxu0 %v1129
    %1626 = vmatprep.subr.bf16.mxu0 %v1136
    %1627 = vmatpush1.bf16.msra.mxu0 %v1135
    %1628 = vmatprep.subr.bf16.mxu0 %v1142
    %1629 = vmatpush1.bf16.msra.mxu0 %v1141
    %1630 = vmatprep.subr.bf16.mxu0 %v1148
    %1631 = vmatpush1.bf16.msra.mxu0 %v1147
    %1632 = vmatprep.subr.bf16.mxu0 %v1154
    %1633 = vmatpush1.bf16.msra.mxu0 %v1153
    %1634 = vmatprep.subr.bf16.mxu0 %v1160
    %1635 = vmatpush1.bf16.msra.mxu0 %v1159
    %1636 = vmatprep.subr.bf16.mxu0 %v1166
    %1637 = vmatpush1.bf16.msra.mxu0 %v1165
    %1638 = vmatprep.subr.bf16.mxu0 %v1172
    %1639 = vmatpush1.bf16.msra.mxu0 %v1171
    %1640 = vmatprep.subr.bf16.mxu0 %v1178
    %1641 = vmatpush1.bf16.msra.mxu0 %v1177
    %1642 = vmatprep.subr.bf16.mxu0 %v1184
    %1643 = vmatpush1.bf16.msra.mxu0 %v1183
    %1644 = vmatprep.subr.bf16.mxu0 %v1190
    %1645 = vmatpush1.bf16.msra.mxu0 %v1189
    %1646 = vmatprep.subr.bf16.mxu0 %v1196
    %1647 = vmatpush1.bf16.msra.mxu0 %v1195
    %1648 = vmatprep.subr.bf16.mxu0 %v1202
    %1649 = vmatpush1.bf16.msra.mxu0 %v1201
    %1650 = vmatprep.subr.bf16.mxu0 %v1208
    %1651 = vmatpush1.bf16.msra.mxu0 %v1207
    %1652 = vmatprep.mubr.bf16.mxu0 %v1576
    %1653 = vmatmul.mubr.bf16.gmra.mrb[0].mxu0 %v1575
    %v1654 = vpop.f32.mrb[0].mxu0
    %v1655 = vadd.f32 0.0, %v1654
    %v1656 = vpop.f32.mrb[0].mxu0
    %v1657 = vadd.f32 0.0, %v1656
    %v1658 = vpop.f32.mrb[0].mxu0
    %v1659 = vpop.f32.mrb[0].mxu0
    %1660 = vdwg.mxu0
    %1661 = vmatprep.subr.bf16.mxu0 %v1120
    %1662 = vmatpush1.bf16.msra.mxu0 %v1119
    %1663 = vmatprep.subr.bf16.mxu0 %v1126
    %1664 = vmatpush1.bf16.msra.mxu0 %v1125
    %1665 = vmatprep.subr.bf16.mxu0 %v1132
    %1666 = vmatpush1.bf16.msra.mxu0 %v1131
    %1667 = vmatprep.subr.bf16.mxu0 %v1138
    %1668 = vmatpush1.bf16.msra.mxu0 %v1137
    %1669 = vmatprep.subr.bf16.mxu0 %v1144
    %1670 = vmatpush1.bf16.msra.mxu0 %v1143
    %1671 = vmatprep.subr.bf16.mxu0 %v1150
    %1672 = vmatpush1.bf16.msra.mxu0 %v1149
    %1673 = vmatprep.subr.bf16.mxu0 %v1156
    %1674 = vmatpush1.bf16.msra.mxu0 %v1155
    %1675 = vmatprep.subr.bf16.mxu0 %v1162
    %1676 = vmatpush1.bf16.msra.mxu0 %v1161
    %1677 = vmatprep.subr.bf16.mxu0 %v1168
    %1678 = vmatpush1.bf16.msra.mxu0 %v1167
    %1679 = vmatprep.subr.bf16.mxu0 %v1174
    %1680 = vmatpush1.bf16.msra.mxu0 %v1173
    %1681 = vmatprep.subr.bf16.mxu0 %v1180
    %1682 = vmatpush1.bf16.msra.mxu0 %v1179
    %1683 = vmatprep.subr.bf16.mxu0 %v1186
    %1684 = vmatpush1.bf16.msra.mxu0 %v1185
    %1685 = vmatprep.subr.bf16.mxu0 %v1192
    %1686 = vmatpush1.bf16.msra.mxu0 %v1191
    %1687 = vmatprep.subr.bf16.mxu0 %v1198
    %1688 = vmatpush1.bf16.msra.mxu0 %v1197
    %1689 = vmatprep.subr.bf16.mxu0 %v1204
    %1690 = vmatpush1.bf16.msra.mxu0 %v1203
    %1691 = vmatprep.subr.bf16.mxu0 %v1210
    %1692 = vmatpush1.bf16.msra.mxu0 %v1209
    %1693 = vmatprep.mubr.bf16.mxu0 %v1576
    %1694 = vmatmul.mubr.bf16.gmra.mrb[0].mxu0 %v1575
    %v1695 = vpop.f32.mrb[0].mxu0
    %v1696 = vadd.f32 0.0, %v1695
    %v1697 = vpop.f32.mrb[0].mxu0
    %v1698 = vadd.f32 0.0, %v1697
    %v1699 = vpop.f32.mrb[0].mxu0
    %v1700 = vpop.f32.mrb[0].mxu0
    %1701 = vdwg.mxu0
    %v1704 = vrot.slane %v1614, 4
    %v1705 = vrot.slane %v1616, 4
    %v1708 = vadd.f32 %v1005, %v1704
    %v1709 = vadd.f32 %v1007, %v1705
    %v1710 = vxor.u32 %v1708, 2147483648
    %v1711 = vxor.u32 %v1709, 2147483648
    %v1712 = vmul.f32 %v1710, 1.442695
    %v1713 = vpow.pop %v1712
    %v1714 = vmul.f32 %v1711, 1.442695
    %v1715 = vpow.pop %v1714
    %v1716 = vadd.f32 %v1713, 1.0
    %v1717 = vadd.f32 %v1715, 1.0
    %v1718 = vrcp.pop %v1716
    %v1719 = vmul.f32 1.0, %v1718
    %v1720 = vrcp.pop %v1717
    %v1721 = vmul.f32 1.0, %v1720
    %v1724 = vrot.slane %v1655, 4
    %v1725 = vrot.slane %v1657, 4
    %v1728 = vadd.f32 %v1048, %v1724
    %v1729 = vadd.f32 %v1050, %v1725
    %v1730 = vxor.u32 %v1728, 2147483648
    %v1731 = vxor.u32 %v1729, 2147483648
    %v1732 = vmul.f32 %v1730, 1.442695
    %v1733 = vpow.pop %v1732
    %v1734 = vmul.f32 %v1731, 1.442695
    %v1735 = vpow.pop %v1734
    %v1736 = vadd.f32 %v1733, 1.0
    %v1737 = vadd.f32 %v1735, 1.0
    %v1738 = vrcp.pop %v1736
    %v1739 = vmul.f32 1.0, %v1738
    %v1740 = vrcp.pop %v1737
    %v1741 = vmul.f32 1.0, %v1740
    %v1742 = vadd.f32 %v1696, %v1104
    %v1743 = vadd.f32 %v1698, %v1108
    %v1746 = vrot.slane %v1742, 4
    %v1747 = vrot.slane %v1743, 4
    %v1750 = vmul.f32 %v1719, %v1746
    %v1751 = vmul.f32 %v1721, %v1747
    %v1752 = vadd.f32 %v1091, %v1750
    %v1753 = vadd.f32 %v1093, %v1751
    %v1754 = vtanh.pop %v1752
    %v1755 = vtanh.pop %v1753
    %v1756 = vsub.f32 1.0, %v1739
    %v1757 = vsub.f32 1.0, %v1741
    %v1758 = vmul.f32 %v1756, %v1754
    %v1759 = vmul.f32 %v1757, %v1755
    %v1762 = vrot.slane %v1569, 6
    %v1763 = vrot.slane %v1570, 6
    %v1766 = vmul.f32 %v1739, %v1762
    %v1767 = vmul.f32 %v1741, %v1763
    %v1768 = vadd.f32 %v1758, %v1766
    %v1769 = vadd.f32 %v1759, %v1767
    %v1770 = vpack.c.bf16 %v1768, %v1768
    %v1771 = vpack.c.bf16 %v1769, %v1769
    %v1774 = vrot.slane %v1770, 2
    %v1775 = vrot.slane %v1771, 2
    %1778 = vmatprep.subr.bf16.mxu0 %v1116
    %1779 = vmatpush1.bf16.msra.mxu0 %v1115
    %1780 = vmatprep.subr.bf16.mxu0 %v1122
    %1781 = vmatpush1.bf16.msra.mxu0 %v1121
    %1782 = vmatprep.subr.bf16.mxu0 %v1128
    %1783 = vmatpush1.bf16.msra.mxu0 %v1127
    %1784 = vmatprep.subr.bf16.mxu0 %v1134
    %1785 = vmatpush1.bf16.msra.mxu0 %v1133
    %1786 = vmatprep.subr.bf16.mxu0 %v1140
    %1787 = vmatpush1.bf16.msra.mxu0 %v1139
    %1788 = vmatprep.subr.bf16.mxu0 %v1146
    %1789 = vmatpush1.bf16.msra.mxu0 %v1145
    %1790 = vmatprep.subr.bf16.mxu0 %v1152
    %1791 = vmatpush1.bf16.msra.mxu0 %v1151
    %1792 = vmatprep.subr.bf16.mxu0 %v1158
    %1793 = vmatpush1.bf16.msra.mxu0 %v1157
    %1794 = vmatprep.subr.bf16.mxu0 %v1164
    %1795 = vmatpush1.bf16.msra.mxu0 %v1163
    %1796 = vmatprep.subr.bf16.mxu0 %v1170
    %1797 = vmatpush1.bf16.msra.mxu0 %v1169
    %1798 = vmatprep.subr.bf16.mxu0 %v1176
    %1799 = vmatpush1.bf16.msra.mxu0 %v1175
    %1800 = vmatprep.subr.bf16.mxu0 %v1182
    %1801 = vmatpush1.bf16.msra.mxu0 %v1181
    %1802 = vmatprep.subr.bf16.mxu0 %v1188
    %1803 = vmatpush1.bf16.msra.mxu0 %v1187
    %1804 = vmatprep.subr.bf16.mxu0 %v1194
    %1805 = vmatpush1.bf16.msra.mxu0 %v1193
    %1806 = vmatprep.subr.bf16.mxu0 %v1200
    %1807 = vmatpush1.bf16.msra.mxu0 %v1199
    %1808 = vmatprep.subr.bf16.mxu0 %v1206
    %1809 = vmatpush1.bf16.msra.mxu0 %v1205
    %1810 = vmatprep.mubr.bf16.mxu0 %v1775
    %1811 = vmatmul.mubr.bf16.gmra.mrb[0].mxu0 %v1774
    %v1812 = vpop.f32.mrb[0].mxu0
    %v1813 = vadd.f32 0.0, %v1812
    %v1814 = vpop.f32.mrb[0].mxu0
    %v1815 = vadd.f32 0.0, %v1814
    %v1816 = vpop.f32.mrb[0].mxu0
    %v1817 = vpop.f32.mrb[0].mxu0
    %1818 = vdwg.mxu0
    %1819 = vmatprep.subr.bf16.mxu0 %v1118
    %1820 = vmatpush1.bf16.msra.mxu0 %v1117
    %1821 = vmatprep.subr.bf16.mxu0 %v1124
    %1822 = vmatpush1.bf16.msra.mxu0 %v1123
    %1823 = vmatprep.subr.bf16.mxu0 %v1130
    %1824 = vmatpush1.bf16.msra.mxu0 %v1129
    %1825 = vmatprep.subr.bf16.mxu0 %v1136
    %1826 = vmatpush1.bf16.msra.mxu0 %v1135
    %1827 = vmatprep.subr.bf16.mxu0 %v1142
    %1828 = vmatpush1.bf16.msra.mxu0 %v1141
    %1829 = vmatprep.subr.bf16.mxu0 %v1148
    %1830 = vmatpush1.bf16.msra.mxu0 %v1147
    %1831 = vmatprep.subr.bf16.mxu0 %v1154
    %1832 = vmatpush1.bf16.msra.mxu0 %v1153
    %1833 = vmatprep.subr.bf16.mxu0 %v1160
    %1834 = vmatpush1.bf16.msra.mxu0 %v1159
    %1835 = vmatprep.subr.bf16.mxu0 %v1166
    %1836 = vmatpush1.bf16.msra.mxu0 %v1165
    %1837 = vmatprep.subr.bf16.mxu0 %v1172
    %1838 = vmatpush1.bf16.msra.mxu0 %v1171
    %1839 = vmatprep.subr.bf16.mxu0 %v1178
    %1840 = vmatpush1.bf16.msra.mxu0 %v1177
    %1841 = vmatprep.subr.bf16.mxu0 %v1184
    %1842 = vmatpush1.bf16.msra.mxu0 %v1183
    %1843 = vmatprep.subr.bf16.mxu0 %v1190
    %1844 = vmatpush1.bf16.msra.mxu0 %v1189
    %1845 = vmatprep.subr.bf16.mxu0 %v1196
    %1846 = vmatpush1.bf16.msra.mxu0 %v1195
    %1847 = vmatprep.subr.bf16.mxu0 %v1202
    %1848 = vmatpush1.bf16.msra.mxu0 %v1201
    %1849 = vmatprep.subr.bf16.mxu0 %v1208
    %1850 = vmatpush1.bf16.msra.mxu0 %v1207
    %1851 = vmatprep.mubr.bf16.mxu0 %v1775
    %1852 = vmatmul.mubr.bf16.gmra.mrb[0].mxu0 %v1774
    %v1853 = vpop.f32.mrb[0].mxu0
    %v1854 = vadd.f32 0.0, %v1853
    %v1855 = vpop.f32.mrb[0].mxu0
    %v1856 = vadd.f32 0.0, %v1855
    %v1857 = vpop.f32.mrb[0].mxu0
    %v1858 = vpop.f32.mrb[0].mxu0
    %1859 = vdwg.mxu0
    %1860 = vmatprep.subr.bf16.mxu0 %v1120
    %1861 = vmatpush1.bf16.msra.mxu0 %v1119
    %1862 = vmatprep.subr.bf16.mxu0 %v1126
    %1863 = vmatpush1.bf16.msra.mxu0 %v1125
    %1864 = vmatprep.subr.bf16.mxu0 %v1132
    %1865 = vmatpush1.bf16.msra.mxu0 %v1131
    %1866 = vmatprep.subr.bf16.mxu0 %v1138
    %1867 = vmatpush1.bf16.msra.mxu0 %v1137
    %1868 = vmatprep.subr.bf16.mxu0 %v1144
    %1869 = vmatpush1.bf16.msra.mxu0 %v1143
    %1870 = vmatprep.subr.bf16.mxu0 %v1150
    %1871 = vmatpush1.bf16.msra.mxu0 %v1149
    %1872 = vmatprep.subr.bf16.mxu0 %v1156
    %1873 = vmatpush1.bf16.msra.mxu0 %v1155
    %1874 = vmatprep.subr.bf16.mxu0 %v1162
    %1875 = vmatpush1.bf16.msra.mxu0 %v1161
    %1876 = vmatprep.subr.bf16.mxu0 %v1168
    %1877 = vmatpush1.bf16.msra.mxu0 %v1167
    %1878 = vmatprep.subr.bf16.mxu0 %v1174
    %1879 = vmatpush1.bf16.msra.mxu0 %v1173
    %1880 = vmatprep.subr.bf16.mxu0 %v1180
    %1881 = vmatpush1.bf16.msra.mxu0 %v1179
    %1882 = vmatprep.subr.bf16.mxu0 %v1186
    %1883 = vmatpush1.bf16.msra.mxu0 %v1185
    %1884 = vmatprep.subr.bf16.mxu0 %v1192
    %1885 = vmatpush1.bf16.msra.mxu0 %v1191
    %1886 = vmatprep.subr.bf16.mxu0 %v1198
    %1887 = vmatpush1.bf16.msra.mxu0 %v1197
    %1888 = vmatprep.subr.bf16.mxu0 %v1204
    %1889 = vmatpush1.bf16.msra.mxu0 %v1203
    %1890 = vmatprep.subr.bf16.mxu0 %v1210
    %1891 = vmatpush1.bf16.msra.mxu0 %v1209
    %1892 = vmatprep.mubr.bf16.mxu0 %v1775
    %1893 = vmatmul.mubr.bf16.gmra.mrb[0].mxu0 %v1774
    %v1894 = vpop.f32.mrb[0].mxu0
    %v1895 = vadd.f32 0.0, %v1894
    %v1896 = vpop.f32.mrb[0].mxu0
    %v1897 = vadd.f32 0.0, %v1896
    %v1898 = vpop.f32.mrb[0].mxu0
    %v1899 = vpop.f32.mrb[0].mxu0
    %1900 = vdwg.mxu0
    %v1903 = vrot.slane %v1813, 2
    %v1904 = vrot.slane %v1815, 2
    %v1907 = vadd.f32 %v1005, %v1903
    %v1908 = vadd.f32 %v1007, %v1904
    %v1909 = vxor.u32 %v1907, 2147483648
    %v1910 = vxor.u32 %v1908, 2147483648
    %v1911 = vmul.f32 %v1909, 1.442695
    %v1912 = vpow.pop %v1911
    %v1913 = vmul.f32 %v1910, 1.442695
    %v1914 = vpow.pop %v1913
    %v1915 = vadd.f32 %v1912, 1.0
    %v1916 = vadd.f32 %v1914, 1.0
    %v1917 = vrcp.pop %v1915
    %v1918 = vmul.f32 1.0, %v1917
    %v1919 = vrcp.pop %v1916
    %v1920 = vmul.f32 1.0, %v1919
    %v1923 = vrot.slane %v1854, 2
    %v1924 = vrot.slane %v1856, 2
    %v1927 = vadd.f32 %v1048, %v1923
    %v1928 = vadd.f32 %v1050, %v1924
    %v1929 = vxor.u32 %v1927, 2147483648
    %v1930 = vxor.u32 %v1928, 2147483648
    %v1931 = vmul.f32 %v1929, 1.442695
    %v1932 = vpow.pop %v1931
    %v1933 = vmul.f32 %v1930, 1.442695
    %v1934 = vpow.pop %v1933
    %v1935 = vadd.f32 %v1932, 1.0
    %v1936 = vadd.f32 %v1934, 1.0
    %v1937 = vrcp.pop %v1935
    %v1938 = vmul.f32 1.0, %v1937
    %v1939 = vrcp.pop %v1936
    %v1940 = vmul.f32 1.0, %v1939
    %v1941 = vadd.f32 %v1895, %v1104
    %v1942 = vadd.f32 %v1897, %v1108
    %v1945 = vrot.slane %v1941, 2
    %v1946 = vrot.slane %v1942, 2
    %v1949 = vmul.f32 %v1918, %v1945
    %v1950 = vmul.f32 %v1920, %v1946
    %v1951 = vadd.f32 %v1091, %v1949
    %v1952 = vadd.f32 %v1093, %v1950
    %v1953 = vtanh.pop %v1951
    %v1954 = vtanh.pop %v1952
    %v1955 = vsub.f32 1.0, %v1938
    %v1956 = vsub.f32 1.0, %v1940
    %v1957 = vmul.f32 %v1955, %v1953
    %v1958 = vmul.f32 %v1956, %v1954
    %v1961 = vrot.slane %v1768, 6
    %v1962 = vrot.slane %v1769, 6
    %v1965 = vmul.f32 %v1938, %v1961
    %v1966 = vmul.f32 %v1940, %v1962
    %v1967 = vadd.f32 %v1957, %v1965
    %v1968 = vadd.f32 %v1958, %v1966
    %v1969 = vpack.c.bf16 %v1967, %v1967
    %v1970 = vpack.c.bf16 %v1968, %v1968
    %v1973 = vrot.slane %v1969, 3
    %v1974 = vrot.slane %v1970, 3
    %1977 = vmatprep.subr.bf16.mxu0 %v1116
    %1978 = vmatpush1.bf16.msra.mxu0 %v1115
    %1979 = vmatprep.subr.bf16.mxu0 %v1122
    %1980 = vmatpush1.bf16.msra.mxu0 %v1121
    %1981 = vmatprep.subr.bf16.mxu0 %v1128
    %1982 = vmatpush1.bf16.msra.mxu0 %v1127
    %1983 = vmatprep.subr.bf16.mxu0 %v1134
    %1984 = vmatpush1.bf16.msra.mxu0 %v1133
    %1985 = vmatprep.subr.bf16.mxu0 %v1140
    %1986 = vmatpush1.bf16.msra.mxu0 %v1139
    %1987 = vmatprep.subr.bf16.mxu0 %v1146
    %1988 = vmatpush1.bf16.msra.mxu0 %v1145
    %1989 = vmatprep.subr.bf16.mxu0 %v1152
    %1990 = vmatpush1.bf16.msra.mxu0 %v1151
    %1991 = vmatprep.subr.bf16.mxu0 %v1158
    %1992 = vmatpush1.bf16.msra.mxu0 %v1157
    %1993 = vmatprep.subr.bf16.mxu0 %v1164
    %1994 = vmatpush1.bf16.msra.mxu0 %v1163
    %1995 = vmatprep.subr.bf16.mxu0 %v1170
    %1996 = vmatpush1.bf16.msra.mxu0 %v1169
    %1997 = vmatprep.subr.bf16.mxu0 %v1176
    %1998 = vmatpush1.bf16.msra.mxu0 %v1175
    %1999 = vmatprep.subr.bf16.mxu0 %v1182
    %2000 = vmatpush1.bf16.msra.mxu0 %v1181
    %2001 = vmatprep.subr.bf16.mxu0 %v1188
    %2002 = vmatpush1.bf16.msra.mxu0 %v1187
    %2003 = vmatprep.subr.bf16.mxu0 %v1194
    %2004 = vmatpush1.bf16.msra.mxu0 %v1193
    %2005 = vmatprep.subr.bf16.mxu0 %v1200
    %2006 = vmatpush1.bf16.msra.mxu0 %v1199
    %2007 = vmatprep.subr.bf16.mxu0 %v1206
    %2008 = vmatpush1.bf16.msra.mxu0 %v1205
    %2009 = vmatprep.mubr.bf16.mxu0 %v1974
    %2010 = vmatmul.mubr.bf16.gmra.mrb[0].mxu0 %v1973
    %v2011 = vpop.f32.mrb[0].mxu0
    %v2012 = vadd.f32 0.0, %v2011
    %v2013 = vpop.f32.mrb[0].mxu0
    %v2014 = vadd.f32 0.0, %v2013
    %v2015 = vpop.f32.mrb[0].mxu0
    %v2016 = vpop.f32.mrb[0].mxu0
    %2017 = vdwg.mxu0
    %2018 = vmatprep.subr.bf16.mxu0 %v1118
    %2019 = vmatpush1.bf16.msra.mxu0 %v1117
    %2020 = vmatprep.subr.bf16.mxu0 %v1124
    %2021 = vmatpush1.bf16.msra.mxu0 %v1123
    %2022 = vmatprep.subr.bf16.mxu0 %v1130
    %2023 = vmatpush1.bf16.msra.mxu0 %v1129
    %2024 = vmatprep.subr.bf16.mxu0 %v1136
    %2025 = vmatpush1.bf16.msra.mxu0 %v1135
    %2026 = vmatprep.subr.bf16.mxu0 %v1142
    %2027 = vmatpush1.bf16.msra.mxu0 %v1141
    %2028 = vmatprep.subr.bf16.mxu0 %v1148
    %2029 = vmatpush1.bf16.msra.mxu0 %v1147
    %2030 = vmatprep.subr.bf16.mxu0 %v1154
    %2031 = vmatpush1.bf16.msra.mxu0 %v1153
    %2032 = vmatprep.subr.bf16.mxu0 %v1160
    %2033 = vmatpush1.bf16.msra.mxu0 %v1159
    %2034 = vmatprep.subr.bf16.mxu0 %v1166
    %2035 = vmatpush1.bf16.msra.mxu0 %v1165
    %2036 = vmatprep.subr.bf16.mxu0 %v1172
    %2037 = vmatpush1.bf16.msra.mxu0 %v1171
    %2038 = vmatprep.subr.bf16.mxu0 %v1178
    %2039 = vmatpush1.bf16.msra.mxu0 %v1177
    %2040 = vmatprep.subr.bf16.mxu0 %v1184
    %2041 = vmatpush1.bf16.msra.mxu0 %v1183
    %2042 = vmatprep.subr.bf16.mxu0 %v1190
    %2043 = vmatpush1.bf16.msra.mxu0 %v1189
    %2044 = vmatprep.subr.bf16.mxu0 %v1196
    %2045 = vmatpush1.bf16.msra.mxu0 %v1195
    %2046 = vmatprep.subr.bf16.mxu0 %v1202
    %2047 = vmatpush1.bf16.msra.mxu0 %v1201
    %2048 = vmatprep.subr.bf16.mxu0 %v1208
    %2049 = vmatpush1.bf16.msra.mxu0 %v1207
    %2050 = vmatprep.mubr.bf16.mxu0 %v1974
    %2051 = vmatmul.mubr.bf16.gmra.mrb[0].mxu0 %v1973
    %v2052 = vpop.f32.mrb[0].mxu0
    %v2053 = vadd.f32 0.0, %v2052
    %v2054 = vpop.f32.mrb[0].mxu0
    %v2055 = vadd.f32 0.0, %v2054
    %v2056 = vpop.f32.mrb[0].mxu0
    %v2057 = vpop.f32.mrb[0].mxu0
    %2058 = vdwg.mxu0
    %2059 = vmatprep.subr.bf16.mxu0 %v1120
    %2060 = vmatpush1.bf16.msra.mxu0 %v1119
    %2061 = vmatprep.subr.bf16.mxu0 %v1126
    %2062 = vmatpush1.bf16.msra.mxu0 %v1125
    %2063 = vmatprep.subr.bf16.mxu0 %v1132
    %2064 = vmatpush1.bf16.msra.mxu0 %v1131
    %2065 = vmatprep.subr.bf16.mxu0 %v1138
    %2066 = vmatpush1.bf16.msra.mxu0 %v1137
    %2067 = vmatprep.subr.bf16.mxu0 %v1144
    %2068 = vmatpush1.bf16.msra.mxu0 %v1143
    %2069 = vmatprep.subr.bf16.mxu0 %v1150
    %2070 = vmatpush1.bf16.msra.mxu0 %v1149
    %2071 = vmatprep.subr.bf16.mxu0 %v1156
    %2072 = vmatpush1.bf16.msra.mxu0 %v1155
    %2073 = vmatprep.subr.bf16.mxu0 %v1162
    %2074 = vmatpush1.bf16.msra.mxu0 %v1161
    %2075 = vmatprep.subr.bf16.mxu0 %v1168
    %2076 = vmatpush1.bf16.msra.mxu0 %v1167
    %2077 = vmatprep.subr.bf16.mxu0 %v1174
    %2078 = vmatpush1.bf16.msra.mxu0 %v1173
    %2079 = vmatprep.subr.bf16.mxu0 %v1180
    %2080 = vmatpush1.bf16.msra.mxu0 %v1179
    %2081 = vmatprep.subr.bf16.mxu0 %v1186
    %2082 = vmatpush1.bf16.msra.mxu0 %v1185
    %2083 = vmatprep.subr.bf16.mxu0 %v1192
    %2084 = vmatpush1.bf16.msra.mxu0 %v1191
    %2085 = vmatprep.subr.bf16.mxu0 %v1198
    %2086 = vmatpush1.bf16.msra.mxu0 %v1197
    %2087 = vmatprep.subr.bf16.mxu0 %v1204
    %2088 = vmatpush1.bf16.msra.mxu0 %v1203
    %2089 = vmatprep.subr.bf16.mxu0 %v1210
    %2090 = vmatpush1.bf16.msra.mxu0 %v1209
    %2091 = vmatprep.mubr.bf16.mxu0 %v1974
    %2092 = vmatmul.mubr.bf16.gmra.mrb[0].mxu0 %v1973
    %v2093 = vpop.f32.mrb[0].mxu0
    %v2094 = vadd.f32 0.0, %v2093
    %v2095 = vpop.f32.mrb[0].mxu0
    %v2096 = vadd.f32 0.0, %v2095
    %v2097 = vpop.f32.mrb[0].mxu0
    %v2098 = vpop.f32.mrb[0].mxu0
    %2099 = vdwg.mxu0
    %v2100 = vadd.f32 %v1009, %v2012
    %v2101 = vadd.f32 %v1011, %v2014
    %v2102 = vxor.u32 %v2100, 2147483648
    %v2103 = vxor.u32 %v2101, 2147483648
    %v2104 = vmul.f32 %v2102, 1.442695
    %v2105 = vpow.pop %v2104
    %v2106 = vmul.f32 %v2103, 1.442695
    %v2107 = vpow.pop %v2106
    %v2108 = vadd.f32 %v2105, 1.0
    %v2109 = vadd.f32 %v2107, 1.0
    %v2110 = vrcp.pop %v2108
    %v2111 = vmul.f32 1.0, %v2110
    %v2112 = vrcp.pop %v2109
    %v2113 = vmul.f32 1.0, %v2112
    %v2114 = vadd.f32 %v1052, %v2053
    %v2115 = vadd.f32 %v1054, %v2055
    %v2116 = vxor.u32 %v2114, 2147483648
    %v2117 = vxor.u32 %v2115, 2147483648
    %v2118 = vmul.f32 %v2116, 1.442695
    %v2119 = vpow.pop %v2118
    %v2120 = vmul.f32 %v2117, 1.442695
    %v2121 = vpow.pop %v2120
    %v2122 = vadd.f32 %v2119, 1.0
    %v2123 = vadd.f32 %v2121, 1.0
    %v2124 = vrcp.pop %v2122
    %v2125 = vmul.f32 1.0, %v2124
    %v2126 = vrcp.pop %v2123
    %v2127 = vmul.f32 1.0, %v2126
    %v2128 = vadd.f32 %v2094, %v1104
    %v2129 = vadd.f32 %v2096, %v1108
    %v2130 = vmul.f32 %v2111, %v2128
    %v2131 = vmul.f32 %v2113, %v2129
    %v2132 = vadd.f32 %v1095, %v2130
    %v2133 = vadd.f32 %v1097, %v2131
    %v2134 = vtanh.pop %v2132
    %v2135 = vtanh.pop %v2133
    %v2136 = vsub.f32 1.0, %v2125
    %v2137 = vsub.f32 1.0, %v2127
    %v2138 = vmul.f32 %v2136, %v2134
    %v2139 = vmul.f32 %v2137, %v2135
    %v2142 = vrot.slane %v1967, 6
    %v2143 = vrot.slane %v1968, 6
    %v2146 = vmul.f32 %v2125, %v2142
    %v2147 = vmul.f32 %v2127, %v2143
    %v2148 = vadd.f32 %v2138, %v2146
    %v2149 = vadd.f32 %v2139, %v2147
    %v2150 = vpack.c.bf16 %v2148, %v2148
    %v2151 = vpack.c.bf16 %v2149, %v2149
    %2152 = vmatprep.subr.bf16.mxu0 %v1116
    %2153 = vmatpush1.bf16.msra.mxu0 %v1115
    %2154 = vmatprep.subr.bf16.mxu0 %v1122
    %2155 = vmatpush1.bf16.msra.mxu0 %v1121
    %2156 = vmatprep.subr.bf16.mxu0 %v1128
    %2157 = vmatpush1.bf16.msra.mxu0 %v1127
    %2158 = vmatprep.subr.bf16.mxu0 %v1134
    %2159 = vmatpush1.bf16.msra.mxu0 %v1133
    %2160 = vmatprep.subr.bf16.mxu0 %v1140
    %2161 = vmatpush1.bf16.msra.mxu0 %v1139
    %2162 = vmatprep.subr.bf16.mxu0 %v1146
    %2163 = vmatpush1.bf16.msra.mxu0 %v1145
    %2164 = vmatprep.subr.bf16.mxu0 %v1152
    %2165 = vmatpush1.bf16.msra.mxu0 %v1151
    %2166 = vmatprep.subr.bf16.mxu0 %v1158
    %2167 = vmatpush1.bf16.msra.mxu0 %v1157
    %2168 = vmatprep.subr.bf16.mxu0 %v1164
    %2169 = vmatpush1.bf16.msra.mxu0 %v1163
    %2170 = vmatprep.subr.bf16.mxu0 %v1170
    %2171 = vmatpush1.bf16.msra.mxu0 %v1169
    %2172 = vmatprep.subr.bf16.mxu0 %v1176
    %2173 = vmatpush1.bf16.msra.mxu0 %v1175
    %2174 = vmatprep.subr.bf16.mxu0 %v1182
    %2175 = vmatpush1.bf16.msra.mxu0 %v1181
    %2176 = vmatprep.subr.bf16.mxu0 %v1188
    %2177 = vmatpush1.bf16.msra.mxu0 %v1187
    %2178 = vmatprep.subr.bf16.mxu0 %v1194
    %2179 = vmatpush1.bf16.msra.mxu0 %v1193
    %2180 = vmatprep.subr.bf16.mxu0 %v1200
    %2181 = vmatpush1.bf16.msra.mxu0 %v1199
    %2182 = vmatprep.subr.bf16.mxu0 %v1206
    %2183 = vmatpush1.bf16.msra.mxu0 %v1205
    %2184 = vmatprep.mubr.bf16.mxu0 %v2151
    %2185 = vmatmul.mubr.bf16.gmra.mrb[0].mxu0 %v2150
    %v2186 = vpop.f32.mrb[0].mxu0
    %v2187 = vadd.f32 0.0, %v2186
    %v2188 = vpop.f32.mrb[0].mxu0
    %v2189 = vadd.f32 0.0, %v2188
    %v2190 = vpop.f32.mrb[0].mxu0
    %v2191 = vpop.f32.mrb[0].mxu0
    %2192 = vdwg.mxu0
    %2193 = vmatprep.subr.bf16.mxu0 %v1118
    %2194 = vmatpush1.bf16.msra.mxu0 %v1117
    %2195 = vmatprep.subr.bf16.mxu0 %v1124
    %2196 = vmatpush1.bf16.msra.mxu0 %v1123
    %2197 = vmatprep.subr.bf16.mxu0 %v1130
    %2198 = vmatpush1.bf16.msra.mxu0 %v1129
    %2199 = vmatprep.subr.bf16.mxu0 %v1136
    %2200 = vmatpush1.bf16.msra.mxu0 %v1135
    %2201 = vmatprep.subr.bf16.mxu0 %v1142
    %2202 = vmatpush1.bf16.msra.mxu0 %v1141
    %2203 = vmatprep.subr.bf16.mxu0 %v1148
    %2204 = vmatpush1.bf16.msra.mxu0 %v1147
    %2205 = vmatprep.subr.bf16.mxu0 %v1154
    %2206 = vmatpush1.bf16.msra.mxu0 %v1153
    %2207 = vmatprep.subr.bf16.mxu0 %v1160
    %2208 = vmatpush1.bf16.msra.mxu0 %v1159
    %2209 = vmatprep.subr.bf16.mxu0 %v1166
    %2210 = vmatpush1.bf16.msra.mxu0 %v1165
    %2211 = vmatprep.subr.bf16.mxu0 %v1172
    %2212 = vmatpush1.bf16.msra.mxu0 %v1171
    %2213 = vmatprep.subr.bf16.mxu0 %v1178
    %2214 = vmatpush1.bf16.msra.mxu0 %v1177
    %2215 = vmatprep.subr.bf16.mxu0 %v1184
    %2216 = vmatpush1.bf16.msra.mxu0 %v1183
    %2217 = vmatprep.subr.bf16.mxu0 %v1190
    %2218 = vmatpush1.bf16.msra.mxu0 %v1189
    %2219 = vmatprep.subr.bf16.mxu0 %v1196
    %2220 = vmatpush1.bf16.msra.mxu0 %v1195
    %2221 = vmatprep.subr.bf16.mxu0 %v1202
    %2222 = vmatpush1.bf16.msra.mxu0 %v1201
    %2223 = vmatprep.subr.bf16.mxu0 %v1208
    %2224 = vmatpush1.bf16.msra.mxu0 %v1207
    %2225 = vmatprep.mubr.bf16.mxu0 %v2151
    %2226 = vmatmul.mubr.bf16.gmra.mrb[0].mxu0 %v2150
    %v2227 = vpop.f32.mrb[0].mxu0
    %v2228 = vadd.f32 0.0, %v2227
    %v2229 = vpop.f32.mrb[0].mxu0
    %v2230 = vadd.f32 0.0, %v2229
    %v2231 = vpop.f32.mrb[0].mxu0
    %v2232 = vpop.f32.mrb[0].mxu0
    %2233 = vdwg.mxu0
    %2234 = vmatprep.subr.bf16.mxu0 %v1120
    %2235 = vmatpush1.bf16.msra.mxu0 %v1119
    %2236 = vmatprep.subr.bf16.mxu0 %v1126
    %2237 = vmatpush1.bf16.msra.mxu0 %v1125
    %2238 = vmatprep.subr.bf16.mxu0 %v1132
    %2239 = vmatpush1.bf16.msra.mxu0 %v1131
    %2240 = vmatprep.subr.bf16.mxu0 %v1138
    %2241 = vmatpush1.bf16.msra.mxu0 %v1137
    %2242 = vmatprep.subr.bf16.mxu0 %v1144
    %2243 = vmatpush1.bf16.msra.mxu0 %v1143
    %2244 = vmatprep.subr.bf16.mxu0 %v1150
    %2245 = vmatpush1.bf16.msra.mxu0 %v1149
    %2246 = vmatprep.subr.bf16.mxu0 %v1156
    %2247 = vmatpush1.bf16.msra.mxu0 %v1155
    %2248 = vmatprep.subr.bf16.mxu0 %v1162
    %2249 = vmatpush1.bf16.msra.mxu0 %v1161
    %2250 = vmatprep.subr.bf16.mxu0 %v1168
    %2251 = vmatpush1.bf16.msra.mxu0 %v1167
    %2252 = vmatprep.subr.bf16.mxu0 %v1174
    %2253 = vmatpush1.bf16.msra.mxu0 %v1173
    %2254 = vmatprep.subr.bf16.mxu0 %v1180
    %2255 = vmatpush1.bf16.msra.mxu0 %v1179
    %2256 = vmatprep.subr.bf16.mxu0 %v1186
    %2257 = vmatpush1.bf16.msra.mxu0 %v1185
    %2258 = vmatprep.subr.bf16.mxu0 %v1192
    %2259 = vmatpush1.bf16.msra.mxu0 %v1191
    %2260 = vmatprep.subr.bf16.mxu0 %v1198
    %2261 = vmatpush1.bf16.msra.mxu0 %v1197
    %2262 = vmatprep.subr.bf16.mxu0 %v1204
    %2263 = vmatpush1.bf16.msra.mxu0 %v1203
    %2264 = vmatprep.subr.bf16.mxu0 %v1210
    %2265 = vmatpush1.bf16.msra.mxu0 %v1209
    %2266 = vmatprep.mubr.bf16.mxu0 %v2151
    %2267 = vmatmul.mubr.bf16.gmra.mrb[0].mxu0 %v2150
    %v2268 = vpop.f32.mrb[0].mxu0
    %v2269 = vadd.f32 0.0, %v2268
    %v2270 = vpop.f32.mrb[0].mxu0
    %v2271 = vadd.f32 0.0, %v2270
    %v2272 = vpop.f32.mrb[0].mxu0
    %v2273 = vpop.f32.mrb[0].mxu0
    %2274 = vdwg.mxu0
    %v2277 = vrot.slane %v2187, 6
    %v2278 = vrot.slane %v2189, 6
    %v2281 = vadd.f32 %v1009, %v2277
    %v2282 = vadd.f32 %v1011, %v2278
    %v2283 = vxor.u32 %v2281, 2147483648
    %v2284 = vxor.u32 %v2282, 2147483648
    %v2285 = vmul.f32 %v2283, 1.442695
    %v2286 = vpow.pop %v2285
    %v2287 = vmul.f32 %v2284, 1.442695
    %v2288 = vpow.pop %v2287
    %v2289 = vadd.f32 %v2286, 1.0
    %v2290 = vadd.f32 %v2288, 1.0
    %v2291 = vrcp.pop %v2289
    %v2292 = vmul.f32 1.0, %v2291
    %v2293 = vrcp.pop %v2290
    %v2294 = vmul.f32 1.0, %v2293
    %v2297 = vrot.slane %v2228, 6
    %v2298 = vrot.slane %v2230, 6
    %v2301 = vadd.f32 %v1052, %v2297
    %v2302 = vadd.f32 %v1054, %v2298
    %v2303 = vxor.u32 %v2301, 2147483648
    %v2304 = vxor.u32 %v2302, 2147483648
    %v2305 = vmul.f32 %v2303, 1.442695
    %v2306 = vpow.pop %v2305
    %v2307 = vmul.f32 %v2304, 1.442695
    %v2308 = vpow.pop %v2307
    %v2309 = vadd.f32 %v2306, 1.0
    %v2310 = vadd.f32 %v2308, 1.0
    %v2311 = vrcp.pop %v2309
    %v2312 = vmul.f32 1.0, %v2311
    %v2313 = vrcp.pop %v2310
    %v2314 = vmul.f32 1.0, %v2313
    %v2315 = vadd.f32 %v2269, %v1104
    %v2316 = vadd.f32 %v2271, %v1108
    %v2319 = vrot.slane %v2315, 6
    %v2320 = vrot.slane %v2316, 6
    %v2323 = vmul.f32 %v2292, %v2319
    %v2324 = vmul.f32 %v2294, %v2320
    %v2325 = vadd.f32 %v1095, %v2323
    %v2326 = vadd.f32 %v1097, %v2324
    %v2327 = vtanh.pop %v2325
    %v2328 = vtanh.pop %v2326
    %v2329 = vsub.f32 1.0, %v2312
    %v2330 = vsub.f32 1.0, %v2314
    %v2331 = vmul.f32 %v2329, %v2327
    %v2332 = vmul.f32 %v2330, %v2328
    %v2335 = vrot.slane %v2148, 6
    %v2336 = vrot.slane %v2149, 6
    %v2339 = vmul.f32 %v2312, %v2335
    %v2340 = vmul.f32 %v2314, %v2336
    %v2341 = vadd.f32 %v2331, %v2339
    %v2342 = vadd.f32 %v2332, %v2340
    %v2343 = vpack.c.bf16 %v2341, %v2341
    %v2344 = vpack.c.bf16 %v2342, %v2342
    %v2347 = vrot.slane %v2343, 1
    %v2348 = vrot.slane %v2344, 1
    %2351 = vmatprep.subr.bf16.mxu0 %v1116
    %2352 = vmatpush1.bf16.msra.mxu0 %v1115
    %2353 = vmatprep.subr.bf16.mxu0 %v1122
    %2354 = vmatpush1.bf16.msra.mxu0 %v1121
    %2355 = vmatprep.subr.bf16.mxu0 %v1128
    %2356 = vmatpush1.bf16.msra.mxu0 %v1127
    %2357 = vmatprep.subr.bf16.mxu0 %v1134
    %2358 = vmatpush1.bf16.msra.mxu0 %v1133
    %2359 = vmatprep.subr.bf16.mxu0 %v1140
    %2360 = vmatpush1.bf16.msra.mxu0 %v1139
    %2361 = vmatprep.subr.bf16.mxu0 %v1146
    %2362 = vmatpush1.bf16.msra.mxu0 %v1145
    %2363 = vmatprep.subr.bf16.mxu0 %v1152
    %2364 = vmatpush1.bf16.msra.mxu0 %v1151
    %2365 = vmatprep.subr.bf16.mxu0 %v1158
    %2366 = vmatpush1.bf16.msra.mxu0 %v1157
    %2367 = vmatprep.subr.bf16.mxu0 %v1164
    %2368 = vmatpush1.bf16.msra.mxu0 %v1163
    %2369 = vmatprep.subr.bf16.mxu0 %v1170
    %2370 = vmatpush1.bf16.msra.mxu0 %v1169
    %2371 = vmatprep.subr.bf16.mxu0 %v1176
    %2372 = vmatpush1.bf16.msra.mxu0 %v1175
    %2373 = vmatprep.subr.bf16.mxu0 %v1182
    %2374 = vmatpush1.bf16.msra.mxu0 %v1181
    %2375 = vmatprep.subr.bf16.mxu0 %v1188
    %2376 = vmatpush1.bf16.msra.mxu0 %v1187
    %2377 = vmatprep.subr.bf16.mxu0 %v1194
    %2378 = vmatpush1.bf16.msra.mxu0 %v1193
    %2379 = vmatprep.subr.bf16.mxu0 %v1200
    %2380 = vmatpush1.bf16.msra.mxu0 %v1199
    %2381 = vmatprep.subr.bf16.mxu0 %v1206
    %2382 = vmatpush1.bf16.msra.mxu0 %v1205
    %2383 = vmatprep.mubr.bf16.mxu0 %v2348
    %2384 = vmatmul.mubr.bf16.gmra.mrb[0].mxu0 %v2347
    %v2385 = vpop.f32.mrb[0].mxu0
    %v2386 = vadd.f32 0.0, %v2385
    %v2387 = vpop.f32.mrb[0].mxu0
    %v2388 = vadd.f32 0.0, %v2387
    %v2389 = vpop.f32.mrb[0].mxu0
    %v2390 = vpop.f32.mrb[0].mxu0
    %2391 = vdwg.mxu0
    %2392 = vmatprep.subr.bf16.mxu0 %v1118
    %2393 = vmatpush1.bf16.msra.mxu0 %v1117
    %2394 = vmatprep.subr.bf16.mxu0 %v1124
    %2395 = vmatpush1.bf16.msra.mxu0 %v1123
    %2396 = vmatprep.subr.bf16.mxu0 %v1130
    %2397 = vmatpush1.bf16.msra.mxu0 %v1129
    %2398 = vmatprep.subr.bf16.mxu0 %v1136
    %2399 = vmatpush1.bf16.msra.mxu0 %v1135
    %2400 = vmatprep.subr.bf16.mxu0 %v1142
    %2401 = vmatpush1.bf16.msra.mxu0 %v1141
    %2402 = vmatprep.subr.bf16.mxu0 %v1148
    %2403 = vmatpush1.bf16.msra.mxu0 %v1147
    %2404 = vmatprep.subr.bf16.mxu0 %v1154
    %2405 = vmatpush1.bf16.msra.mxu0 %v1153
    %2406 = vmatprep.subr.bf16.mxu0 %v1160
    %2407 = vmatpush1.bf16.msra.mxu0 %v1159
    %2408 = vmatprep.subr.bf16.mxu0 %v1166
    %2409 = vmatpush1.bf16.msra.mxu0 %v1165
    %2410 = vmatprep.subr.bf16.mxu0 %v1172
    %2411 = vmatpush1.bf16.msra.mxu0 %v1171
    %2412 = vmatprep.subr.bf16.mxu0 %v1178
    %2413 = vmatpush1.bf16.msra.mxu0 %v1177
    %2414 = vmatprep.subr.bf16.mxu0 %v1184
    %2415 = vmatpush1.bf16.msra.mxu0 %v1183
    %2416 = vmatprep.subr.bf16.mxu0 %v1190
    %2417 = vmatpush1.bf16.msra.mxu0 %v1189
    %2418 = vmatprep.subr.bf16.mxu0 %v1196
    %2419 = vmatpush1.bf16.msra.mxu0 %v1195
    %2420 = vmatprep.subr.bf16.mxu0 %v1202
    %2421 = vmatpush1.bf16.msra.mxu0 %v1201
    %2422 = vmatprep.subr.bf16.mxu0 %v1208
    %2423 = vmatpush1.bf16.msra.mxu0 %v1207
    %2424 = vmatprep.mubr.bf16.mxu0 %v2348
    %2425 = vmatmul.mubr.bf16.gmra.mrb[0].mxu0 %v2347
    %v2426 = vpop.f32.mrb[0].mxu0
    %v2427 = vadd.f32 0.0, %v2426
    %v2428 = vpop.f32.mrb[0].mxu0
    %v2429 = vadd.f32 0.0, %v2428
    %v2430 = vpop.f32.mrb[0].mxu0
    %v2431 = vpop.f32.mrb[0].mxu0
    %2432 = vdwg.mxu0
    %2433 = vmatprep.subr.bf16.mxu0 %v1120
    %2434 = vmatpush1.bf16.msra.mxu0 %v1119
    %2435 = vmatprep.subr.bf16.mxu0 %v1126
    %2436 = vmatpush1.bf16.msra.mxu0 %v1125
    %2437 = vmatprep.subr.bf16.mxu0 %v1132
    %2438 = vmatpush1.bf16.msra.mxu0 %v1131
    %2439 = vmatprep.subr.bf16.mxu0 %v1138
    %2440 = vmatpush1.bf16.msra.mxu0 %v1137
    %2441 = vmatprep.subr.bf16.mxu0 %v1144
    %2442 = vmatpush1.bf16.msra.mxu0 %v1143
    %2443 = vmatprep.subr.bf16.mxu0 %v1150
    %2444 = vmatpush1.bf16.msra.mxu0 %v1149
    %2445 = vmatprep.subr.bf16.mxu0 %v1156
    %2446 = vmatpush1.bf16.msra.mxu0 %v1155
    %2447 = vmatprep.subr.bf16.mxu0 %v1162
    %2448 = vmatpush1.bf16.msra.mxu0 %v1161
    %2449 = vmatprep.subr.bf16.mxu0 %v1168
    %2450 = vmatpush1.bf16.msra.mxu0 %v1167
    %2451 = vmatprep.subr.bf16.mxu0 %v1174
    %2452 = vmatpush1.bf16.msra.mxu0 %v1173
    %2453 = vmatprep.subr.bf16.mxu0 %v1180
    %2454 = vmatpush1.bf16.msra.mxu0 %v1179
    %2455 = vmatprep.subr.bf16.mxu0 %v1186
    %2456 = vmatpush1.bf16.msra.mxu0 %v1185
    %2457 = vmatprep.subr.bf16.mxu0 %v1192
    %2458 = vmatpush1.bf16.msra.mxu0 %v1191
    %2459 = vmatprep.subr.bf16.mxu0 %v1198
    %2460 = vmatpush1.bf16.msra.mxu0 %v1197
    %2461 = vmatprep.subr.bf16.mxu0 %v1204
    %2462 = vmatpush1.bf16.msra.mxu0 %v1203
    %2463 = vmatprep.subr.bf16.mxu0 %v1210
    %2464 = vmatpush1.bf16.msra.mxu0 %v1209
    %2465 = vmatprep.mubr.bf16.mxu0 %v2348
    %2466 = vmatmul.mubr.bf16.gmra.mrb[0].mxu0 %v2347
    %v2467 = vpop.f32.mrb[0].mxu0
    %v2468 = vadd.f32 0.0, %v2467
    %v2469 = vpop.f32.mrb[0].mxu0
    %v2470 = vadd.f32 0.0, %v2469
    %v2471 = vpop.f32.mrb[0].mxu0
    %v2472 = vpop.f32.mrb[0].mxu0
    %2473 = vdwg.mxu0
    %v2476 = vrot.slane %v2386, 4
    %v2477 = vrot.slane %v2388, 4
    %v2480 = vadd.f32 %v1009, %v2476
    %v2481 = vadd.f32 %v1011, %v2477
    %v2482 = vxor.u32 %v2480, 2147483648
    %v2483 = vxor.u32 %v2481, 2147483648
    %v2484 = vmul.f32 %v2482, 1.442695
    %v2485 = vpow.pop %v2484
    %v2486 = vmul.f32 %v2483, 1.442695
    %v2487 = vpow.pop %v2486
    %v2488 = vadd.f32 %v2485, 1.0
    %v2489 = vadd.f32 %v2487, 1.0
    %v2490 = vrcp.pop %v2488
    %v2491 = vmul.f32 1.0, %v2490
    %v2492 = vrcp.pop %v2489
    %v2493 = vmul.f32 1.0, %v2492
    %v2496 = vrot.slane %v2427, 4
    %v2497 = vrot.slane %v2429, 4
    %v2500 = vadd.f32 %v1052, %v2496
    %v2501 = vadd.f32 %v1054, %v2497
    %v2502 = vxor.u32 %v2500, 2147483648
    %v2503 = vxor.u32 %v2501, 2147483648
    %v2504 = vmul.f32 %v2502, 1.442695
    %v2505 = vpow.pop %v2504
    %v2506 = vmul.f32 %v2503, 1.442695
    %v2507 = vpow.pop %v2506
    %v2508 = vadd.f32 %v2505, 1.0
    %v2509 = vadd.f32 %v2507, 1.0
    %v2510 = vrcp.pop %v2508
    %v2511 = vmul.f32 1.0, %v2510
    %v2512 = vrcp.pop %v2509
    %v2513 = vmul.f32 1.0, %v2512
    %v2514 = vadd.f32 %v2468, %v1104
    %v2515 = vadd.f32 %v2470, %v1108
    %v2518 = vrot.slane %v2514, 4
    %v2519 = vrot.slane %v2515, 4
    %v2522 = vmul.f32 %v2491, %v2518
    %v2523 = vmul.f32 %v2493, %v2519
    %v2524 = vadd.f32 %v1095, %v2522
    %v2525 = vadd.f32 %v1097, %v2523
    %v2526 = vtanh.pop %v2524
    %v2527 = vtanh.pop %v2525
    %v2528 = vsub.f32 1.0, %v2511
    %v2529 = vsub.f32 1.0, %v2513
    %v2530 = vmul.f32 %v2528, %v2526
    %v2531 = vmul.f32 %v2529, %v2527
    %v2534 = vrot.slane %v2341, 6
    %v2535 = vrot.slane %v2342, 6
    %v2538 = vmul.f32 %v2511, %v2534
    %v2539 = vmul.f32 %v2513, %v2535
    %v2540 = vadd.f32 %v2530, %v2538
    %v2541 = vadd.f32 %v2531, %v2539
    %v2542 = vpack.c.bf16 %v2540, %v2540
    %v2543 = vpack.c.bf16 %v2541, %v2541
    %v2546 = vrot.slane %v2542, 2
    %v2547 = vrot.slane %v2543, 2
    %2550 = vmatprep.subr.bf16.mxu0 %v1116
    %2551 = vmatpush1.bf16.msra.mxu0 %v1115
    %2552 = vmatprep.subr.bf16.mxu0 %v1122
    %2553 = vmatpush1.bf16.msra.mxu0 %v1121
    %2554 = vmatprep.subr.bf16.mxu0 %v1128
    %2555 = vmatpush1.bf16.msra.mxu0 %v1127
    %2556 = vmatprep.subr.bf16.mxu0 %v1134
    %2557 = vmatpush1.bf16.msra.mxu0 %v1133
    %2558 = vmatprep.subr.bf16.mxu0 %v1140
    %2559 = vmatpush1.bf16.msra.mxu0 %v1139
    %2560 = vmatprep.subr.bf16.mxu0 %v1146
    %2561 = vmatpush1.bf16.msra.mxu0 %v1145
    %2562 = vmatprep.subr.bf16.mxu0 %v1152
    %2563 = vmatpush1.bf16.msra.mxu0 %v1151
    %2564 = vmatprep.subr.bf16.mxu0 %v1158
    %2565 = vmatpush1.bf16.msra.mxu0 %v1157
    %2566 = vmatprep.subr.bf16.mxu0 %v1164
    %2567 = vmatpush1.bf16.msra.mxu0 %v1163
    %2568 = vmatprep.subr.bf16.mxu0 %v1170
    %2569 = vmatpush1.bf16.msra.mxu0 %v1169
    %2570 = vmatprep.subr.bf16.mxu0 %v1176
    %2571 = vmatpush1.bf16.msra.mxu0 %v1175
    %2572 = vmatprep.subr.bf16.mxu0 %v1182
    %2573 = vmatpush1.bf16.msra.mxu0 %v1181
    %2574 = vmatprep.subr.bf16.mxu0 %v1188
    %2575 = vmatpush1.bf16.msra.mxu0 %v1187
    %2576 = vmatprep.subr.bf16.mxu0 %v1194
    %2577 = vmatpush1.bf16.msra.mxu0 %v1193
    %2578 = vmatprep.subr.bf16.mxu0 %v1200
    %2579 = vmatpush1.bf16.msra.mxu0 %v1199
    %2580 = vmatprep.subr.bf16.mxu0 %v1206
    %2581 = vmatpush1.bf16.msra.mxu0 %v1205
    %2582 = vmatprep.mubr.bf16.mxu0 %v2547
    %2583 = vmatmul.mubr.bf16.gmra.mrb[0].mxu0 %v2546
    %v2584 = vpop.f32.mrb[0].mxu0
    %v2585 = vadd.f32 0.0, %v2584
    %v2586 = vpop.f32.mrb[0].mxu0
    %v2587 = vadd.f32 0.0, %v2586
    %v2588 = vpop.f32.mrb[0].mxu0
    %v2589 = vpop.f32.mrb[0].mxu0
    %2590 = vdwg.mxu0
    %2591 = vmatprep.subr.bf16.mxu0 %v1118
    %2592 = vmatpush1.bf16.msra.mxu0 %v1117
    %2593 = vmatprep.subr.bf16.mxu0 %v1124
    %2594 = vmatpush1.bf16.msra.mxu0 %v1123
    %2595 = vmatprep.subr.bf16.mxu0 %v1130
    %2596 = vmatpush1.bf16.msra.mxu0 %v1129
    %2597 = vmatprep.subr.bf16.mxu0 %v1136
    %2598 = vmatpush1.bf16.msra.mxu0 %v1135
    %2599 = vmatprep.subr.bf16.mxu0 %v1142
    %2600 = vmatpush1.bf16.msra.mxu0 %v1141
    %2601 = vmatprep.subr.bf16.mxu0 %v1148
    %2602 = vmatpush1.bf16.msra.mxu0 %v1147
    %2603 = vmatprep.subr.bf16.mxu0 %v1154
    %2604 = vmatpush1.bf16.msra.mxu0 %v1153
    %2605 = vmatprep.subr.bf16.mxu0 %v1160
    %2606 = vmatpush1.bf16.msra.mxu0 %v1159
    %2607 = vmatprep.subr.bf16.mxu0 %v1166
    %2608 = vmatpush1.bf16.msra.mxu0 %v1165
    %2609 = vmatprep.subr.bf16.mxu0 %v1172
    %2610 = vmatpush1.bf16.msra.mxu0 %v1171
    %2611 = vmatprep.subr.bf16.mxu0 %v1178
    %2612 = vmatpush1.bf16.msra.mxu0 %v1177
    %2613 = vmatprep.subr.bf16.mxu0 %v1184
    %2614 = vmatpush1.bf16.msra.mxu0 %v1183
    %2615 = vmatprep.subr.bf16.mxu0 %v1190
    %2616 = vmatpush1.bf16.msra.mxu0 %v1189
    %2617 = vmatprep.subr.bf16.mxu0 %v1196
    %2618 = vmatpush1.bf16.msra.mxu0 %v1195
    %2619 = vmatprep.subr.bf16.mxu0 %v1202
    %2620 = vmatpush1.bf16.msra.mxu0 %v1201
    %2621 = vmatprep.subr.bf16.mxu0 %v1208
    %2622 = vmatpush1.bf16.msra.mxu0 %v1207
    %2623 = vmatprep.mubr.bf16.mxu0 %v2547
    %2624 = vmatmul.mubr.bf16.gmra.mrb[0].mxu0 %v2546
    %v2625 = vpop.f32.mrb[0].mxu0
    %v2626 = vadd.f32 0.0, %v2625
    %v2627 = vpop.f32.mrb[0].mxu0
    %v2628 = vadd.f32 0.0, %v2627
    %v2629 = vpop.f32.mrb[0].mxu0
    %v2630 = vpop.f32.mrb[0].mxu0
    %2631 = vdwg.mxu0
    %2632 = vmatprep.subr.bf16.mxu0 %v1120
    %2633 = vmatpush1.bf16.msra.mxu0 %v1119
    %2634 = vmatprep.subr.bf16.mxu0 %v1126
    %2635 = vmatpush1.bf16.msra.mxu0 %v1125
    %2636 = vmatprep.subr.bf16.mxu0 %v1132
    %2637 = vmatpush1.bf16.msra.mxu0 %v1131
    %2638 = vmatprep.subr.bf16.mxu0 %v1138
    %2639 = vmatpush1.bf16.msra.mxu0 %v1137
    %2640 = vmatprep.subr.bf16.mxu0 %v1144
    %2641 = vmatpush1.bf16.msra.mxu0 %v1143
    %2642 = vmatprep.subr.bf16.mxu0 %v1150
    %2643 = vmatpush1.bf16.msra.mxu0 %v1149
    %2644 = vmatprep.subr.bf16.mxu0 %v1156
    %2645 = vmatpush1.bf16.msra.mxu0 %v1155
    %2646 = vmatprep.subr.bf16.mxu0 %v1162
    %2647 = vmatpush1.bf16.msra.mxu0 %v1161
    %2648 = vmatprep.subr.bf16.mxu0 %v1168
    %2649 = vmatpush1.bf16.msra.mxu0 %v1167
    %2650 = vmatprep.subr.bf16.mxu0 %v1174
    %2651 = vmatpush1.bf16.msra.mxu0 %v1173
    %2652 = vmatprep.subr.bf16.mxu0 %v1180
    %2653 = vmatpush1.bf16.msra.mxu0 %v1179
    %2654 = vmatprep.subr.bf16.mxu0 %v1186
    %2655 = vmatpush1.bf16.msra.mxu0 %v1185
    %2656 = vmatprep.subr.bf16.mxu0 %v1192
    %2657 = vmatpush1.bf16.msra.mxu0 %v1191
    %2658 = vmatprep.subr.bf16.mxu0 %v1198
    %2659 = vmatpush1.bf16.msra.mxu0 %v1197
    %2660 = vmatprep.subr.bf16.mxu0 %v1204
    %2661 = vmatpush1.bf16.msra.mxu0 %v1203
    %2662 = vmatprep.subr.bf16.mxu0 %v1210
    %2663 = vmatpush1.bf16.msra.mxu0 %v1209
    %2664 = vmatprep.mubr.bf16.mxu0 %v2547
    %2665 = vmatmul.mubr.bf16.gmra.mrb[0].mxu0 %v2546
    %v2666 = vpop.f32.mrb[0].mxu0
    %v2667 = vadd.f32 0.0, %v2666
    %v2668 = vpop.f32.mrb[0].mxu0
    %v2669 = vadd.f32 0.0, %v2668
    %v2670 = vpop.f32.mrb[0].mxu0
    %v2671 = vpop.f32.mrb[0].mxu0
    %2672 = vdwg.mxu0
    %v2675 = vrot.slane %v2585, 2
    %v2676 = vrot.slane %v2587, 2
    %v2679 = vadd.f32 %v1009, %v2675
    %v2680 = vadd.f32 %v1011, %v2676
    %v2681 = vxor.u32 %v2679, 2147483648
    %v2682 = vxor.u32 %v2680, 2147483648
    %v2683 = vmul.f32 %v2681, 1.442695
    %v2684 = vpow.pop %v2683
    %v2685 = vmul.f32 %v2682, 1.442695
    %v2686 = vpow.pop %v2685
    %v2687 = vadd.f32 %v2684, 1.0
    %v2688 = vadd.f32 %v2686, 1.0
    %v2689 = vrcp.pop %v2687
    %v2690 = vmul.f32 1.0, %v2689
    %v2691 = vrcp.pop %v2688
    %v2692 = vmul.f32 1.0, %v2691
    %v2695 = vrot.slane %v2626, 2
    %v2696 = vrot.slane %v2628, 2
    %v2699 = vadd.f32 %v1052, %v2695
    %v2700 = vadd.f32 %v1054, %v2696
    %v2701 = vxor.u32 %v2699, 2147483648
    %v2702 = vxor.u32 %v2700, 2147483648
    %v2703 = vmul.f32 %v2701, 1.442695
    %v2704 = vpow.pop %v2703
    %v2705 = vmul.f32 %v2702, 1.442695
    %v2706 = vpow.pop %v2705
    %v2707 = vadd.f32 %v2704, 1.0
    %v2708 = vadd.f32 %v2706, 1.0
    %v2709 = vrcp.pop %v2707
    %v2710 = vmul.f32 1.0, %v2709
    %v2711 = vrcp.pop %v2708
    %v2712 = vmul.f32 1.0, %v2711
    %v2713 = vadd.f32 %v2667, %v1104
    %v2714 = vadd.f32 %v2669, %v1108
    %v2717 = vrot.slane %v2713, 2
    %v2718 = vrot.slane %v2714, 2
    %v2721 = vmul.f32 %v2690, %v2717
    %v2722 = vmul.f32 %v2692, %v2718
    %v2723 = vadd.f32 %v1095, %v2721
    %v2724 = vadd.f32 %v1097, %v2722
    %v2725 = vtanh.pop %v2723
    %v2726 = vtanh.pop %v2724
    %v2727 = vsub.f32 1.0, %v2710
    %v2728 = vsub.f32 1.0, %v2712
    %v2729 = vmul.f32 %v2727, %v2725
    %v2730 = vmul.f32 %v2728, %v2726
    %v2733 = vrot.slane %v2540, 6
    %v2734 = vrot.slane %v2541, 6
    %v2737 = vmul.f32 %v2710, %v2733
    %v2738 = vmul.f32 %v2712, %v2734
    %v2739 = vadd.f32 %v2729, %v2737
    %v2740 = vadd.f32 %v2730, %v2738
    %v2743 = vcombine.high %v2739, %v2740
    %v2745 = vunpack.c.l.s4 1983009808
    %v2746 = vunpack.c.0.s8 %v2745
    %v2747 = vlaneseq
    %v2748 = vshrl.u32 %v2747, 7
    %v2749 = vsub.s32 %v2746, %v2748
    %v2750 = vrot.slane %v2743, %v2749
    %v2751 = vcombine.high %v2750, %v2750
    %2753 = vst [vmem:[#allocation9] sm:$0xf] %v2751
    // Predicated region
    $region30: #{encoder_forward.1} parent=1 // pred_check
      _
    $region31: #{encoder_forward.1} parent=1 // pred_check_branch
      %2755 = sbr.rel (0) target = $region33
    $region32: #{encoder_forward.1} parent=1 // pred_region
      %s2757 = ssub.s32 64, 64
      %2758 = vsyncadd [#allocation6], %s2757
      %s2760 = sshll.u32 [#allocation9], 4
      %s2761 = int_to_ptr.vmem [resolvable:$true] %s2760
      %2763 = dma.vmem_to_hbm [thread:$0]  %s2761, 64, %s6, [#allocation6]
    $region33: #{encoder_forward.1} parent=1 // pred_fallthru
      _
    // Predicated region
    $region34: #{encoder_forward.1} parent=1 // pred_check
      _
    $region35: #{encoder_forward.1} parent=1 // pred_check_branch
      %2765 = sbr.rel (0) target = $region37
    $region36: #{encoder_forward.1} parent=1 // pred_region
      %2766 = dma.done [#allocation6], 64
    $region37: #{encoder_forward.1} parent=1 // pred_fallthru
      _
    %2767 = vsyncpa [#allocation5], 1
    %2768 = vsyncpa [#allocation6], 1
    %2769 = vsyncpa [#allocation7], 1
  %2770 = vsyncmov [#allocation3]
  %s2771 = vpop.sfrf %2770
  %p2772 = scmp.eq.s32.totalorder %s2771, 0
  %p2773 = pneg %p2772
  %2775 = shalt.err (%p2773)

</llo_original>
